<compile_context>
chip_gen: v7x
topology: tpu7x:2x2x1
jax: 0.10.0
libtpu: 0.0.40
codegen_flags: <defaults>
</compile_context>

<pallas_src>
import functools

import numpy as np
import jax
import jax.numpy as jnp
from jax.experimental import pallas as pl
from jax.experimental.pallas import tpu as pltpu


def _round_up(x, m):
    return ((x + m - 1) // m) * m


def _bn_relu_conv_kernel(x_ref, scale_ref, shift_ref, w_ref, mask_ref, o_ref,
                         pad_ref, *, H, W, Cin, Cout, LOUT, P0):
    # x_ref:     (1, Cin, H*W)        one batch element, channels on sublanes
    # scale_ref: (Cin, 1)             folded BN scale  = gamma / sqrt(var + eps)
    # shift_ref: (Cin, 1)             folded BN shift  = beta - mean * scale
    # w_ref:     (3, 3, Cout, Cin)    conv weights, tap-major
    # mask_ref:  (9, LOUT)            per-tap validity mask over flattened output lanes
    # o_ref:     (1, Cout, H*W)       flattened-NCHW output block
    # pad_ref:   (Cin, pad_lanes)     VMEM scratch holding the activation at lane offset P0
    HW = H * W

    # --- fused BN + ReLU (per-channel scale/shift broadcast along lanes) ---
    x = x_ref[0]                                               # (Cin, HW)
    act = jnp.maximum(x * scale_ref[...] + shift_ref[...], 0.0)
    # Stash at a 128-aligned lane offset: aligned, rotate-free store.
    pad_ref[:, P0:P0 + HW] = act

    # --- 3x3 conv, stride 1, pad 1: 9 lane-shifted MXU matmuls -------------
    acc = jnp.zeros((Cout, LOUT), jnp.float32)                 # 8 vregs, stays in registers
    for dh in range(3):
        for dw in range(3):
            off = (dh - 1) * W + (dw - 1)
            start = P0 + off
            win = pad_ref[:, start:start + LOUT]               # (Cin, LOUT) lane-offset slice
            p = jnp.dot(w_ref[dh, dw], win,
                        preferred_element_type=jnp.float32)    # (Cout, LOUT)
            k = dh * 3 + dw
            m = mask_ref[k:k + 1, :]                           # (1, LOUT), broadcasts over Cout
            # where (not multiply) so uninitialized scratch lanes can never poison acc.
            acc = acc + jnp.where(m > 0.0, p, 0.0)

    o_ref[0] = acc[:, :HW].astype(o_ref.dtype)


def bn_relu_conv(x_nchw, gamma, beta, weight_oihw, *, eps=1e-5):
    """x_nchw: (N, Cin, H, W) float32. Returns (N, Cout, H, W) float32."""
    N, Cin, H, W = x_nchw.shape
    Cout = weight_oihw.shape[0]
    HW = H * W
    LOUT = _round_up(HW, 128)          # matmul / output lane width (196 -> 256)
    P0 = 128                           # lane offset of the activation inside the scratch
    max_off = W + 1                    # largest |tap shift| in flattened-spatial lanes
    pad_lanes = _round_up(P0 + max_off + LOUT, 128)

    # --- free view: NCHW -> (N, Cin, H*W); no transpose, no copy -----------
    x_flat = x_nchw.reshape(N, Cin, HW)

    # --- train-mode batch stats in a single fused pass (biased variance) ---
    m1 = jnp.mean(x_flat, axis=(0, 2))
    m2 = jnp.mean(x_flat * x_flat, axis=(0, 2))
    var = jnp.maximum(m2 - m1 * m1, 0.0)
    scale = gamma * jax.lax.rsqrt(var + eps)                   # (Cin,)
    shift = beta - m1 * scale                                  # (Cin,)

    # --- tiny weight re-layout: OIHW -> (kh, kw, Cout, Cin) ----------------
    w_t = jnp.transpose(weight_oihw, (2, 3, 0, 1))

    # --- host-side per-tap validity masks over flattened output lanes ------
    j = np.arange(LOUT)
    r = j // W
    c = j % W
    mrows = []
    for dh in range(3):
        for dw in range(3):
            ri = r + dh - 1
            ci = c + dw - 1
            ok = (j < HW) & (ri >= 0) & (ri < H) & (ci >= 0) & (ci < W)
            mrows.append(ok.astype(np.float32))
    masks = jnp.asarray(np.stack(mrows, axis=0))               # (9, LOUT)

    kernel = functools.partial(_bn_relu_conv_kernel, H=H, W=W, Cin=Cin,
                               Cout=Cout, LOUT=LOUT, P0=P0)

    out_flat = pl.pallas_call(
        kernel,
        out_shape=jax.ShapeDtypeStruct((N, Cout, HW), jnp.float32),
        grid_spec=pltpu.PrefetchScalarGridSpec(
            num_scalar_prefetch=0,
            grid=(N,),
            in_specs=[
                pl.BlockSpec((1, Cin, HW), lambda n: (n, 0, 0)),
                pl.BlockSpec((Cin, 1), lambda n: (0, 0)),
                pl.BlockSpec((Cin, 1), lambda n: (0, 0)),
                pl.BlockSpec((3, 3, Cout, Cin), lambda n: (0, 0, 0, 0)),
                pl.BlockSpec((9, LOUT), lambda n: (0, 0)),
            ],
            out_specs=pl.BlockSpec((1, Cout, HW), lambda n: (n, 0, 0)),
            scratch_shapes=[pltpu.VMEM((Cin, pad_lanes), jnp.float32)],
        ),
        compiler_params=pltpu.CompilerParams(
            dimension_semantics=("parallel",)),
    )(x_flat, scale.reshape(Cin, 1), shift.reshape(Cin, 1), w_t, masks)

    # free reshape: (N, Cout, H*W) -> NCHW
    return out_flat.reshape(N, Cout, H, W)


def _reference(x_nchw, gamma, beta, weight_oihw, eps=1e-5):
    mean = jnp.mean(x_nchw, axis=(0, 2, 3))
    var = jnp.mean((x_nchw - mean[None, :, None, None]) ** 2, axis=(0, 2, 3))
    xn = (x_nchw - mean[None, :, None, None]) * jax.lax.rsqrt(var + eps)[None, :, None, None]
    act = jnp.maximum(xn * gamma[None, :, None, None] + beta[None, :, None, None], 0.0)
    return jax.lax.conv_general_dilated(
        act, weight_oihw, window_strides=(1, 1), padding=((1, 1), (1, 1)),
        dimension_numbers=("NCHW", "OIHW", "NCHW"))


if __name__ == "__main__":
    key = jax.random.PRNGKey(0)
    k_x, k_g, k_b, k_w = jax.random.split(key, 4)

    N, Cin, H, W, Cout = 2, 128, 14, 14, 32   # Cin/Cout/spatial fixed by the module

    x = jax.random.normal(k_x, (N, Cin, H, W), dtype=jnp.float32)
    gamma = 1.0 + 0.1 * jax.random.normal(k_g, (Cin,), dtype=jnp.float32)
    beta = 0.1 * jax.random.normal(k_b, (Cin,), dtype=jnp.float32)
    fan_in = Cin * 3 * 3
    bound = 1.0 / float(np.sqrt(fan_in))
    weight = jax.random.uniform(k_w, (Cout, Cin, 3, 3), dtype=jnp.float32,
                                minval=-bound, maxval=bound)

    out = jax.block_until_ready(bn_relu_conv(x, gamma, beta, weight))
    ref = jax.block_until_ready(_reference(x, gamma, beta, weight))

    assert out.shape == (N, Cout, H, W), out.shape
    max_err = float(jnp.max(jnp.abs(out - ref)))
    assert jnp.allclose(out, ref, atol=1e-4, rtol=1e-4), max_err

    print("KERNEL_OK")
</pallas_src>

<mosaic_0001>
module attributes {stable_mosaic.version = 11 : i64} {
  func.func @_bn_relu_conv_kernel(%arg0: i32, %arg1: memref<1x128x196xf32, #tpu.memory_space<vmem>>, %arg2: memref<128x1xf32, #tpu.memory_space<vmem>>, %arg3: memref<128x1xf32, #tpu.memory_space<vmem>>, %arg4: memref<3x3x32x128xf32, #tpu.memory_space<vmem>>, %arg5: memref<9x256xf32, #tpu.memory_space<vmem>>, %arg6: memref<1x32x196xf32, #tpu.memory_space<vmem>>, %arg7: memref<128x512xf32, #tpu.memory_space<vmem>>) attributes {dimension_semantics = [#tpu.dimension_semantics<parallel>], iteration_bounds = array<i64: 2>, scalar_prefetch = 0 : i64, scratch_operands = 1 : i64, tpu.core_type = #tpu.core_type<tc>, window_params = [{transform_indices = @transform_0, window_bounds = array<i64: 1, 128, 196>}, {pipeline_mode = #tpu.pipeline_mode<synchronous>, transform_indices = @transform_1, window_bounds = array<i64: 128, 1>}, {pipeline_mode = #tpu.pipeline_mode<synchronous>, transform_indices = @transform_2, window_bounds = array<i64: 128, 1>}, {pipeline_mode = #tpu.pipeline_mode<synchronous>, transform_indices = @transform_3, window_bounds = array<i64: 3, 3, 32, 128>}, {pipeline_mode = #tpu.pipeline_mode<synchronous>, transform_indices = @transform_4, window_bounds = array<i64: 9, 256>}, {transform_indices = @transform_5, window_bounds = array<i64: 1, 32, 196>}]} {
    %c0 = arith.constant 0 : index
    %c0_0 = arith.constant 0 : index
    %c0_1 = arith.constant 0 : index
    %0 = vector.load %arg1[%c0, %c0_0, %c0_1] : memref<1x128x196xf32, #tpu.memory_space<vmem>>, vector<1x128x196xf32>
    %1 = vector.shape_cast %0 : vector<1x128x196xf32> to vector<128x196xf32>
    %c0_2 = arith.constant 0 : index
    %c0_3 = arith.constant 0 : index
    %2 = vector.load %arg2[%c0_2, %c0_3] : memref<128x1xf32, #tpu.memory_space<vmem>>, vector<128x1xf32>
    %3 = vector.broadcast %2 : vector<128x1xf32> to vector<128x196xf32>
    %4 = arith.mulf %1, %3 : vector<128x196xf32>
    %c0_4 = arith.constant 0 : index
    %c0_5 = arith.constant 0 : index
    %5 = vector.load %arg3[%c0_4, %c0_5] : memref<128x1xf32, #tpu.memory_space<vmem>>, vector<128x1xf32>
    %6 = vector.broadcast %5 : vector<128x1xf32> to vector<128x196xf32>
    %7 = arith.addf %4, %6 : vector<128x196xf32>
    %cst = arith.constant 0.000000e+00 : f32
    %8 = vector.broadcast %cst : f32 to vector<128x196xf32>
    %9 = arith.maximumf %7, %8 : vector<128x196xf32>
    %c0_6 = arith.constant 0 : index
    %c128 = arith.constant 128 : index
    %10 = vector.load %arg7[%c0_6, %c128] : memref<128x512xf32, #tpu.memory_space<vmem>>, vector<128x196xf32>
    tpu.vector_store %arg7[%c0_6, %c128], %9 {strides = array<i32>} : memref<128x512xf32, #tpu.memory_space<vmem>>, vector<128x196xf32>,
    %cst_7 = arith.constant 0.000000e+00 : f32
    %11 = vector.broadcast %cst_7 : f32 to vector<32x256xf32>
    %c0_8 = arith.constant 0 : index
    %c113 = arith.constant 113 : index
    %12 = vector.load %arg7[%c0_8, %c113] : memref<128x512xf32, #tpu.memory_space<vmem>>, vector<128x256xf32>
    %c0_9 = arith.constant 0 : index
    %c0_10 = arith.constant 0 : index
    %c0_11 = arith.constant 0 : index
    %c0_12 = arith.constant 0 : index
    %13 = vector.load %arg4[%c0_9, %c0_10, %c0_11, %c0_12] : memref<3x3x32x128xf32, #tpu.memory_space<vmem>>, vector<1x1x32x128xf32>
    %14 = vector.shape_cast %13 : vector<1x1x32x128xf32> to vector<32x128xf32>
    %cst_13 = arith.constant dense<0.000000e+00> : vector<32x256xf32>
    %15 = tpu.matmul %14, %12, %cst_13 {dimension_numbers = #tpu.dot_dimension_numbers<[1], [0], [0], [1], [0, 0, 1, 1], [], []>} : vector<32x128xf32>, vector<128x256xf32>, vector<32x256xf32> -> vector<32x256xf32>
    %c0_14 = arith.constant 0 : index
    %c0_15 = arith.constant 0 : index
    %16 = vector.load %arg5[%c0_14, %c0_15] : memref<9x256xf32, #tpu.memory_space<vmem>>, vector<1x256xf32>
    %cst_16 = arith.constant 0.000000e+00 : f32
    %17 = vector.broadcast %cst_16 : f32 to vector<1x256xf32>
    %18 = arith.cmpf ogt, %16, %17 : vector<1x256xf32>
    %cst_17 = arith.constant 0.000000e+00 : f32
    %19 = vector.shape_cast %18 : vector<1x256xi1> to vector<1x256xi1>
    %20 = vector.broadcast %19 : vector<1x256xi1> to vector<32x256xi1>
    %21 = vector.broadcast %cst_17 : f32 to vector<32x256xf32>
    %22 = arith.select %20, %15, %21 : vector<32x256xi1>, vector<32x256xf32>
    %23 = arith.addf %11, %22 : vector<32x256xf32>
    %c0_18 = arith.constant 0 : index
    %c114 = arith.constant 114 : index
    %24 = vector.load %arg7[%c0_18, %c114] : memref<128x512xf32, #tpu.memory_space<vmem>>, vector<128x256xf32>
    %c0_19 = arith.constant 0 : index
    %c1 = arith.constant 1 : index
    %c0_20 = arith.constant 0 : index
    %c0_21 = arith.constant 0 : index
    %25 = vector.load %arg4[%c0_19, %c1, %c0_20, %c0_21] : memref<3x3x32x128xf32, #tpu.memory_space<vmem>>, vector<1x1x32x128xf32>
    %26 = vector.shape_cast %25 : vector<1x1x32x128xf32> to vector<32x128xf32>
    %cst_22 = arith.constant dense<0.000000e+00> : vector<32x256xf32>
    %27 = tpu.matmul %26, %24, %cst_22 {dimension_numbers = #tpu.dot_dimension_numbers<[1], [0], [0], [1], [0, 0, 1, 1], [], []>} : vector<32x128xf32>, vector<128x256xf32>, vector<32x256xf32> -> vector<32x256xf32>
    %c1_23 = arith.constant 1 : index
    %c0_24 = arith.constant 0 : index
    %28 = vector.load %arg5[%c1_23, %c0_24] : memref<9x256xf32, #tpu.memory_space<vmem>>, vector<1x256xf32>
    %cst_25 = arith.constant 0.000000e+00 : f32
    %29 = vector.broadcast %cst_25 : f32 to vector<1x256xf32>
    %30 = arith.cmpf ogt, %28, %29 : vector<1x256xf32>
    %cst_26 = arith.constant 0.000000e+00 : f32
    %31 = vector.shape_cast %30 : vector<1x256xi1> to vector<1x256xi1>
    %32 = vector.broadcast %31 : vector<1x256xi1> to vector<32x256xi1>
    %33 = vector.broadcast %cst_26 : f32 to vector<32x256xf32>
    %34 = arith.select %32, %27, %33 : vector<32x256xi1>, vector<32x256xf32>
    %35 = arith.addf %23, %34 : vector<32x256xf32>
    %c0_27 = arith.constant 0 : index
    %c115 = arith.constant 115 : index
    %36 = vector.load %arg7[%c0_27, %c115] : memref<128x512xf32, #tpu.memory_space<vmem>>, vector<128x256xf32>
    %c0_28 = arith.constant 0 : index
    %c2 = arith.constant 2 : index
    %c0_29 = arith.constant 0 : index
    %c0_30 = arith.constant 0 : index
    %37 = vector.load %arg4[%c0_28, %c2, %c0_29, %c0_30] : memref<3x3x32x128xf32, #tpu.memory_space<vmem>>, vector<1x1x32x128xf32>
    %38 = vector.shape_cast %37 : vector<1x1x32x128xf32> to vector<32x128xf32>
    %cst_31 = arith.constant dense<0.000000e+00> : vector<32x256xf32>
    %39 = tpu.matmul %38, %36, %cst_31 {dimension_numbers = #tpu.dot_dimension_numbers<[1], [0], [0], [1], [0, 0, 1, 1], [], []>} : vector<32x128xf32>, vector<128x256xf32>, vector<32x256xf32> -> vector<32x256xf32>
    %c2_32 = arith.constant 2 : index
    %c0_33 = arith.constant 0 : index
    %40 = vector.load %arg5[%c2_32, %c0_33] : memref<9x256xf32, #tpu.memory_space<vmem>>, vector<1x256xf32>
    %cst_34 = arith.constant 0.000000e+00 : f32
    %41 = vector.broadcast %cst_34 : f32 to vector<1x256xf32>
    %42 = arith.cmpf ogt, %40, %41 : vector<1x256xf32>
    %cst_35 = arith.constant 0.000000e+00 : f32
    %43 = vector.shape_cast %42 : vector<1x256xi1> to vector<1x256xi1>
    %44 = vector.broadcast %43 : vector<1x256xi1> to vector<32x256xi1>
    %45 = vector.broadcast %cst_35 : f32 to vector<32x256xf32>
    %46 = arith.select %44, %39, %45 : vector<32x256xi1>, vector<32x256xf32>
    %47 = arith.addf %35, %46 : vector<32x256xf32>
    %c0_36 = arith.constant 0 : index
    %c127 = arith.constant 127 : index
    %48 = vector.load %arg7[%c0_36, %c127] : memref<128x512xf32, #tpu.memory_space<vmem>>, vector<128x256xf32>
    %c1_37 = arith.constant 1 : index
    %c0_38 = arith.constant 0 : index
    %c0_39 = arith.constant 0 : index
    %c0_40 = arith.constant 0 : index
    %49 = vector.load %arg4[%c1_37, %c0_38, %c0_39, %c0_40] : memref<3x3x32x128xf32, #tpu.memory_space<vmem>>, vector<1x1x32x128xf32>
    %50 = vector.shape_cast %49 : vector<1x1x32x128xf32> to vector<32x128xf32>
    %cst_41 = arith.constant dense<0.000000e+00> : vector<32x256xf32>
    %51 = tpu.matmul %50, %48, %cst_41 {dimension_numbers = #tpu.dot_dimension_numbers<[1], [0], [0], [1], [0, 0, 1, 1], [], []>} : vector<32x128xf32>, vector<128x256xf32>, vector<32x256xf32> -> vector<32x256xf32>
    %c3 = arith.constant 3 : index
    %c0_42 = arith.constant 0 : index
    %52 = vector.load %arg5[%c3, %c0_42] : memref<9x256xf32, #tpu.memory_space<vmem>>, vector<1x256xf32>
    %cst_43 = arith.constant 0.000000e+00 : f32
    %53 = vector.broadcast %cst_43 : f32 to vector<1x256xf32>
    %54 = arith.cmpf ogt, %52, %53 : vector<1x256xf32>
    %cst_44 = arith.constant 0.000000e+00 : f32
    %55 = vector.shape_cast %54 : vector<1x256xi1> to vector<1x256xi1>
    %56 = vector.broadcast %55 : vector<1x256xi1> to vector<32x256xi1>
    %57 = vector.broadcast %cst_44 : f32 to vector<32x256xf32>
    %58 = arith.select %56, %51, %57 : vector<32x256xi1>, vector<32x256xf32>
    %59 = arith.addf %47, %58 : vector<32x256xf32>
    %c0_45 = arith.constant 0 : index
    %c128_46 = arith.constant 128 : index
    %60 = vector.load %arg7[%c0_45, %c128_46] : memref<128x512xf32, #tpu.memory_space<vmem>>, vector<128x256xf32>
    %c1_47 = arith.constant 1 : index
    %c1_48 = arith.constant 1 : index
    %c0_49 = arith.constant 0 : index
    %c0_50 = arith.constant 0 : index
    %61 = vector.load %arg4[%c1_47, %c1_48, %c0_49, %c0_50] : memref<3x3x32x128xf32, #tpu.memory_space<vmem>>, vector<1x1x32x128xf32>
    %62 = vector.shape_cast %61 : vector<1x1x32x128xf32> to vector<32x128xf32>
    %cst_51 = arith.constant dense<0.000000e+00> : vector<32x256xf32>
    %63 = tpu.matmul %62, %60, %cst_51 {dimension_numbers = #tpu.dot_dimension_numbers<[1], [0], [0], [1], [0, 0, 1, 1], [], []>} : vector<32x128xf32>, vector<128x256xf32>, vector<32x256xf32> -> vector<32x256xf32>
    %c4 = arith.constant 4 : index
    %c0_52 = arith.constant 0 : index
    %64 = vector.load %arg5[%c4, %c0_52] : memref<9x256xf32, #tpu.memory_space<vmem>>, vector<1x256xf32>
    %cst_53 = arith.constant 0.000000e+00 : f32
    %65 = vector.broadcast %cst_53 : f32 to vector<1x256xf32>
    %66 = arith.cmpf ogt, %64, %65 : vector<1x256xf32>
    %cst_54 = arith.constant 0.000000e+00 : f32
    %67 = vector.shape_cast %66 : vector<1x256xi1> to vector<1x256xi1>
    %68 = vector.broadcast %67 : vector<1x256xi1> to vector<32x256xi1>
    %69 = vector.broadcast %cst_54 : f32 to vector<32x256xf32>
    %70 = arith.select %68, %63, %69 : vector<32x256xi1>, vector<32x256xf32>
    %71 = arith.addf %59, %70 : vector<32x256xf32>
    %c0_55 = arith.constant 0 : index
    %c129 = arith.constant 129 : index
    %72 = vector.load %arg7[%c0_55, %c129] : memref<128x512xf32, #tpu.memory_space<vmem>>, vector<128x256xf32>
    %c1_56 = arith.constant 1 : index
    %c2_57 = arith.constant 2 : index
    %c0_58 = arith.constant 0 : index
    %c0_59 = arith.constant 0 : index
    %73 = vector.load %arg4[%c1_56, %c2_57, %c0_58, %c0_59] : memref<3x3x32x128xf32, #tpu.memory_space<vmem>>, vector<1x1x32x128xf32>
    %74 = vector.shape_cast %73 : vector<1x1x32x128xf32> to vector<32x128xf32>
    %cst_60 = arith.constant dense<0.000000e+00> : vector<32x256xf32>
    %75 = tpu.matmul %74, %72, %cst_60 {dimension_numbers = #tpu.dot_dimension_numbers<[1], [0], [0], [1], [0, 0, 1, 1], [], []>} : vector<32x128xf32>, vector<128x256xf32>, vector<32x256xf32> -> vector<32x256xf32>
    %c5 = arith.constant 5 : index
    %c0_61 = arith.constant 0 : index
    %76 = vector.load %arg5[%c5, %c0_61] : memref<9x256xf32, #tpu.memory_space<vmem>>, vector<1x256xf32>
    %cst_62 = arith.constant 0.000000e+00 : f32
    %77 = vector.broadcast %cst_62 : f32 to vector<1x256xf32>
    %78 = arith.cmpf ogt, %76, %77 : vector<1x256xf32>
    %cst_63 = arith.constant 0.000000e+00 : f32
    %79 = vector.shape_cast %78 : vector<1x256xi1> to vector<1x256xi1>
    %80 = vector.broadcast %79 : vector<1x256xi1> to vector<32x256xi1>
    %81 = vector.broadcast %cst_63 : f32 to vector<32x256xf32>
    %82 = arith.select %80, %75, %81 : vector<32x256xi1>, vector<32x256xf32>
    %83 = arith.addf %71, %82 : vector<32x256xf32>
    %c0_64 = arith.constant 0 : index
    %c141 = arith.constant 141 : index
    %84 = vector.load %arg7[%c0_64, %c141] : memref<128x512xf32, #tpu.memory_space<vmem>>, vector<128x256xf32>
    %c2_65 = arith.constant 2 : index
    %c0_66 = arith.constant 0 : index
    %c0_67 = arith.constant 0 : index
    %c0_68 = arith.constant 0 : index
    %85 = vector.load %arg4[%c2_65, %c0_66, %c0_67, %c0_68] : memref<3x3x32x128xf32, #tpu.memory_space<vmem>>, vector<1x1x32x128xf32>
    %86 = vector.shape_cast %85 : vector<1x1x32x128xf32> to vector<32x128xf32>
    %cst_69 = arith.constant dense<0.000000e+00> : vector<32x256xf32>
    %87 = tpu.matmul %86, %84, %cst_69 {dimension_numbers = #tpu.dot_dimension_numbers<[1], [0], [0], [1], [0, 0, 1, 1], [], []>} : vector<32x128xf32>, vector<128x256xf32>, vector<32x256xf32> -> vector<32x256xf32>
    %c6 = arith.constant 6 : index
    %c0_70 = arith.constant 0 : index
    %88 = vector.load %arg5[%c6, %c0_70] : memref<9x256xf32, #tpu.memory_space<vmem>>, vector<1x256xf32>
    %cst_71 = arith.constant 0.000000e+00 : f32
    %89 = vector.broadcast %cst_71 : f32 to vector<1x256xf32>
    %90 = arith.cmpf ogt, %88, %89 : vector<1x256xf32>
    %cst_72 = arith.constant 0.000000e+00 : f32
    %91 = vector.shape_cast %90 : vector<1x256xi1> to vector<1x256xi1>
    %92 = vector.broadcast %91 : vector<1x256xi1> to vector<32x256xi1>
    %93 = vector.broadcast %cst_72 : f32 to vector<32x256xf32>
    %94 = arith.select %92, %87, %93 : vector<32x256xi1>, vector<32x256xf32>
    %95 = arith.addf %83, %94 : vector<32x256xf32>
    %c0_73 = arith.constant 0 : index
    %c142 = arith.constant 142 : index
    %96 = vector.load %arg7[%c0_73, %c142] : memref<128x512xf32, #tpu.memory_space<vmem>>, vector<128x256xf32>
    %c2_74 = arith.constant 2 : index
    %c1_75 = arith.constant 1 : index
    %c0_76 = arith.constant 0 : index
    %c0_77 = arith.constant 0 : index
    %97 = vector.load %arg4[%c2_74, %c1_75, %c0_76, %c0_77] : memref<3x3x32x128xf32, #tpu.memory_space<vmem>>, vector<1x1x32x128xf32>
    %98 = vector.shape_cast %97 : vector<1x1x32x128xf32> to vector<32x128xf32>
    %cst_78 = arith.constant dense<0.000000e+00> : vector<32x256xf32>
    %99 = tpu.matmul %98, %96, %cst_78 {dimension_numbers = #tpu.dot_dimension_numbers<[1], [0], [0], [1], [0, 0, 1, 1], [], []>} : vector<32x128xf32>, vector<128x256xf32>, vector<32x256xf32> -> vector<32x256xf32>
    %c7 = arith.constant 7 : index
    %c0_79 = arith.constant 0 : index
    %100 = vector.load %arg5[%c7, %c0_79] : memref<9x256xf32, #tpu.memory_space<vmem>>, vector<1x256xf32>
    %cst_80 = arith.constant 0.000000e+00 : f32
    %101 = vector.broadcast %cst_80 : f32 to vector<1x256xf32>
    %102 = arith.cmpf ogt, %100, %101 : vector<1x256xf32>
    %cst_81 = arith.constant 0.000000e+00 : f32
    %103 = vector.shape_cast %102 : vector<1x256xi1> to vector<1x256xi1>
    %104 = vector.broadcast %103 : vector<1x256xi1> to vector<32x256xi1>
    %105 = vector.broadcast %cst_81 : f32 to vector<32x256xf32>
    %106 = arith.select %104, %99, %105 : vector<32x256xi1>, vector<32x256xf32>
    %107 = arith.addf %95, %106 : vector<32x256xf32>
    %c0_82 = arith.constant 0 : index
    %c143 = arith.constant 143 : index
    %108 = vector.load %arg7[%c0_82, %c143] : memref<128x512xf32, #tpu.memory_space<vmem>>, vector<128x256xf32>
    %c2_83 = arith.constant 2 : index
    %c2_84 = arith.constant 2 : index
    %c0_85 = arith.constant 0 : index
    %c0_86 = arith.constant 0 : index
    %109 = vector.load %arg4[%c2_83, %c2_84, %c0_85, %c0_86] : memref<3x3x32x128xf32, #tpu.memory_space<vmem>>, vector<1x1x32x128xf32>
    %110 = vector.shape_cast %109 : vector<1x1x32x128xf32> to vector<32x128xf32>
    %cst_87 = arith.constant dense<0.000000e+00> : vector<32x256xf32>
    %111 = tpu.matmul %110, %108, %cst_87 {dimension_numbers = #tpu.dot_dimension_numbers<[1], [0], [0], [1], [0, 0, 1, 1], [], []>} : vector<32x128xf32>, vector<128x256xf32>, vector<32x256xf32> -> vector<32x256xf32>
    %c8 = arith.constant 8 : index
    %c0_88 = arith.constant 0 : index
    %112 = vector.load %arg5[%c8, %c0_88] : memref<9x256xf32, #tpu.memory_space<vmem>>, vector<1x256xf32>
    %cst_89 = arith.constant 0.000000e+00 : f32
    %113 = vector.broadcast %cst_89 : f32 to vector<1x256xf32>
    %114 = arith.cmpf ogt, %112, %113 : vector<1x256xf32>
    %cst_90 = arith.constant 0.000000e+00 : f32
    %115 = vector.shape_cast %114 : vector<1x256xi1> to vector<1x256xi1>
    %116 = vector.broadcast %115 : vector<1x256xi1> to vector<32x256xi1>
    %117 = vector.broadcast %cst_90 : f32 to vector<32x256xf32>
    %118 = arith.select %116, %111, %117 : vector<32x256xi1>, vector<32x256xf32>
    %119 = arith.addf %107, %118 : vector<32x256xf32>
    %120 = vector.extract_strided_slice %119 {offsets = [0, 0], sizes = [32, 196], strides = [1, 1]} : vector<32x256xf32> to vector<32x196xf32>
    %c0_91 = arith.constant 0 : index
    %c0_92 = arith.constant 0 : index
    %c0_93 = arith.constant 0 : index
    %121 = vector.load %arg6[%c0_91, %c0_92, %c0_93] : memref<1x32x196xf32, #tpu.memory_space<vmem>>, vector<1x32x196xf32>
    %122 = vector.shape_cast %121 : vector<1x32x196xf32> to vector<32x196xf32>
    %123 = vector.shape_cast %120 : vector<32x196xf32> to vector<1x32x196xf32>
    tpu.vector_store %arg6[%c0_91, %c0_92, %c0_93], %123 {strides = array<i32>} : memref<1x32x196xf32, #tpu.memory_space<vmem>>, vector<1x32x196xf32>,
    return
  }
  func.func @transform_0(%arg0: i32) -> (i32, i32, i32) {
    %c0_i32 = arith.constant 0 : i32
    %c0_i32_0 = arith.constant 0 : i32
    %c0_i32_1 = arith.constant 0 : i32
    return %arg0, %c0_i32, %c0_i32_0 : i32, i32, i32
  }
  func.func @transform_1(%arg0: i32) -> (i32, i32) {
    %c0_i32 = arith.constant 0 : i32
    %c0_i32_0 = arith.constant 0 : i32
    %c0_i32_1 = arith.constant 0 : i32
    return %c0_i32, %c0_i32_0 : i32, i32
  }
  func.func @transform_2(%arg0: i32) -> (i32, i32) {
    %c0_i32 = arith.constant 0 : i32
    %c0_i32_0 = arith.constant 0 : i32
    %c0_i32_1 = arith.constant 0 : i32
    return %c0_i32, %c0_i32_0 : i32, i32
  }
  func.func @transform_3(%arg0: i32) -> (i32, i32, i32, i32) {
    %c0_i32 = arith.constant 0 : i32
    %c0_i32_0 = arith.constant 0 : i32
    %c0_i32_1 = arith.constant 0 : i32
    %c0_i32_2 = arith.constant 0 : i32
    %c0_i32_3 = arith.constant 0 : i32
    return %c0_i32, %c0_i32_0, %c0_i32_1, %c0_i32_2 : i32, i32, i32, i32
  }
  func.func @transform_4(%arg0: i32) -> (i32, i32) {
    %c0_i32 = arith.constant 0 : i32
    %c0_i32_0 = arith.constant 0 : i32
    %c0_i32_1 = arith.constant 0 : i32
    return %c0_i32, %c0_i32_0 : i32, i32
  }
  func.func @transform_5(%arg0: i32) -> (i32, i32, i32) {
    %c0_i32 = arith.constant 0 : i32
    %c0_i32_0 = arith.constant 0 : i32
    %c0_i32_1 = arith.constant 0 : i32
    return %arg0, %c0_i32, %c0_i32_0 : i32, i32, i32
  }
}

</mosaic_0001>

<llo_original>
// kernel: tpu_custom_call.1
$region0: #{tpu_custom_call.1}
  #allocation0 [shape = 'u32[]', space=smem, size = 0x4, offset = 0x4, fixed_abs, tag = 'smem constant byte address 0x4 - core index']
  #allocation1 [shape = 'u32[144,128]{1,0:T(1,128)}', space=vmem, size = 0x12000, scoped, tag = 'internal scratch']
  #allocation2 [shape = 'f32[128,512]{1,0:T(8,128)}', space=vmem, size = 0x40000, scoped, tag = 'scratch operand']
  %s0 = inlined_call_operand.vmem [shape: f32[2,128,196], index: 0, kind: input, shape index: {}]
  %s1 = inlined_call_operand.vmem [shape: f32[128,1], index: 1, kind: input, shape index: {}]
  %s2 = inlined_call_operand.vmem [shape: f32[128,1], index: 2, kind: input, shape index: {}]
  %s3 = inlined_call_operand.vmem [shape: f32[3,3,32,128], index: 3, kind: input, shape index: {}]
  %s4 = inlined_call_operand.vmem [shape: f32[9,256], index: 4, kind: input, shape index: {}]
  %s5 = inlined_call_operand.hbm [shape: f32[2,32,196], index: 5, kind: output, shape index: {}]
  %s6 = sld [smem:[#allocation0]]
  $region53: #{tpu_custom_call.1} parent=0
    _
  %s8 = ssub.s32 1, %s6
  %s9 = scalar_select 0, %s8, %s6
  $region1: #{tpu_custom_call.1} parent=0
    #allocation3 [shape = 'u8[65536]{0}', space=vmem, size = 0x10000, scoped, tag = 'output window, operand 0']
    #allocation4 [shape = 's32[2]{0}', space=sflag, size = 0x8, scoped, tag = 'scoped memory for tpu_custom_call.1']
    %10 = vsyncpa [#allocation4], 0
    %s11 = scalar_lea.sflag [#allocation4], 1
    %12 = vsyncpa %s11, 0
    loop: start=0, step=1, limit=4
    $region2: #{tpu_custom_call.1} parent=1 // loop_pre_header
      _
    $region3: #{tpu_custom_call.1} parent=1 // loop_header
      %s14 = sphi 0, %s18
      %p15 = scmp.ge.s32.totalorder %s14, 4
      %s24 = sphi 0, %s26
      %s27 = sphi 0, %s24
      %s28 = sphi 0, %s27
      %s44 = sphi 0, %s28
      %s48 = sphi 0, %s48
      %s50 = sphi 0, %s48
      %s51 = sphi 0, %s50
      %s65 = sphi 0, %s51
      %s69 = sphi 0, %s69
      %s71 = sphi 0, %s69
      %s72 = sphi 0, %s71
      %s86 = sphi 0, %s72
      %s90 = sphi 0, %s90
      %s92 = sphi 0, %s90
      %s93 = sphi 0, %s92
      %s107 = sphi 0, %s93
      %s111 = sphi 0, %s111
      %s113 = sphi 0, %s111
      %s114 = sphi 0, %s113
      %s128 = sphi 0, %s114
      %s134 = sphi 0, %s136
      %s137 = sphi 0, %s134
      %s138 = sphi 0, %s137
      %s154 = sphi 0, %s138
    $region4: #{tpu_custom_call.1} parent=1 // loop_header_branch
      %17 = sbr.rel (%p15) target = $region8
    $region5: #{tpu_custom_call.1} parent=1 // loop_body
      %s19 = ssub.s32 %s14, 1
      %s20 = ssub.s32 %s14, 2
      %s21 = sadd.s32 %s14, 1
      %s22 = ssub.s32 %s14, %s21
      %p23 = scmp.eq.s32.totalorder %s22, 0
      %s25 = sadd.s32 %s24, 1
      %s26 = scalar_select %p23, %s24, %s25
      %p29 = pneg %p23
      %p30 = scmp.eq.s32.totalorder %s14, 1
      %p31 = por %p29, %p30
      %p32 = scmp.ne.s32.totalorder %s24, %s27
      %p33 = scmp.eq.s32.totalorder %s14, 0
      %p34 = por %p32, %p33
      %p35 = scmp.ne.s32.totalorder %s24, %s27
      %p36 = scmp.eq.s32.totalorder %s19, 1
      %p37 = por %p35, %p36
      %p38 = scmp.ne.s32.totalorder %s27, %s28
      %p39 = scmp.eq.s32.totalorder %s19, 0
      %p40 = por %p38, %p39
      %p41 = scmp.ne.s32.totalorder %s27, %s28
      %p42 = scmp.eq.s32.totalorder %s20, 1
      %p43 = por %p41, %p42
      %p45 = scmp.ne.s32.totalorder %s28, %s44
      %p46 = scmp.eq.s32.totalorder %s20, 0
      %p47 = por %p45, %p46
      %s49 = sadd.s32 %s48, 1
      %p52 = scmp.eq.s32.totalorder %s14, 1
      %p53 = scmp.ne.s32.totalorder %s48, %s50
      %p54 = scmp.eq.s32.totalorder %s14, 0
      %p55 = por %p53, %p54
      %p56 = scmp.ne.s32.totalorder %s48, %s50
      %p57 = scmp.eq.s32.totalorder %s19, 1
      %p58 = por %p56, %p57
      %p59 = scmp.ne.s32.totalorder %s50, %s51
      %p60 = scmp.eq.s32.totalorder %s19, 0
      %p61 = por %p59, %p60
      %p62 = scmp.ne.s32.totalorder %s50, %s51
      %p63 = scmp.eq.s32.totalorder %s20, 1
      %p64 = por %p62, %p63
      %p66 = scmp.ne.s32.totalorder %s51, %s65
      %p67 = scmp.eq.s32.totalorder %s20, 0
      %p68 = por %p66, %p67
      %s70 = sadd.s32 %s69, 1
      %p73 = scmp.eq.s32.totalorder %s14, 1
      %p74 = scmp.ne.s32.totalorder %s69, %s71
      %p75 = scmp.eq.s32.totalorder %s14, 0
      %p76 = por %p74, %p75
      %p77 = scmp.ne.s32.totalorder %s69, %s71
      %p78 = scmp.eq.s32.totalorder %s19, 1
      %p79 = por %p77, %p78
      %p80 = scmp.ne.s32.totalorder %s71, %s72
      %p81 = scmp.eq.s32.totalorder %s19, 0
      %p82 = por %p80, %p81
      %p83 = scmp.ne.s32.totalorder %s71, %s72
      %p84 = scmp.eq.s32.totalorder %s20, 1
      %p85 = por %p83, %p84
      %p87 = scmp.ne.s32.totalorder %s72, %s86
      %p88 = scmp.eq.s32.totalorder %s20, 0
      %p89 = por %p87, %p88
      %s91 = sadd.s32 %s90, 1
      %p94 = scmp.eq.s32.totalorder %s14, 1
      %p95 = scmp.ne.s32.totalorder %s90, %s92
      %p96 = scmp.eq.s32.totalorder %s14, 0
      %p97 = por %p95, %p96
      %p98 = scmp.ne.s32.totalorder %s90, %s92
      %p99 = scmp.eq.s32.totalorder %s19, 1
      %p100 = por %p98, %p99
      %p101 = scmp.ne.s32.totalorder %s92, %s93
      %p102 = scmp.eq.s32.totalorder %s19, 0
      %p103 = por %p101, %p102
      %p104 = scmp.ne.s32.totalorder %s92, %s93
      %p105 = scmp.eq.s32.totalorder %s20, 1
      %p106 = por %p104, %p105
      %p108 = scmp.ne.s32.totalorder %s93, %s107
      %p109 = scmp.eq.s32.totalorder %s20, 0
      %p110 = por %p108, %p109
      %s112 = sadd.s32 %s111, 1
      %p115 = scmp.eq.s32.totalorder %s14, 1
      %p116 = scmp.ne.s32.totalorder %s111, %s113
      %p117 = scmp.eq.s32.totalorder %s14, 0
      %p118 = por %p116, %p117
      %p119 = scmp.ne.s32.totalorder %s111, %s113
      %p120 = scmp.eq.s32.totalorder %s19, 1
      %p121 = por %p119, %p120
      %p122 = scmp.ne.s32.totalorder %s113, %s114
      %p123 = scmp.eq.s32.totalorder %s19, 0
      %p124 = por %p122, %p123
      %p125 = scmp.ne.s32.totalorder %s113, %s114
      %p126 = scmp.eq.s32.totalorder %s20, 1
      %p127 = por %p125, %p126
      %p129 = scmp.ne.s32.totalorder %s114, %s128
      %p130 = scmp.eq.s32.totalorder %s20, 0
      %p131 = por %p129, %p130
      %s132 = ssub.s32 %s14, %s21
      %p133 = scmp.eq.s32.totalorder %s132, 0
      %s135 = sadd.s32 %s134, 1
      %s136 = scalar_select %p133, %s134, %s135
      %p139 = pneg %p133
      %p140 = scmp.eq.s32.totalorder %s14, 1
      %p141 = por %p139, %p140
      %p142 = scmp.ne.s32.totalorder %s134, %s137
      %p143 = scmp.eq.s32.totalorder %s14, 0
      %p144 = por %p142, %p143
      %p145 = scmp.ne.s32.totalorder %s134, %s137
      %p146 = scmp.eq.s32.totalorder %s19, 1
      %p147 = por %p145, %p146
      %p148 = scmp.ne.s32.totalorder %s137, %s138
      %p149 = scmp.eq.s32.totalorder %s19, 0
      %p150 = por %p148, %p149
      %p151 = scmp.ne.s32.totalorder %s137, %s138
      %p152 = scmp.eq.s32.totalorder %s20, 1
      %p153 = por %p151, %p152
      %p155 = scmp.ne.s32.totalorder %s138, %s154
      %p156 = scmp.eq.s32.totalorder %s20, 0
      %p157 = por %p155, %p156
      %p158 = scmp.le.s32.totalorder 1, %s14
      %p159 = scmp.lt.s32.totalorder %s14, 3
      %p160 = pnand %p158, %p159
      %p161 = pneg %p160
      // Predicated region
      $region9: #{tpu_custom_call.1} parent=5 // pred_check
        _
      $region10: #{tpu_custom_call.1} parent=5 // pred_check_branch
        %163 = sbr.rel (%p160) target = $region12
      $region11: #{tpu_custom_call.1} parent=5 // pred_region
        %s164 = ssub.s32 %s14, 1
        // Predicated region
        $region13: #{tpu_custom_call.1} parent=11 // pred_check
          %p165 = pneg %p61
        $region14: #{tpu_custom_call.1} parent=11 // pred_check_branch
          %167 = sbr.rel (%p165) target = $region16
        $region15: #{tpu_custom_call.1} parent=11 // pred_region
          _
        $region16: #{tpu_custom_call.1} parent=11 // pred_fallthru
          _
        // Predicated region
        $region17: #{tpu_custom_call.1} parent=11 // pred_check
          %p168 = pneg %p82
        $region18: #{tpu_custom_call.1} parent=11 // pred_check_branch
          %170 = sbr.rel (%p168) target = $region20
        $region19: #{tpu_custom_call.1} parent=11 // pred_region
          _
        $region20: #{tpu_custom_call.1} parent=11 // pred_fallthru
          _
        // Predicated region
        $region21: #{tpu_custom_call.1} parent=11 // pred_check
          %p171 = pneg %p103
        $region22: #{tpu_custom_call.1} parent=11 // pred_check_branch
          %173 = sbr.rel (%p171) target = $region24
        $region23: #{tpu_custom_call.1} parent=11 // pred_region
          _
        $region24: #{tpu_custom_call.1} parent=11 // pred_fallthru
          _
        // Predicated region
        $region25: #{tpu_custom_call.1} parent=11 // pred_check
          %p174 = pneg %p124
        $region26: #{tpu_custom_call.1} parent=11 // pred_check_branch
          %176 = sbr.rel (%p174) target = $region28
        $region27: #{tpu_custom_call.1} parent=11 // pred_region
          _
        $region28: #{tpu_custom_call.1} parent=11 // pred_fallthru
          _
      $region12: #{tpu_custom_call.1} parent=5 // pred_fallthru
        _
      %p177 = scmp.lt.s32.totalorder %s14, 2
      // Predicated region
      $region29: #{tpu_custom_call.1} parent=5 // pred_check
        %p178 = pneg %p177
      $region30: #{tpu_custom_call.1} parent=5 // pred_check_branch
        %180 = sbr.rel (%p178) target = $region32
      $region31: #{tpu_custom_call.1} parent=5 // pred_region
        // Predicated region
        $region33: #{tpu_custom_call.1} parent=31 // pred_check
          %p181 = pneg %p34
        $region34: #{tpu_custom_call.1} parent=31 // pred_check_branch
          %183 = sbr.rel (%p181) target = $region36
        $region35: #{tpu_custom_call.1} parent=31 // pred_region
          %p184 = scmp.lt.s32.totalorder %s14, 1
          %s185 = scalar_select %p184, %s14, 1
          %s186 = smul.addr %s185, 32
          %s187 = smul.addr %s186, 8
          %s188 = scalar_lea.vmem %s0, %s187
        $region36: #{tpu_custom_call.1} parent=31 // pred_fallthru
          _
      $region32: #{tpu_custom_call.1} parent=5 // pred_fallthru
        _
      %p189 = scmp.le.s32.totalorder 1, %s14
      %p190 = scmp.lt.s32.totalorder %s14, 3
      %p191 = pnand %p189, %p190
      %p192 = pneg %p191
      // Predicated region
      $region37: #{tpu_custom_call.1} parent=5 // pred_check
        _
      $region38: #{tpu_custom_call.1} parent=5 // pred_check_branch
        %194 = sbr.rel (%p191) target = $region40
      $region39: #{tpu_custom_call.1} parent=5 // pred_region
        %s195 = ssub.s32 %s14, 1
        %p196 = scmp.lt.s32.totalorder %s19, 1
        %s197 = scalar_select %p196, %s19, 1
        %s198 = smul.addr %s197, 32
        %s199 = smul.addr %s198, 8
        %s200 = scalar_lea.vmem %s0, %s199
        %p201 = pneg %p40
        %p202 = pneg %p37
        %p203 = pneg %p61
        %p204 = pneg %p58
        %p205 = pneg %p82
        %p206 = pneg %p79
        %p207 = pneg %p103
        %p208 = pneg %p100
        %p209 = pneg %p124
        %p210 = pneg %p121
        %p211 = pneg %p150
        %p212 = pneg %p147
        %s213 = sand.u32 %s137, 1
        %s214 = scalar_lea.sflag [#allocation4], %s213
        %s215 = sand.u32 %s137, 1
        %s216 = smul.addr %s215, 64
        %s217 = scalar_lea.vmem [#allocation3], %s216
        %p218 = scmp.lt.s32.totalorder %s19, 1
        %s219 = scalar_select %p218, %s19, 1
        %s220 = smul.addr %s219, 32
        %s221 = smul.addr %s220, 8
        %s222 = scalar_lea.vmem %s0, %s221
        %v223 = vld [vmem:[%s222] sm:$0xff]
        %v224 = vld [vmem:[%s222 + $0x8] sm:$0xff]
        %v225 = vld [vmem:[%s222 + $0x10] sm:$0xff]
        %v226 = vld [vmem:[%s222 + $0x18] sm:$0xff]
        %v227 = vld [vmem:[%s222 + $0x20] sm:$0xff]
        %v228 = vld [vmem:[%s222 + $0x28] sm:$0xff]
        %v229 = vld [vmem:[%s222 + $0x30] sm:$0xff]
        %v230 = vld [vmem:[%s222 + $0x38] sm:$0xff]
        %v231 = vld [vmem:[%s222 + $0x40] sm:$0xff]
        %v232 = vld [vmem:[%s222 + $0x48] sm:$0xff]
        %v233 = vld [vmem:[%s222 + $0x50] sm:$0xff]
        %v234 = vld [vmem:[%s222 + $0x58] sm:$0xff]
        %v235 = vld [vmem:[%s222 + $0x60] sm:$0xff]
        %v236 = vld [vmem:[%s222 + $0x68] sm:$0xff]
        %v237 = vld [vmem:[%s222 + $0x70] sm:$0xff]
        %v238 = vld [vmem:[%s222 + $0x78] sm:$0xff]
        %v239 = vld [vmem:[%s222 + $0x80] sm:$0xff]
        %v240 = vld [vmem:[%s222 + $0x88] sm:$0xff]
        %v241 = vld [vmem:[%s222 + $0x90] sm:$0xff]
        %v242 = vld [vmem:[%s222 + $0x98] sm:$0xff]
        %v243 = vld [vmem:[%s222 + $0xa0] sm:$0xff]
        %v244 = vld [vmem:[%s222 + $0xa8] sm:$0xff]
        %v245 = vld [vmem:[%s222 + $0xb0] sm:$0xff]
        %v246 = vld [vmem:[%s222 + $0xb8] sm:$0xff]
        %v247 = vld [vmem:[%s222 + $0xc0] sm:$0xff]
        %v248 = vld [vmem:[%s222 + $0xc8] sm:$0xff]
        %v249 = vld [vmem:[%s222 + $0xd0] sm:$0xff]
        %v250 = vld [vmem:[%s222 + $0xd8] sm:$0xff]
        %v251 = vld [vmem:[%s222 + $0xe0] sm:$0xff]
        %v252 = vld [vmem:[%s222 + $0xe8] sm:$0xff]
        %v253 = vld [vmem:[%s222 + $0xf0] sm:$0xff]
        %v254 = vld [vmem:[%s222 + $0xf8] sm:$0xff]
        %v255 = vld [vmem:[%s1] sm:$0xff]
        %v256 = vld [vmem:[%s1 + $0x8] sm:$0xff]
        %v257 = vld [vmem:[%s1 + $0x10] sm:$0xff]
        %v258 = vld [vmem:[%s1 + $0x18] sm:$0xff]
        %v259 = vld [vmem:[%s1 + $0x20] sm:$0xff]
        %v260 = vld [vmem:[%s1 + $0x28] sm:$0xff]
        %v261 = vld [vmem:[%s1 + $0x30] sm:$0xff]
        %v262 = vld [vmem:[%s1 + $0x38] sm:$0xff]
        %v263 = vld [vmem:[%s1 + $0x40] sm:$0xff]
        %v264 = vld [vmem:[%s1 + $0x48] sm:$0xff]
        %v265 = vld [vmem:[%s1 + $0x50] sm:$0xff]
        %v266 = vld [vmem:[%s1 + $0x58] sm:$0xff]
        %v267 = vld [vmem:[%s1 + $0x60] sm:$0xff]
        %v268 = vld [vmem:[%s1 + $0x68] sm:$0xff]
        %v269 = vld [vmem:[%s1 + $0x70] sm:$0xff]
        %v270 = vld [vmem:[%s1 + $0x78] sm:$0xff]
        %272 = vset.pattern.permute.xlu0 0
        %273 = vperm.xlu0 %272, %v255
        %v274 = vpop.permute.xlu0 %273
        %277 = vset.pattern.permute.xlu0 0
        %278 = vperm.xlu0 %277, %v256
        %v279 = vpop.permute.xlu0 %278
        %282 = vset.pattern.permute.xlu0 0
        %283 = vperm.xlu0 %282, %v257
        %v284 = vpop.permute.xlu0 %283
        %287 = vset.pattern.permute.xlu0 0
        %288 = vperm.xlu0 %287, %v258
        %v289 = vpop.permute.xlu0 %288
        %292 = vset.pattern.permute.xlu0 0
        %293 = vperm.xlu0 %292, %v259
        %v294 = vpop.permute.xlu0 %293
        %297 = vset.pattern.permute.xlu0 0
        %298 = vperm.xlu0 %297, %v260
        %v299 = vpop.permute.xlu0 %298
        %302 = vset.pattern.permute.xlu0 0
        %303 = vperm.xlu0 %302, %v261
        %v304 = vpop.permute.xlu0 %303
        %307 = vset.pattern.permute.xlu0 0
        %308 = vperm.xlu0 %307, %v262
        %v309 = vpop.permute.xlu0 %308
        %312 = vset.pattern.permute.xlu0 0
        %313 = vperm.xlu0 %312, %v263
        %v314 = vpop.permute.xlu0 %313
        %317 = vset.pattern.permute.xlu0 0
        %318 = vperm.xlu0 %317, %v264
        %v319 = vpop.permute.xlu0 %318
        %322 = vset.pattern.permute.xlu0 0
        %323 = vperm.xlu0 %322, %v265
        %v324 = vpop.permute.xlu0 %323
        %327 = vset.pattern.permute.xlu0 0
        %328 = vperm.xlu0 %327, %v266
        %v329 = vpop.permute.xlu0 %328
        %332 = vset.pattern.permute.xlu0 0
        %333 = vperm.xlu0 %332, %v267
        %v334 = vpop.permute.xlu0 %333
        %337 = vset.pattern.permute.xlu0 0
        %338 = vperm.xlu0 %337, %v268
        %v339 = vpop.permute.xlu0 %338
        %342 = vset.pattern.permute.xlu0 0
        %343 = vperm.xlu0 %342, %v269
        %v344 = vpop.permute.xlu0 %343
        %347 = vset.pattern.permute.xlu0 0
        %348 = vperm.xlu0 %347, %v270
        %v349 = vpop.permute.xlu0 %348
        %v351 = vmul.f32 %v223, %v274
        %v352 = vmul.f32 %v224, %v274
        %v353 = vmul.f32 %v225, %v279
        %v354 = vmul.f32 %v226, %v279
        %v355 = vmul.f32 %v227, %v284
        %v356 = vmul.f32 %v228, %v284
        %v357 = vmul.f32 %v229, %v289
        %v358 = vmul.f32 %v230, %v289
        %v359 = vmul.f32 %v231, %v294
        %v360 = vmul.f32 %v232, %v294
        %v361 = vmul.f32 %v233, %v299
        %v362 = vmul.f32 %v234, %v299
        %v363 = vmul.f32 %v235, %v304
        %v364 = vmul.f32 %v236, %v304
        %v365 = vmul.f32 %v237, %v309
        %v366 = vmul.f32 %v238, %v309
        %v367 = vmul.f32 %v239, %v314
        %v368 = vmul.f32 %v240, %v314
        %v369 = vmul.f32 %v241, %v319
        %v370 = vmul.f32 %v242, %v319
        %v371 = vmul.f32 %v243, %v324
        %v372 = vmul.f32 %v244, %v324
        %v373 = vmul.f32 %v245, %v329
        %v374 = vmul.f32 %v246, %v329
        %v375 = vmul.f32 %v247, %v334
        %v376 = vmul.f32 %v248, %v334
        %v377 = vmul.f32 %v249, %v339
        %v378 = vmul.f32 %v250, %v339
        %v379 = vmul.f32 %v251, %v344
        %v380 = vmul.f32 %v252, %v344
        %v381 = vmul.f32 %v253, %v349
        %v382 = vmul.f32 %v254, %v349
        %v383 = vld [vmem:[%s2] sm:$0xff]
        %v384 = vld [vmem:[%s2 + $0x8] sm:$0xff]
        %v385 = vld [vmem:[%s2 + $0x10] sm:$0xff]
        %v386 = vld [vmem:[%s2 + $0x18] sm:$0xff]
        %v387 = vld [vmem:[%s2 + $0x20] sm:$0xff]
        %v388 = vld [vmem:[%s2 + $0x28] sm:$0xff]
        %v389 = vld [vmem:[%s2 + $0x30] sm:$0xff]
        %v390 = vld [vmem:[%s2 + $0x38] sm:$0xff]
        %v391 = vld [vmem:[%s2 + $0x40] sm:$0xff]
        %v392 = vld [vmem:[%s2 + $0x48] sm:$0xff]
        %v393 = vld [vmem:[%s2 + $0x50] sm:$0xff]
        %v394 = vld [vmem:[%s2 + $0x58] sm:$0xff]
        %v395 = vld [vmem:[%s2 + $0x60] sm:$0xff]
        %v396 = vld [vmem:[%s2 + $0x68] sm:$0xff]
        %v397 = vld [vmem:[%s2 + $0x70] sm:$0xff]
        %v398 = vld [vmem:[%s2 + $0x78] sm:$0xff]
        %400 = vset.pattern.permute.xlu0 0
        %401 = vperm.xlu0 %400, %v383
        %v402 = vpop.permute.xlu0 %401
        %405 = vset.pattern.permute.xlu0 0
        %406 = vperm.xlu0 %405, %v384
        %v407 = vpop.permute.xlu0 %406
        %410 = vset.pattern.permute.xlu0 0
        %411 = vperm.xlu0 %410, %v385
        %v412 = vpop.permute.xlu0 %411
        %415 = vset.pattern.permute.xlu0 0
        %416 = vperm.xlu0 %415, %v386
        %v417 = vpop.permute.xlu0 %416
        %420 = vset.pattern.permute.xlu0 0
        %421 = vperm.xlu0 %420, %v387
        %v422 = vpop.permute.xlu0 %421
        %425 = vset.pattern.permute.xlu0 0
        %426 = vperm.xlu0 %425, %v388
        %v427 = vpop.permute.xlu0 %426
        %430 = vset.pattern.permute.xlu0 0
        %431 = vperm.xlu0 %430, %v389
        %v432 = vpop.permute.xlu0 %431
        %435 = vset.pattern.permute.xlu0 0
        %436 = vperm.xlu0 %435, %v390
        %v437 = vpop.permute.xlu0 %436
        %440 = vset.pattern.permute.xlu0 0
        %441 = vperm.xlu0 %440, %v391
        %v442 = vpop.permute.xlu0 %441
        %445 = vset.pattern.permute.xlu0 0
        %446 = vperm.xlu0 %445, %v392
        %v447 = vpop.permute.xlu0 %446
        %450 = vset.pattern.permute.xlu0 0
        %451 = vperm.xlu0 %450, %v393
        %v452 = vpop.permute.xlu0 %451
        %455 = vset.pattern.permute.xlu0 0
        %456 = vperm.xlu0 %455, %v394
        %v457 = vpop.permute.xlu0 %456
        %460 = vset.pattern.permute.xlu0 0
        %461 = vperm.xlu0 %460, %v395
        %v462 = vpop.permute.xlu0 %461
        %465 = vset.pattern.permute.xlu0 0
        %466 = vperm.xlu0 %465, %v396
        %v467 = vpop.permute.xlu0 %466
        %470 = vset.pattern.permute.xlu0 0
        %471 = vperm.xlu0 %470, %v397
        %v472 = vpop.permute.xlu0 %471
        %475 = vset.pattern.permute.xlu0 0
        %476 = vperm.xlu0 %475, %v398
        %v477 = vpop.permute.xlu0 %476
        %v479 = vadd.f32 %v351, %v402
        %v480 = vadd.f32 %v352, %v402
        %v481 = vadd.f32 %v353, %v407
        %v482 = vadd.f32 %v354, %v407
        %v483 = vadd.f32 %v355, %v412
        %v484 = vadd.f32 %v356, %v412
        %v485 = vadd.f32 %v357, %v417
        %v486 = vadd.f32 %v358, %v417
        %v487 = vadd.f32 %v359, %v422
        %v488 = vadd.f32 %v360, %v422
        %v489 = vadd.f32 %v361, %v427
        %v490 = vadd.f32 %v362, %v427
        %v491 = vadd.f32 %v363, %v432
        %v492 = vadd.f32 %v364, %v432
        %v493 = vadd.f32 %v365, %v437
        %v494 = vadd.f32 %v366, %v437
        %v495 = vadd.f32 %v367, %v442
        %v496 = vadd.f32 %v368, %v442
        %v497 = vadd.f32 %v369, %v447
        %v498 = vadd.f32 %v370, %v447
        %v499 = vadd.f32 %v371, %v452
        %v500 = vadd.f32 %v372, %v452
        %v501 = vadd.f32 %v373, %v457
        %v502 = vadd.f32 %v374, %v457
        %v503 = vadd.f32 %v375, %v462
        %v504 = vadd.f32 %v376, %v462
        %v505 = vadd.f32 %v377, %v467
        %v506 = vadd.f32 %v378, %v467
        %v507 = vadd.f32 %v379, %v472
        %v508 = vadd.f32 %v380, %v472
        %v509 = vadd.f32 %v381, %v477
        %v510 = vadd.f32 %v382, %v477
        %v511 = vmax.f32 %v479, 0.0
        %v512 = vmax.f32 %v480, 0.0
        %v513 = vmax.f32 %v481, 0.0
        %v514 = vmax.f32 %v482, 0.0
        %v515 = vmax.f32 %v483, 0.0
        %v516 = vmax.f32 %v484, 0.0
        %v517 = vmax.f32 %v485, 0.0
        %v518 = vmax.f32 %v486, 0.0
        %v519 = vmax.f32 %v487, 0.0
        %v520 = vmax.f32 %v488, 0.0
        %v521 = vmax.f32 %v489, 0.0
        %v522 = vmax.f32 %v490, 0.0
        %v523 = vmax.f32 %v491, 0.0
        %v524 = vmax.f32 %v492, 0.0
        %v525 = vmax.f32 %v493, 0.0
        %v526 = vmax.f32 %v494, 0.0
        %v527 = vmax.f32 %v495, 0.0
        %v528 = vmax.f32 %v496, 0.0
        %v529 = vmax.f32 %v497, 0.0
        %v530 = vmax.f32 %v498, 0.0
        %v531 = vmax.f32 %v499, 0.0
        %v532 = vmax.f32 %v500, 0.0
        %v533 = vmax.f32 %v501, 0.0
        %v534 = vmax.f32 %v502, 0.0
        %v535 = vmax.f32 %v503, 0.0
        %v536 = vmax.f32 %v504, 0.0
        %v537 = vmax.f32 %v505, 0.0
        %v538 = vmax.f32 %v506, 0.0
        %v539 = vmax.f32 %v507, 0.0
        %v540 = vmax.f32 %v508, 0.0
        %v541 = vmax.f32 %v509, 0.0
        %v542 = vmax.f32 %v510, 0.0
        %543 = vst [vmem:[#allocation2 + $0x8] sm:$0xff] %v511
        %vm544 = vcmask 556032
        %545 = vst.msk [vmem:[#allocation2 + $0x10] sm:$0xff] %vm544, %v512
        %546 = vst [vmem:[#allocation2 + $0x28] sm:$0xff] %v513
        %547 = vst.msk [vmem:[#allocation2 + $0x30] sm:$0xff] %vm544, %v514
        %548 = vst [vmem:[#allocation2 + $0x48] sm:$0xff] %v515
        %549 = vst.msk [vmem:[#allocation2 + $0x50] sm:$0xff] %vm544, %v516
        %550 = vst [vmem:[#allocation2 + $0x68] sm:$0xff] %v517
        %551 = vst.msk [vmem:[#allocation2 + $0x70] sm:$0xff] %vm544, %v518
        %552 = vst [vmem:[#allocation2 + $0x88] sm:$0xff] %v519
        %553 = vst.msk [vmem:[#allocation2 + $0x90] sm:$0xff] %vm544, %v520
        %554 = vst [vmem:[#allocation2 + $0xa8] sm:$0xff] %v521
        %555 = vst.msk [vmem:[#allocation2 + $0xb0] sm:$0xff] %vm544, %v522
        %556 = vst [vmem:[#allocation2 + $0xc8] sm:$0xff] %v523
        %557 = vst.msk [vmem:[#allocation2 + $0xd0] sm:$0xff] %vm544, %v524
        %558 = vst [vmem:[#allocation2 + $0xe8] sm:$0xff] %v525
        %559 = vst.msk [vmem:[#allocation2 + $0xf0] sm:$0xff] %vm544, %v526
        %560 = vst [vmem:[#allocation2 + $0x108] sm:$0xff] %v527
        %561 = vst.msk [vmem:[#allocation2 + $0x110] sm:$0xff] %vm544, %v528
        %562 = vst [vmem:[#allocation2 + $0x128] sm:$0xff] %v529
        %563 = vst.msk [vmem:[#allocation2 + $0x130] sm:$0xff] %vm544, %v530
        %564 = vst [vmem:[#allocation2 + $0x148] sm:$0xff] %v531
        %565 = vst.msk [vmem:[#allocation2 + $0x150] sm:$0xff] %vm544, %v532
        %566 = vst [vmem:[#allocation2 + $0x168] sm:$0xff] %v533
        %567 = vst.msk [vmem:[#allocation2 + $0x170] sm:$0xff] %vm544, %v534
        %568 = vst [vmem:[#allocation2 + $0x188] sm:$0xff] %v535
        %569 = vst.msk [vmem:[#allocation2 + $0x190] sm:$0xff] %vm544, %v536
        %570 = vst [vmem:[#allocation2 + $0x1a8] sm:$0xff] %v537
        %571 = vst.msk [vmem:[#allocation2 + $0x1b0] sm:$0xff] %vm544, %v538
        %572 = vst [vmem:[#allocation2 + $0x1c8] sm:$0xff] %v539
        %573 = vst.msk [vmem:[#allocation2 + $0x1d0] sm:$0xff] %vm544, %v540
        %574 = vst [vmem:[#allocation2 + $0x1e8] sm:$0xff] %v541
        %575 = vst.msk [vmem:[#allocation2 + $0x1f0] sm:$0xff] %vm544, %v542
        %v576 = vld [vmem:[#allocation2] sm:$0xff]
        %v577 = vld [vmem:[#allocation2 + $0x8] sm:$0xff]
        %v578 = vld [vmem:[#allocation2 + $0x10] sm:$0xff]
        %v579 = vld [vmem:[#allocation2 + $0x20] sm:$0xff]
        %v580 = vld [vmem:[#allocation2 + $0x28] sm:$0xff]
        %v581 = vld [vmem:[#allocation2 + $0x30] sm:$0xff]
        %v582 = vld [vmem:[#allocation2 + $0x40] sm:$0xff]
        %v583 = vld [vmem:[#allocation2 + $0x48] sm:$0xff]
        %v584 = vld [vmem:[#allocation2 + $0x50] sm:$0xff]
        %v585 = vld [vmem:[#allocation2 + $0x60] sm:$0xff]
        %v586 = vld [vmem:[#allocation2 + $0x68] sm:$0xff]
        %v587 = vld [vmem:[#allocation2 + $0x70] sm:$0xff]
        %v588 = vld [vmem:[#allocation2 + $0x80] sm:$0xff]
        %v589 = vld [vmem:[#allocation2 + $0x88] sm:$0xff]
        %v590 = vld [vmem:[#allocation2 + $0x90] sm:$0xff]
        %v591 = vld [vmem:[#allocation2 + $0xa0] sm:$0xff]
        %v592 = vld [vmem:[#allocation2 + $0xa8] sm:$0xff]
        %v593 = vld [vmem:[#allocation2 + $0xb0] sm:$0xff]
        %v594 = vld [vmem:[#allocation2 + $0xc0] sm:$0xff]
        %v595 = vld [vmem:[#allocation2 + $0xc8] sm:$0xff]
        %v596 = vld [vmem:[#allocation2 + $0xd0] sm:$0xff]
        %v597 = vld [vmem:[#allocation2 + $0xe0] sm:$0xff]
        %v598 = vld [vmem:[#allocation2 + $0xe8] sm:$0xff]
        %v599 = vld [vmem:[#allocation2 + $0xf0] sm:$0xff]
        %v600 = vld [vmem:[#allocation2 + $0x100] sm:$0xff]
        %v601 = vld [vmem:[#allocation2 + $0x108] sm:$0xff]
        %v602 = vld [vmem:[#allocation2 + $0x110] sm:$0xff]
        %v603 = vld [vmem:[#allocation2 + $0x120] sm:$0xff]
        %v604 = vld [vmem:[#allocation2 + $0x128] sm:$0xff]
        %v605 = vld [vmem:[#allocation2 + $0x130] sm:$0xff]
        %v606 = vld [vmem:[#allocation2 + $0x140] sm:$0xff]
        %v607 = vld [vmem:[#allocation2 + $0x148] sm:$0xff]
        %v608 = vld [vmem:[#allocation2 + $0x150] sm:$0xff]
        %v609 = vld [vmem:[#allocation2 + $0x160] sm:$0xff]
        %v610 = vld [vmem:[#allocation2 + $0x168] sm:$0xff]
        %v611 = vld [vmem:[#allocation2 + $0x170] sm:$0xff]
        %v612 = vld [vmem:[#allocation2 + $0x180] sm:$0xff]
        %v613 = vld [vmem:[#allocation2 + $0x188] sm:$0xff]
        %v614 = vld [vmem:[#allocation2 + $0x190] sm:$0xff]
        %v615 = vld [vmem:[#allocation2 + $0x1a0] sm:$0xff]
        %v616 = vld [vmem:[#allocation2 + $0x1a8] sm:$0xff]
        %v617 = vld [vmem:[#allocation2 + $0x1b0] sm:$0xff]
        %v618 = vld [vmem:[#allocation2 + $0x1c0] sm:$0xff]
        %v619 = vld [vmem:[#allocation2 + $0x1c8] sm:$0xff]
        %v620 = vld [vmem:[#allocation2 + $0x1d0] sm:$0xff]
        %v621 = vld [vmem:[#allocation2 + $0x1e0] sm:$0xff]
        %v622 = vld [vmem:[#allocation2 + $0x1e8] sm:$0xff]
        %v623 = vld [vmem:[#allocation2 + $0x1f0] sm:$0xff]
        %v624 = vld [vmem:[%s3] sm:$0xff]
        %v625 = vld [vmem:[%s3 + $0x8] sm:$0xff]
        %v626 = vld [vmem:[%s3 + $0x10] sm:$0xff]
        %v627 = vld [vmem:[%s3 + $0x18] sm:$0xff]
        %676 = vrot.lane.b32.xlu0 %v576, 15
        %v677 = vpop.permute.xlu0 %676
        %678 = vrot.lane.b32.xlu0 %v577, 15
        %v679 = vpop.permute.xlu0 %678
        %680 = vrot.lane.b32.xlu0 %v578, 15
        %v681 = vpop.permute.xlu0 %680
        %682 = vrot.lane.b32.xlu0 %v579, 15
        %v683 = vpop.permute.xlu0 %682
        %684 = vrot.lane.b32.xlu0 %v580, 15
        %v685 = vpop.permute.xlu0 %684
        %686 = vrot.lane.b32.xlu0 %v581, 15
        %v687 = vpop.permute.xlu0 %686
        %688 = vrot.lane.b32.xlu0 %v582, 15
        %v689 = vpop.permute.xlu0 %688
        %690 = vrot.lane.b32.xlu0 %v583, 15
        %v691 = vpop.permute.xlu0 %690
        %692 = vrot.lane.b32.xlu0 %v584, 15
        %v693 = vpop.permute.xlu0 %692
        %694 = vrot.lane.b32.xlu0 %v585, 15
        %v695 = vpop.permute.xlu0 %694
        %696 = vrot.lane.b32.xlu0 %v586, 15
        %v697 = vpop.permute.xlu0 %696
        %698 = vrot.lane.b32.xlu0 %v587, 15
        %v699 = vpop.permute.xlu0 %698
        %700 = vrot.lane.b32.xlu0 %v588, 15
        %v701 = vpop.permute.xlu0 %700
        %702 = vrot.lane.b32.xlu0 %v589, 15
        %v703 = vpop.permute.xlu0 %702
        %704 = vrot.lane.b32.xlu0 %v590, 15
        %v705 = vpop.permute.xlu0 %704
        %706 = vrot.lane.b32.xlu0 %v591, 15
        %v707 = vpop.permute.xlu0 %706
        %708 = vrot.lane.b32.xlu0 %v592, 15
        %v709 = vpop.permute.xlu0 %708
        %710 = vrot.lane.b32.xlu0 %v593, 15
        %v711 = vpop.permute.xlu0 %710
        %712 = vrot.lane.b32.xlu0 %v594, 15
        %v713 = vpop.permute.xlu0 %712
        %714 = vrot.lane.b32.xlu0 %v595, 15
        %v715 = vpop.permute.xlu0 %714
        %716 = vrot.lane.b32.xlu0 %v596, 15
        %v717 = vpop.permute.xlu0 %716
        %718 = vrot.lane.b32.xlu0 %v597, 15
        %v719 = vpop.permute.xlu0 %718
        %720 = vrot.lane.b32.xlu0 %v598, 15
        %v721 = vpop.permute.xlu0 %720
        %722 = vrot.lane.b32.xlu0 %v599, 15
        %v723 = vpop.permute.xlu0 %722
        %724 = vrot.lane.b32.xlu0 %v600, 15
        %v725 = vpop.permute.xlu0 %724
        %726 = vrot.lane.b32.xlu0 %v601, 15
        %v727 = vpop.permute.xlu0 %726
        %728 = vrot.lane.b32.xlu0 %v602, 15
        %v729 = vpop.permute.xlu0 %728
        %730 = vrot.lane.b32.xlu0 %v603, 15
        %v731 = vpop.permute.xlu0 %730
        %732 = vrot.lane.b32.xlu0 %v604, 15
        %v733 = vpop.permute.xlu0 %732
        %734 = vrot.lane.b32.xlu0 %v605, 15
        %v735 = vpop.permute.xlu0 %734
        %736 = vrot.lane.b32.xlu0 %v606, 15
        %v737 = vpop.permute.xlu0 %736
        %738 = vrot.lane.b32.xlu0 %v607, 15
        %v739 = vpop.permute.xlu0 %738
        %740 = vrot.lane.b32.xlu0 %v608, 15
        %v741 = vpop.permute.xlu0 %740
        %742 = vrot.lane.b32.xlu0 %v609, 15
        %v743 = vpop.permute.xlu0 %742
        %744 = vrot.lane.b32.xlu0 %v610, 15
        %v745 = vpop.permute.xlu0 %744
        %746 = vrot.lane.b32.xlu0 %v611, 15
        %v747 = vpop.permute.xlu0 %746
        %748 = vrot.lane.b32.xlu0 %v612, 15
        %v749 = vpop.permute.xlu0 %748
        %750 = vrot.lane.b32.xlu0 %v613, 15
        %v751 = vpop.permute.xlu0 %750
        %752 = vrot.lane.b32.xlu0 %v614, 15
        %v753 = vpop.permute.xlu0 %752
        %754 = vrot.lane.b32.xlu0 %v615, 15
        %v755 = vpop.permute.xlu0 %754
        %756 = vrot.lane.b32.xlu0 %v616, 15
        %v757 = vpop.permute.xlu0 %756
        %758 = vrot.lane.b32.xlu0 %v617, 15
        %v759 = vpop.permute.xlu0 %758
        %760 = vrot.lane.b32.xlu0 %v618, 15
        %v761 = vpop.permute.xlu0 %760
        %762 = vrot.lane.b32.xlu0 %v619, 15
        %v763 = vpop.permute.xlu0 %762
        %764 = vrot.lane.b32.xlu0 %v620, 15
        %v765 = vpop.permute.xlu0 %764
        %766 = vrot.lane.b32.xlu0 %v621, 15
        %v767 = vpop.permute.xlu0 %766
        %768 = vrot.lane.b32.xlu0 %v622, 15
        %v769 = vpop.permute.xlu0 %768
        %770 = vrot.lane.b32.xlu0 %v623, 15
        %v771 = vpop.permute.xlu0 %770
        %vm772 = vcmask 121856
        %v773 = vsel %vm772, %v677, %v679
        %v774 = vsel %vm772, %v679, %v681
        %v775 = vsel %vm772, %v683, %v685
        %v776 = vsel %vm772, %v685, %v687
        %v777 = vsel %vm772, %v689, %v691
        %v778 = vsel %vm772, %v691, %v693
        %v779 = vsel %vm772, %v695, %v697
        %v780 = vsel %vm772, %v697, %v699
        %v781 = vsel %vm772, %v701, %v703
        %v782 = vsel %vm772, %v703, %v705
        %v783 = vsel %vm772, %v707, %v709
        %v784 = vsel %vm772, %v709, %v711
        %v785 = vsel %vm772, %v713, %v715
        %v786 = vsel %vm772, %v715, %v717
        %v787 = vsel %vm772, %v719, %v721
        %v788 = vsel %vm772, %v721, %v723
        %v789 = vsel %vm772, %v725, %v727
        %v790 = vsel %vm772, %v727, %v729
        %v791 = vsel %vm772, %v731, %v733
        %v792 = vsel %vm772, %v733, %v735
        %v793 = vsel %vm772, %v737, %v739
        %v794 = vsel %vm772, %v739, %v741
        %v795 = vsel %vm772, %v743, %v745
        %v796 = vsel %vm772, %v745, %v747
        %v797 = vsel %vm772, %v749, %v751
        %v798 = vsel %vm772, %v751, %v753
        %v799 = vsel %vm772, %v755, %v757
        %v800 = vsel %vm772, %v757, %v759
        %v801 = vsel %vm772, %v761, %v763
        %v802 = vsel %vm772, %v763, %v765
        %v803 = vsel %vm772, %v767, %v769
        %v804 = vsel %vm772, %v769, %v771
        %837 = vmatprep.subr.mxu0 %v774
        %838 = vmatpush1.msra.mxu0 %v773
        %839 = vmatprep.subr.mxu0 %v776
        %840 = vmatpush1.msra.mxu0 %v775
        %841 = vmatprep.subr.mxu0 %v778
        %842 = vmatpush1.msra.mxu0 %v777
        %843 = vmatprep.subr.mxu0 %v780
        %844 = vmatpush1.msra.mxu0 %v779
        %845 = vmatprep.subr.mxu0 %v782
        %846 = vmatpush1.msra.mxu0 %v781
        %847 = vmatprep.subr.mxu0 %v784
        %848 = vmatpush1.msra.mxu0 %v783
        %849 = vmatprep.subr.mxu0 %v786
        %850 = vmatpush1.msra.mxu0 %v785
        %851 = vmatprep.subr.mxu0 %v788
        %852 = vmatpush1.msra.mxu0 %v787
        %853 = vmatprep.subr.mxu0 %v790
        %854 = vmatpush1.msra.mxu0 %v789
        %855 = vmatprep.subr.mxu0 %v792
        %856 = vmatpush1.msra.mxu0 %v791
        %857 = vmatprep.subr.mxu0 %v794
        %858 = vmatpush1.msra.mxu0 %v793
        %859 = vmatprep.subr.mxu0 %v796
        %860 = vmatpush1.msra.mxu0 %v795
        %861 = vmatprep.subr.mxu0 %v798
        %862 = vmatpush1.msra.mxu0 %v797
        %863 = vmatprep.subr.mxu0 %v800
        %864 = vmatpush1.msra.mxu0 %v799
        %865 = vmatprep.subr.mxu0 %v802
        %866 = vmatpush1.msra.mxu0 %v801
        %867 = vmatprep.subr.mxu0 %v804
        %868 = vmatpush1.msra.mxu0 %v803
        %869 = vmatprep.subr.mxu0 0.0
        %870 = vmatpush1.msra.mxu0 0.0
        %871 = vmatprep.subr.mxu0 0.0
        %872 = vmatpush1.msra.mxu0 0.0
        %873 = vmatprep.subr.mxu0 0.0
        %874 = vmatpush1.msra.mxu0 0.0
        %875 = vmatprep.subr.mxu0 0.0
        %876 = vmatpush1.msra.mxu0 0.0
        %877 = vmatprep.subr.mxu0 0.0
        %878 = vmatpush1.msra.mxu0 0.0
        %879 = vmatprep.subr.mxu0 0.0
        %880 = vmatpush1.msra.mxu0 0.0
        %881 = vmatprep.subr.mxu0 0.0
        %882 = vmatpush1.msra.mxu0 0.0
        %883 = vmatprep.subr.mxu0 0.0
        %884 = vmatpush1.msra.mxu0 0.0
        %885 = vmatprep.subr.mxu0 0.0
        %886 = vmatpush1.msra.mxu0 0.0
        %887 = vmatprep.subr.mxu0 0.0
        %888 = vmatpush1.msra.mxu0 0.0
        %889 = vmatprep.subr.mxu0 0.0
        %890 = vmatpush1.msra.mxu0 0.0
        %891 = vmatprep.subr.mxu0 0.0
        %892 = vmatpush1.msra.mxu0 0.0
        %893 = vmatprep.subr.mxu0 0.0
        %894 = vmatpush1.msra.mxu0 0.0
        %895 = vmatprep.subr.mxu0 0.0
        %896 = vmatpush1.msra.mxu0 0.0
        %897 = vmatprep.subr.mxu0 0.0
        %898 = vmatpush1.msra.mxu0 0.0
        %899 = vmatprep.subr.mxu0 0.0
        %900 = vmatpush1.msra.mxu0 0.0
        %901 = vmatprep.mubr.f32.mxu0 0.0
        %902 = vmatmul.mubr.f32.gmra.mrb[0].mxu0 %v624
        %v903 = vpop.f32.mrb[0].mxu0
        %v904 = vadd.f32 0.0, %v903
        %v905 = vpop.f32.mrb[0].mxu0
        %v906 = vadd.f32 0.0, %v905
        %907 = vmatprep.mubr.f32.mxu0 0.0
        %908 = vmatmul.mubr.f32.gmra.mrb[0].mxu0 %v625
        %v909 = vpop.f32.mrb[0].mxu0
        %v910 = vadd.f32 0.0, %v909
        %v911 = vpop.f32.mrb[0].mxu0
        %v912 = vadd.f32 0.0, %v911
        %913 = vmatprep.mubr.f32.mxu0 0.0
        %914 = vmatmul.mubr.f32.gmra.mrb[0].mxu0 %v626
        %v915 = vpop.f32.mrb[0].mxu0
        %v916 = vadd.f32 0.0, %v915
        %v917 = vpop.f32.mrb[0].mxu0
        %v918 = vadd.f32 0.0, %v917
        %919 = vmatprep.mubr.f32.mxu0 0.0
        %920 = vmatmul.mubr.f32.gmra.mrb[0].mxu0 %v627
        %v921 = vpop.f32.mrb[0].mxu0
        %v922 = vadd.f32 0.0, %v921
        %v923 = vpop.f32.mrb[0].mxu0
        %v924 = vadd.f32 0.0, %v923
        %925 = vdwg.mxu0
        %v926 = vld [vmem:[%s4] ss:$8 sm:$0x3]
        %vm927 = vcmp.gt.f32.partialorder %v926, 0.0
        %v928 = vsel %vm927, 1, 0
        %v929 = vlaneseq
        %v930 = vshrl.u32 %v929, 7
        %v931 = vsub.s32 0, %v930
        %v932 = vrot.slane %v928, %v931
        %v933 = vlaneseq
        %v934 = vshrl.u32 %v933, 7
        %v935 = vsub.s32 1, %v934
        %v936 = vrot.slane %v928, %v935
        %vm937 = vcmp.eq.s32.totalorder %v932, 1
        %vm938 = vcmp.eq.s32.totalorder %v936, 1
        %v939 = vsel %vm937, %v904, 0.0
        %v940 = vsel %vm938, %v906, 0.0
        %v941 = vsel %vm937, %v910, 0.0
        %v942 = vsel %vm938, %v912, 0.0
        %v943 = vsel %vm937, %v916, 0.0
        %v944 = vsel %vm938, %v918, 0.0
        %v945 = vsel %vm937, %v922, 0.0
        %v946 = vsel %vm938, %v924, 0.0
        %v947 = vadd.f32 %v939, 0.0
        %v948 = vadd.f32 %v940, 0.0
        %v949 = vadd.f32 %v941, 0.0
        %v950 = vadd.f32 %v942, 0.0
        %v951 = vadd.f32 %v943, 0.0
        %v952 = vadd.f32 %v944, 0.0
        %v953 = vadd.f32 %v945, 0.0
        %v954 = vadd.f32 %v946, 0.0
        %s955 = scalar_lea.vmem %s3, 32
        %v956 = vld [vmem:[%s955] sm:$0xff]
        %v957 = vld [vmem:[%s955 + $0x8] sm:$0xff]
        %v958 = vld [vmem:[%s955 + $0x10] sm:$0xff]
        %v959 = vld [vmem:[%s955 + $0x18] sm:$0xff]
        %960 = vrot.lane.b32.xlu0 %v576, 14
        %v961 = vpop.permute.xlu0 %960
        %962 = vrot.lane.b32.xlu0 %v577, 14
        %v963 = vpop.permute.xlu0 %962
        %964 = vrot.lane.b32.xlu0 %v578, 14
        %v965 = vpop.permute.xlu0 %964
        %966 = vrot.lane.b32.xlu0 %v579, 14
        %v967 = vpop.permute.xlu0 %966
        %968 = vrot.lane.b32.xlu0 %v580, 14
        %v969 = vpop.permute.xlu0 %968
        %970 = vrot.lane.b32.xlu0 %v581, 14
        %v971 = vpop.permute.xlu0 %970
        %972 = vrot.lane.b32.xlu0 %v582, 14
        %v973 = vpop.permute.xlu0 %972
        %974 = vrot.lane.b32.xlu0 %v583, 14
        %v975 = vpop.permute.xlu0 %974
        %976 = vrot.lane.b32.xlu0 %v584, 14
        %v977 = vpop.permute.xlu0 %976
        %978 = vrot.lane.b32.xlu0 %v585, 14
        %v979 = vpop.permute.xlu0 %978
        %980 = vrot.lane.b32.xlu0 %v586, 14
        %v981 = vpop.permute.xlu0 %980
        %982 = vrot.lane.b32.xlu0 %v587, 14
        %v983 = vpop.permute.xlu0 %982
        %984 = vrot.lane.b32.xlu0 %v588, 14
        %v985 = vpop.permute.xlu0 %984
        %986 = vrot.lane.b32.xlu0 %v589, 14
        %v987 = vpop.permute.xlu0 %986
        %988 = vrot.lane.b32.xlu0 %v590, 14
        %v989 = vpop.permute.xlu0 %988
        %990 = vrot.lane.b32.xlu0 %v591, 14
        %v991 = vpop.permute.xlu0 %990
        %992 = vrot.lane.b32.xlu0 %v592, 14
        %v993 = vpop.permute.xlu0 %992
        %994 = vrot.lane.b32.xlu0 %v593, 14
        %v995 = vpop.permute.xlu0 %994
        %996 = vrot.lane.b32.xlu0 %v594, 14
        %v997 = vpop.permute.xlu0 %996
        %998 = vrot.lane.b32.xlu0 %v595, 14
        %v999 = vpop.permute.xlu0 %998
        %1000 = vrot.lane.b32.xlu0 %v596, 14
        %v1001 = vpop.permute.xlu0 %1000
        %1002 = vrot.lane.b32.xlu0 %v597, 14
        %v1003 = vpop.permute.xlu0 %1002
        %1004 = vrot.lane.b32.xlu0 %v598, 14
        %v1005 = vpop.permute.xlu0 %1004
        %1006 = vrot.lane.b32.xlu0 %v599, 14
        %v1007 = vpop.permute.xlu0 %1006
        %1008 = vrot.lane.b32.xlu0 %v600, 14
        %v1009 = vpop.permute.xlu0 %1008
        %1010 = vrot.lane.b32.xlu0 %v601, 14
        %v1011 = vpop.permute.xlu0 %1010
        %1012 = vrot.lane.b32.xlu0 %v602, 14
        %v1013 = vpop.permute.xlu0 %1012
        %1014 = vrot.lane.b32.xlu0 %v603, 14
        %v1015 = vpop.permute.xlu0 %1014
        %1016 = vrot.lane.b32.xlu0 %v604, 14
        %v1017 = vpop.permute.xlu0 %1016
        %1018 = vrot.lane.b32.xlu0 %v605, 14
        %v1019 = vpop.permute.xlu0 %1018
        %1020 = vrot.lane.b32.xlu0 %v606, 14
        %v1021 = vpop.permute.xlu0 %1020
        %1022 = vrot.lane.b32.xlu0 %v607, 14
        %v1023 = vpop.permute.xlu0 %1022
        %1024 = vrot.lane.b32.xlu0 %v608, 14
        %v1025 = vpop.permute.xlu0 %1024
        %1026 = vrot.lane.b32.xlu0 %v609, 14
        %v1027 = vpop.permute.xlu0 %1026
        %1028 = vrot.lane.b32.xlu0 %v610, 14
        %v1029 = vpop.permute.xlu0 %1028
        %1030 = vrot.lane.b32.xlu0 %v611, 14
        %v1031 = vpop.permute.xlu0 %1030
        %1032 = vrot.lane.b32.xlu0 %v612, 14
        %v1033 = vpop.permute.xlu0 %1032
        %1034 = vrot.lane.b32.xlu0 %v613, 14
        %v1035 = vpop.permute.xlu0 %1034
        %1036 = vrot.lane.b32.xlu0 %v614, 14
        %v1037 = vpop.permute.xlu0 %1036
        %1038 = vrot.lane.b32.xlu0 %v615, 14
        %v1039 = vpop.permute.xlu0 %1038
        %1040 = vrot.lane.b32.xlu0 %v616, 14
        %v1041 = vpop.permute.xlu0 %1040
        %1042 = vrot.lane.b32.xlu0 %v617, 14
        %v1043 = vpop.permute.xlu0 %1042
        %1044 = vrot.lane.b32.xlu0 %v618, 14
        %v1045 = vpop.permute.xlu0 %1044
        %1046 = vrot.lane.b32.xlu0 %v619, 14
        %v1047 = vpop.permute.xlu0 %1046
        %1048 = vrot.lane.b32.xlu0 %v620, 14
        %v1049 = vpop.permute.xlu0 %1048
        %1050 = vrot.lane.b32.xlu0 %v621, 14
        %v1051 = vpop.permute.xlu0 %1050
        %1052 = vrot.lane.b32.xlu0 %v622, 14
        %v1053 = vpop.permute.xlu0 %1052
        %1054 = vrot.lane.b32.xlu0 %v623, 14
        %v1055 = vpop.permute.xlu0 %1054
        %vm1056 = vcmask 113664
        %v1057 = vsel %vm1056, %v961, %v963
        %v1058 = vsel %vm1056, %v963, %v965
        %v1059 = vsel %vm1056, %v967, %v969
        %v1060 = vsel %vm1056, %v969, %v971
        %v1061 = vsel %vm1056, %v973, %v975
        %v1062 = vsel %vm1056, %v975, %v977
        %v1063 = vsel %vm1056, %v979, %v981
        %v1064 = vsel %vm1056, %v981, %v983
        %v1065 = vsel %vm1056, %v985, %v987
        %v1066 = vsel %vm1056, %v987, %v989
        %v1067 = vsel %vm1056, %v991, %v993
        %v1068 = vsel %vm1056, %v993, %v995
        %v1069 = vsel %vm1056, %v997, %v999
        %v1070 = vsel %vm1056, %v999, %v1001
        %v1071 = vsel %vm1056, %v1003, %v1005
        %v1072 = vsel %vm1056, %v1005, %v1007
        %v1073 = vsel %vm1056, %v1009, %v1011
        %v1074 = vsel %vm1056, %v1011, %v1013
        %v1075 = vsel %vm1056, %v1015, %v1017
        %v1076 = vsel %vm1056, %v1017, %v1019
        %v1077 = vsel %vm1056, %v1021, %v1023
        %v1078 = vsel %vm1056, %v1023, %v1025
        %v1079 = vsel %vm1056, %v1027, %v1029
        %v1080 = vsel %vm1056, %v1029, %v1031
        %v1081 = vsel %vm1056, %v1033, %v1035
        %v1082 = vsel %vm1056, %v1035, %v1037
        %v1083 = vsel %vm1056, %v1039, %v1041
        %v1084 = vsel %vm1056, %v1041, %v1043
        %v1085 = vsel %vm1056, %v1045, %v1047
        %v1086 = vsel %vm1056, %v1047, %v1049
        %v1087 = vsel %vm1056, %v1051, %v1053
        %v1088 = vsel %vm1056, %v1053, %v1055
        %1121 = vmatprep.subr.mxu0 %v1058
        %1122 = vmatpush1.msra.mxu0 %v1057
        %1123 = vmatprep.subr.mxu0 %v1060
        %1124 = vmatpush1.msra.mxu0 %v1059
        %1125 = vmatprep.subr.mxu0 %v1062
        %1126 = vmatpush1.msra.mxu0 %v1061
        %1127 = vmatprep.subr.mxu0 %v1064
        %1128 = vmatpush1.msra.mxu0 %v1063
        %1129 = vmatprep.subr.mxu0 %v1066
        %1130 = vmatpush1.msra.mxu0 %v1065
        %1131 = vmatprep.subr.mxu0 %v1068
        %1132 = vmatpush1.msra.mxu0 %v1067
        %1133 = vmatprep.subr.mxu0 %v1070
        %1134 = vmatpush1.msra.mxu0 %v1069
        %1135 = vmatprep.subr.mxu0 %v1072
        %1136 = vmatpush1.msra.mxu0 %v1071
        %1137 = vmatprep.subr.mxu0 %v1074
        %1138 = vmatpush1.msra.mxu0 %v1073
        %1139 = vmatprep.subr.mxu0 %v1076
        %1140 = vmatpush1.msra.mxu0 %v1075
        %1141 = vmatprep.subr.mxu0 %v1078
        %1142 = vmatpush1.msra.mxu0 %v1077
        %1143 = vmatprep.subr.mxu0 %v1080
        %1144 = vmatpush1.msra.mxu0 %v1079
        %1145 = vmatprep.subr.mxu0 %v1082
        %1146 = vmatpush1.msra.mxu0 %v1081
        %1147 = vmatprep.subr.mxu0 %v1084
        %1148 = vmatpush1.msra.mxu0 %v1083
        %1149 = vmatprep.subr.mxu0 %v1086
        %1150 = vmatpush1.msra.mxu0 %v1085
        %1151 = vmatprep.subr.mxu0 %v1088
        %1152 = vmatpush1.msra.mxu0 %v1087
        %1153 = vmatprep.subr.mxu0 0.0
        %1154 = vmatpush1.msra.mxu0 0.0
        %1155 = vmatprep.subr.mxu0 0.0
        %1156 = vmatpush1.msra.mxu0 0.0
        %1157 = vmatprep.subr.mxu0 0.0
        %1158 = vmatpush1.msra.mxu0 0.0
        %1159 = vmatprep.subr.mxu0 0.0
        %1160 = vmatpush1.msra.mxu0 0.0
        %1161 = vmatprep.subr.mxu0 0.0
        %1162 = vmatpush1.msra.mxu0 0.0
        %1163 = vmatprep.subr.mxu0 0.0
        %1164 = vmatpush1.msra.mxu0 0.0
        %1165 = vmatprep.subr.mxu0 0.0
        %1166 = vmatpush1.msra.mxu0 0.0
        %1167 = vmatprep.subr.mxu0 0.0
        %1168 = vmatpush1.msra.mxu0 0.0
        %1169 = vmatprep.subr.mxu0 0.0
        %1170 = vmatpush1.msra.mxu0 0.0
        %1171 = vmatprep.subr.mxu0 0.0
        %1172 = vmatpush1.msra.mxu0 0.0
        %1173 = vmatprep.subr.mxu0 0.0
        %1174 = vmatpush1.msra.mxu0 0.0
        %1175 = vmatprep.subr.mxu0 0.0
        %1176 = vmatpush1.msra.mxu0 0.0
        %1177 = vmatprep.subr.mxu0 0.0
        %1178 = vmatpush1.msra.mxu0 0.0
        %1179 = vmatprep.subr.mxu0 0.0
        %1180 = vmatpush1.msra.mxu0 0.0
        %1181 = vmatprep.subr.mxu0 0.0
        %1182 = vmatpush1.msra.mxu0 0.0
        %1183 = vmatprep.subr.mxu0 0.0
        %1184 = vmatpush1.msra.mxu0 0.0
        %1185 = vmatprep.mubr.f32.mxu0 0.0
        %1186 = vmatmul.mubr.f32.gmra.mrb[0].mxu0 %v956
        %v1187 = vpop.f32.mrb[0].mxu0
        %v1188 = vadd.f32 0.0, %v1187
        %v1189 = vpop.f32.mrb[0].mxu0
        %v1190 = vadd.f32 0.0, %v1189
        %1191 = vmatprep.mubr.f32.mxu0 0.0
        %1192 = vmatmul.mubr.f32.gmra.mrb[0].mxu0 %v957
        %v1193 = vpop.f32.mrb[0].mxu0
        %v1194 = vadd.f32 0.0, %v1193
        %v1195 = vpop.f32.mrb[0].mxu0
        %v1196 = vadd.f32 0.0, %v1195
        %1197 = vmatprep.mubr.f32.mxu0 0.0
        %1198 = vmatmul.mubr.f32.gmra.mrb[0].mxu0 %v958
        %v1199 = vpop.f32.mrb[0].mxu0
        %v1200 = vadd.f32 0.0, %v1199
        %v1201 = vpop.f32.mrb[0].mxu0
        %v1202 = vadd.f32 0.0, %v1201
        %1203 = vmatprep.mubr.f32.mxu0 0.0
        %1204 = vmatmul.mubr.f32.gmra.mrb[0].mxu0 %v959
        %v1205 = vpop.f32.mrb[0].mxu0
        %v1206 = vadd.f32 0.0, %v1205
        %v1207 = vpop.f32.mrb[0].mxu0
        %v1208 = vadd.f32 0.0, %v1207
        %1209 = vdwg.mxu0
        %s1210 = scalar_lea.vmem %s4, 1
        %v1211 = vld [vmem:[%s1210] ss:$8 sm:$0x3]
        %vm1212 = vcmp.gt.f32.partialorder %v1211, 0.0
        %v1213 = vsel %vm1212, 1, 0
        %v1214 = vlaneseq
        %v1215 = vshrl.u32 %v1214, 7
        %v1216 = vsub.s32 0, %v1215
        %v1217 = vrot.slane %v1213, %v1216
        %v1218 = vlaneseq
        %v1219 = vshrl.u32 %v1218, 7
        %v1220 = vsub.s32 1, %v1219
        %v1221 = vrot.slane %v1213, %v1220
        %vm1222 = vcmp.eq.s32.totalorder %v1217, 1
        %vm1223 = vcmp.eq.s32.totalorder %v1221, 1
        %v1224 = vsel %vm1222, %v1188, 0.0
        %v1225 = vsel %vm1223, %v1190, 0.0
        %v1226 = vsel %vm1222, %v1194, 0.0
        %v1227 = vsel %vm1223, %v1196, 0.0
        %v1228 = vsel %vm1222, %v1200, 0.0
        %v1229 = vsel %vm1223, %v1202, 0.0
        %v1230 = vsel %vm1222, %v1206, 0.0
        %v1231 = vsel %vm1223, %v1208, 0.0
        %v1232 = vadd.f32 %v947, %v1224
        %v1233 = vadd.f32 %v948, %v1225
        %v1234 = vadd.f32 %v949, %v1226
        %v1235 = vadd.f32 %v950, %v1227
        %v1236 = vadd.f32 %v951, %v1228
        %v1237 = vadd.f32 %v952, %v1229
        %v1238 = vadd.f32 %v953, %v1230
        %v1239 = vadd.f32 %v954, %v1231
        %s1240 = scalar_lea.vmem %s3, 64
        %v1241 = vld [vmem:[%s1240] sm:$0xff]
        %v1242 = vld [vmem:[%s1240 + $0x8] sm:$0xff]
        %v1243 = vld [vmem:[%s1240 + $0x10] sm:$0xff]
        %v1244 = vld [vmem:[%s1240 + $0x18] sm:$0xff]
        %1245 = vrot.lane.b32.xlu0 %v576, 13
        %v1246 = vpop.permute.xlu0 %1245
        %1247 = vrot.lane.b32.xlu0 %v577, 13
        %v1248 = vpop.permute.xlu0 %1247
        %1249 = vrot.lane.b32.xlu0 %v578, 13
        %v1250 = vpop.permute.xlu0 %1249
        %1251 = vrot.lane.b32.xlu0 %v579, 13
        %v1252 = vpop.permute.xlu0 %1251
        %1253 = vrot.lane.b32.xlu0 %v580, 13
        %v1254 = vpop.permute.xlu0 %1253
        %1255 = vrot.lane.b32.xlu0 %v581, 13
        %v1256 = vpop.permute.xlu0 %1255
        %1257 = vrot.lane.b32.xlu0 %v582, 13
        %v1258 = vpop.permute.xlu0 %1257
        %1259 = vrot.lane.b32.xlu0 %v583, 13
        %v1260 = vpop.permute.xlu0 %1259
        %1261 = vrot.lane.b32.xlu0 %v584, 13
        %v1262 = vpop.permute.xlu0 %1261
        %1263 = vrot.lane.b32.xlu0 %v585, 13
        %v1264 = vpop.permute.xlu0 %1263
        %1265 = vrot.lane.b32.xlu0 %v586, 13
        %v1266 = vpop.permute.xlu0 %1265
        %1267 = vrot.lane.b32.xlu0 %v587, 13
        %v1268 = vpop.permute.xlu0 %1267
        %1269 = vrot.lane.b32.xlu0 %v588, 13
        %v1270 = vpop.permute.xlu0 %1269
        %1271 = vrot.lane.b32.xlu0 %v589, 13
        %v1272 = vpop.permute.xlu0 %1271
        %1273 = vrot.lane.b32.xlu0 %v590, 13
        %v1274 = vpop.permute.xlu0 %1273
        %1275 = vrot.lane.b32.xlu0 %v591, 13
        %v1276 = vpop.permute.xlu0 %1275
        %1277 = vrot.lane.b32.xlu0 %v592, 13
        %v1278 = vpop.permute.xlu0 %1277
        %1279 = vrot.lane.b32.xlu0 %v593, 13
        %v1280 = vpop.permute.xlu0 %1279
        %1281 = vrot.lane.b32.xlu0 %v594, 13
        %v1282 = vpop.permute.xlu0 %1281
        %1283 = vrot.lane.b32.xlu0 %v595, 13
        %v1284 = vpop.permute.xlu0 %1283
        %1285 = vrot.lane.b32.xlu0 %v596, 13
        %v1286 = vpop.permute.xlu0 %1285
        %1287 = vrot.lane.b32.xlu0 %v597, 13
        %v1288 = vpop.permute.xlu0 %1287
        %1289 = vrot.lane.b32.xlu0 %v598, 13
        %v1290 = vpop.permute.xlu0 %1289
        %1291 = vrot.lane.b32.xlu0 %v599, 13
        %v1292 = vpop.permute.xlu0 %1291
        %1293 = vrot.lane.b32.xlu0 %v600, 13
        %v1294 = vpop.permute.xlu0 %1293
        %1295 = vrot.lane.b32.xlu0 %v601, 13
        %v1296 = vpop.permute.xlu0 %1295
        %1297 = vrot.lane.b32.xlu0 %v602, 13
        %v1298 = vpop.permute.xlu0 %1297
        %1299 = vrot.lane.b32.xlu0 %v603, 13
        %v1300 = vpop.permute.xlu0 %1299
        %1301 = vrot.lane.b32.xlu0 %v604, 13
        %v1302 = vpop.permute.xlu0 %1301
        %1303 = vrot.lane.b32.xlu0 %v605, 13
        %v1304 = vpop.permute.xlu0 %1303
        %1305 = vrot.lane.b32.xlu0 %v606, 13
        %v1306 = vpop.permute.xlu0 %1305
        %1307 = vrot.lane.b32.xlu0 %v607, 13
        %v1308 = vpop.permute.xlu0 %1307
        %1309 = vrot.lane.b32.xlu0 %v608, 13
        %v1310 = vpop.permute.xlu0 %1309
        %1311 = vrot.lane.b32.xlu0 %v609, 13
        %v1312 = vpop.permute.xlu0 %1311
        %1313 = vrot.lane.b32.xlu0 %v610, 13
        %v1314 = vpop.permute.xlu0 %1313
        %1315 = vrot.lane.b32.xlu0 %v611, 13
        %v1316 = vpop.permute.xlu0 %1315
        %1317 = vrot.lane.b32.xlu0 %v612, 13
        %v1318 = vpop.permute.xlu0 %1317
        %1319 = vrot.lane.b32.xlu0 %v613, 13
        %v1320 = vpop.permute.xlu0 %1319
        %1321 = vrot.lane.b32.xlu0 %v614, 13
        %v1322 = vpop.permute.xlu0 %1321
        %1323 = vrot.lane.b32.xlu0 %v615, 13
        %v1324 = vpop.permute.xlu0 %1323
        %1325 = vrot.lane.b32.xlu0 %v616, 13
        %v1326 = vpop.permute.xlu0 %1325
        %1327 = vrot.lane.b32.xlu0 %v617, 13
        %v1328 = vpop.permute.xlu0 %1327
        %1329 = vrot.lane.b32.xlu0 %v618, 13
        %v1330 = vpop.permute.xlu0 %1329
        %1331 = vrot.lane.b32.xlu0 %v619, 13
        %v1332 = vpop.permute.xlu0 %1331
        %1333 = vrot.lane.b32.xlu0 %v620, 13
        %v1334 = vpop.permute.xlu0 %1333
        %1335 = vrot.lane.b32.xlu0 %v621, 13
        %v1336 = vpop.permute.xlu0 %1335
        %1337 = vrot.lane.b32.xlu0 %v622, 13
        %v1338 = vpop.permute.xlu0 %1337
        %1339 = vrot.lane.b32.xlu0 %v623, 13
        %v1340 = vpop.permute.xlu0 %1339
        %vm1341 = vcmask 105472
        %v1342 = vsel %vm1341, %v1246, %v1248
        %v1343 = vsel %vm1341, %v1248, %v1250
        %v1344 = vsel %vm1341, %v1252, %v1254
        %v1345 = vsel %vm1341, %v1254, %v1256
        %v1346 = vsel %vm1341, %v1258, %v1260
        %v1347 = vsel %vm1341, %v1260, %v1262
        %v1348 = vsel %vm1341, %v1264, %v1266
        %v1349 = vsel %vm1341, %v1266, %v1268
        %v1350 = vsel %vm1341, %v1270, %v1272
        %v1351 = vsel %vm1341, %v1272, %v1274
        %v1352 = vsel %vm1341, %v1276, %v1278
        %v1353 = vsel %vm1341, %v1278, %v1280
        %v1354 = vsel %vm1341, %v1282, %v1284
        %v1355 = vsel %vm1341, %v1284, %v1286
        %v1356 = vsel %vm1341, %v1288, %v1290
        %v1357 = vsel %vm1341, %v1290, %v1292
        %v1358 = vsel %vm1341, %v1294, %v1296
        %v1359 = vsel %vm1341, %v1296, %v1298
        %v1360 = vsel %vm1341, %v1300, %v1302
        %v1361 = vsel %vm1341, %v1302, %v1304
        %v1362 = vsel %vm1341, %v1306, %v1308
        %v1363 = vsel %vm1341, %v1308, %v1310
        %v1364 = vsel %vm1341, %v1312, %v1314
        %v1365 = vsel %vm1341, %v1314, %v1316
        %v1366 = vsel %vm1341, %v1318, %v1320
        %v1367 = vsel %vm1341, %v1320, %v1322
        %v1368 = vsel %vm1341, %v1324, %v1326
        %v1369 = vsel %vm1341, %v1326, %v1328
        %v1370 = vsel %vm1341, %v1330, %v1332
        %v1371 = vsel %vm1341, %v1332, %v1334
        %v1372 = vsel %vm1341, %v1336, %v1338
        %v1373 = vsel %vm1341, %v1338, %v1340
        %1406 = vmatprep.subr.mxu0 %v1343
        %1407 = vmatpush1.msra.mxu0 %v1342
        %1408 = vmatprep.subr.mxu0 %v1345
        %1409 = vmatpush1.msra.mxu0 %v1344
        %1410 = vmatprep.subr.mxu0 %v1347
        %1411 = vmatpush1.msra.mxu0 %v1346
        %1412 = vmatprep.subr.mxu0 %v1349
        %1413 = vmatpush1.msra.mxu0 %v1348
        %1414 = vmatprep.subr.mxu0 %v1351
        %1415 = vmatpush1.msra.mxu0 %v1350
        %1416 = vmatprep.subr.mxu0 %v1353
        %1417 = vmatpush1.msra.mxu0 %v1352
        %1418 = vmatprep.subr.mxu0 %v1355
        %1419 = vmatpush1.msra.mxu0 %v1354
        %1420 = vmatprep.subr.mxu0 %v1357
        %1421 = vmatpush1.msra.mxu0 %v1356
        %1422 = vmatprep.subr.mxu0 %v1359
        %1423 = vmatpush1.msra.mxu0 %v1358
        %1424 = vmatprep.subr.mxu0 %v1361
        %1425 = vmatpush1.msra.mxu0 %v1360
        %1426 = vmatprep.subr.mxu0 %v1363
        %1427 = vmatpush1.msra.mxu0 %v1362
        %1428 = vmatprep.subr.mxu0 %v1365
        %1429 = vmatpush1.msra.mxu0 %v1364
        %1430 = vmatprep.subr.mxu0 %v1367
        %1431 = vmatpush1.msra.mxu0 %v1366
        %1432 = vmatprep.subr.mxu0 %v1369
        %1433 = vmatpush1.msra.mxu0 %v1368
        %1434 = vmatprep.subr.mxu0 %v1371
        %1435 = vmatpush1.msra.mxu0 %v1370
        %1436 = vmatprep.subr.mxu0 %v1373
        %1437 = vmatpush1.msra.mxu0 %v1372
        %1438 = vmatprep.subr.mxu0 0.0
        %1439 = vmatpush1.msra.mxu0 0.0
        %1440 = vmatprep.subr.mxu0 0.0
        %1441 = vmatpush1.msra.mxu0 0.0
        %1442 = vmatprep.subr.mxu0 0.0
        %1443 = vmatpush1.msra.mxu0 0.0
        %1444 = vmatprep.subr.mxu0 0.0
        %1445 = vmatpush1.msra.mxu0 0.0
        %1446 = vmatprep.subr.mxu0 0.0
        %1447 = vmatpush1.msra.mxu0 0.0
        %1448 = vmatprep.subr.mxu0 0.0
        %1449 = vmatpush1.msra.mxu0 0.0
        %1450 = vmatprep.subr.mxu0 0.0
        %1451 = vmatpush1.msra.mxu0 0.0
        %1452 = vmatprep.subr.mxu0 0.0
        %1453 = vmatpush1.msra.mxu0 0.0
        %1454 = vmatprep.subr.mxu0 0.0
        %1455 = vmatpush1.msra.mxu0 0.0
        %1456 = vmatprep.subr.mxu0 0.0
        %1457 = vmatpush1.msra.mxu0 0.0
        %1458 = vmatprep.subr.mxu0 0.0
        %1459 = vmatpush1.msra.mxu0 0.0
        %1460 = vmatprep.subr.mxu0 0.0
        %1461 = vmatpush1.msra.mxu0 0.0
        %1462 = vmatprep.subr.mxu0 0.0
        %1463 = vmatpush1.msra.mxu0 0.0
        %1464 = vmatprep.subr.mxu0 0.0
        %1465 = vmatpush1.msra.mxu0 0.0
        %1466 = vmatprep.subr.mxu0 0.0
        %1467 = vmatpush1.msra.mxu0 0.0
        %1468 = vmatprep.subr.mxu0 0.0
        %1469 = vmatpush1.msra.mxu0 0.0
        %1470 = vmatprep.mubr.f32.mxu0 0.0
        %1471 = vmatmul.mubr.f32.gmra.mrb[0].mxu0 %v1241
        %v1472 = vpop.f32.mrb[0].mxu0
        %v1473 = vadd.f32 0.0, %v1472
        %v1474 = vpop.f32.mrb[0].mxu0
        %v1475 = vadd.f32 0.0, %v1474
        %1476 = vmatprep.mubr.f32.mxu0 0.0
        %1477 = vmatmul.mubr.f32.gmra.mrb[0].mxu0 %v1242
        %v1478 = vpop.f32.mrb[0].mxu0
        %v1479 = vadd.f32 0.0, %v1478
        %v1480 = vpop.f32.mrb[0].mxu0
        %v1481 = vadd.f32 0.0, %v1480
        %1482 = vmatprep.mubr.f32.mxu0 0.0
        %1483 = vmatmul.mubr.f32.gmra.mrb[0].mxu0 %v1243
        %v1484 = vpop.f32.mrb[0].mxu0
        %v1485 = vadd.f32 0.0, %v1484
        %v1486 = vpop.f32.mrb[0].mxu0
        %v1487 = vadd.f32 0.0, %v1486
        %1488 = vmatprep.mubr.f32.mxu0 0.0
        %1489 = vmatmul.mubr.f32.gmra.mrb[0].mxu0 %v1244
        %v1490 = vpop.f32.mrb[0].mxu0
        %v1491 = vadd.f32 0.0, %v1490
        %v1492 = vpop.f32.mrb[0].mxu0
        %v1493 = vadd.f32 0.0, %v1492
        %1494 = vdwg.mxu0
        %s1495 = scalar_lea.vmem %s4, 2
        %v1496 = vld [vmem:[%s1495] ss:$8 sm:$0x3]
        %vm1497 = vcmp.gt.f32.partialorder %v1496, 0.0
        %v1498 = vsel %vm1497, 1, 0
        %v1499 = vlaneseq
        %v1500 = vshrl.u32 %v1499, 7
        %v1501 = vsub.s32 0, %v1500
        %v1502 = vrot.slane %v1498, %v1501
        %v1503 = vlaneseq
        %v1504 = vshrl.u32 %v1503, 7
        %v1505 = vsub.s32 1, %v1504
        %v1506 = vrot.slane %v1498, %v1505
        %vm1507 = vcmp.eq.s32.totalorder %v1502, 1
        %vm1508 = vcmp.eq.s32.totalorder %v1506, 1
        %v1509 = vsel %vm1507, %v1473, 0.0
        %v1510 = vsel %vm1508, %v1475, 0.0
        %v1511 = vsel %vm1507, %v1479, 0.0
        %v1512 = vsel %vm1508, %v1481, 0.0
        %v1513 = vsel %vm1507, %v1485, 0.0
        %v1514 = vsel %vm1508, %v1487, 0.0
        %v1515 = vsel %vm1507, %v1491, 0.0
        %v1516 = vsel %vm1508, %v1493, 0.0
        %v1517 = vadd.f32 %v1232, %v1509
        %v1518 = vadd.f32 %v1233, %v1510
        %v1519 = vadd.f32 %v1234, %v1511
        %v1520 = vadd.f32 %v1235, %v1512
        %v1521 = vadd.f32 %v1236, %v1513
        %v1522 = vadd.f32 %v1237, %v1514
        %v1523 = vadd.f32 %v1238, %v1515
        %v1524 = vadd.f32 %v1239, %v1516
        %s1525 = scalar_lea.vmem %s3, 96
        %v1526 = vld [vmem:[%s1525] sm:$0xff]
        %v1527 = vld [vmem:[%s1525 + $0x8] sm:$0xff]
        %v1528 = vld [vmem:[%s1525 + $0x10] sm:$0xff]
        %v1529 = vld [vmem:[%s1525 + $0x18] sm:$0xff]
        %1530 = vrot.lane.b32.xlu0 %v576, 1
        %v1531 = vpop.permute.xlu0 %1530
        %1532 = vrot.lane.b32.xlu0 %v577, 1
        %v1533 = vpop.permute.xlu0 %1532
        %1534 = vrot.lane.b32.xlu0 %v578, 1
        %v1535 = vpop.permute.xlu0 %1534
        %1536 = vrot.lane.b32.xlu0 %v579, 1
        %v1537 = vpop.permute.xlu0 %1536
        %1538 = vrot.lane.b32.xlu0 %v580, 1
        %v1539 = vpop.permute.xlu0 %1538
        %1540 = vrot.lane.b32.xlu0 %v581, 1
        %v1541 = vpop.permute.xlu0 %1540
        %1542 = vrot.lane.b32.xlu0 %v582, 1
        %v1543 = vpop.permute.xlu0 %1542
        %1544 = vrot.lane.b32.xlu0 %v583, 1
        %v1545 = vpop.permute.xlu0 %1544
        %1546 = vrot.lane.b32.xlu0 %v584, 1
        %v1547 = vpop.permute.xlu0 %1546
        %1548 = vrot.lane.b32.xlu0 %v585, 1
        %v1549 = vpop.permute.xlu0 %1548
        %1550 = vrot.lane.b32.xlu0 %v586, 1
        %v1551 = vpop.permute.xlu0 %1550
        %1552 = vrot.lane.b32.xlu0 %v587, 1
        %v1553 = vpop.permute.xlu0 %1552
        %1554 = vrot.lane.b32.xlu0 %v588, 1
        %v1555 = vpop.permute.xlu0 %1554
        %1556 = vrot.lane.b32.xlu0 %v589, 1
        %v1557 = vpop.permute.xlu0 %1556
        %1558 = vrot.lane.b32.xlu0 %v590, 1
        %v1559 = vpop.permute.xlu0 %1558
        %1560 = vrot.lane.b32.xlu0 %v591, 1
        %v1561 = vpop.permute.xlu0 %1560
        %1562 = vrot.lane.b32.xlu0 %v592, 1
        %v1563 = vpop.permute.xlu0 %1562
        %1564 = vrot.lane.b32.xlu0 %v593, 1
        %v1565 = vpop.permute.xlu0 %1564
        %1566 = vrot.lane.b32.xlu0 %v594, 1
        %v1567 = vpop.permute.xlu0 %1566
        %1568 = vrot.lane.b32.xlu0 %v595, 1
        %v1569 = vpop.permute.xlu0 %1568
        %1570 = vrot.lane.b32.xlu0 %v596, 1
        %v1571 = vpop.permute.xlu0 %1570
        %1572 = vrot.lane.b32.xlu0 %v597, 1
        %v1573 = vpop.permute.xlu0 %1572
        %1574 = vrot.lane.b32.xlu0 %v598, 1
        %v1575 = vpop.permute.xlu0 %1574
        %1576 = vrot.lane.b32.xlu0 %v599, 1
        %v1577 = vpop.permute.xlu0 %1576
        %1578 = vrot.lane.b32.xlu0 %v600, 1
        %v1579 = vpop.permute.xlu0 %1578
        %1580 = vrot.lane.b32.xlu0 %v601, 1
        %v1581 = vpop.permute.xlu0 %1580
        %1582 = vrot.lane.b32.xlu0 %v602, 1
        %v1583 = vpop.permute.xlu0 %1582
        %1584 = vrot.lane.b32.xlu0 %v603, 1
        %v1585 = vpop.permute.xlu0 %1584
        %1586 = vrot.lane.b32.xlu0 %v604, 1
        %v1587 = vpop.permute.xlu0 %1586
        %1588 = vrot.lane.b32.xlu0 %v605, 1
        %v1589 = vpop.permute.xlu0 %1588
        %1590 = vrot.lane.b32.xlu0 %v606, 1
        %v1591 = vpop.permute.xlu0 %1590
        %1592 = vrot.lane.b32.xlu0 %v607, 1
        %v1593 = vpop.permute.xlu0 %1592
        %1594 = vrot.lane.b32.xlu0 %v608, 1
        %v1595 = vpop.permute.xlu0 %1594
        %1596 = vrot.lane.b32.xlu0 %v609, 1
        %v1597 = vpop.permute.xlu0 %1596
        %1598 = vrot.lane.b32.xlu0 %v610, 1
        %v1599 = vpop.permute.xlu0 %1598
        %1600 = vrot.lane.b32.xlu0 %v611, 1
        %v1601 = vpop.permute.xlu0 %1600
        %1602 = vrot.lane.b32.xlu0 %v612, 1
        %v1603 = vpop.permute.xlu0 %1602
        %1604 = vrot.lane.b32.xlu0 %v613, 1
        %v1605 = vpop.permute.xlu0 %1604
        %1606 = vrot.lane.b32.xlu0 %v614, 1
        %v1607 = vpop.permute.xlu0 %1606
        %1608 = vrot.lane.b32.xlu0 %v615, 1
        %v1609 = vpop.permute.xlu0 %1608
        %1610 = vrot.lane.b32.xlu0 %v616, 1
        %v1611 = vpop.permute.xlu0 %1610
        %1612 = vrot.lane.b32.xlu0 %v617, 1
        %v1613 = vpop.permute.xlu0 %1612
        %1614 = vrot.lane.b32.xlu0 %v618, 1
        %v1615 = vpop.permute.xlu0 %1614
        %1616 = vrot.lane.b32.xlu0 %v619, 1
        %v1617 = vpop.permute.xlu0 %1616
        %1618 = vrot.lane.b32.xlu0 %v620, 1
        %v1619 = vpop.permute.xlu0 %1618
        %1620 = vrot.lane.b32.xlu0 %v621, 1
        %v1621 = vpop.permute.xlu0 %1620
        %1622 = vrot.lane.b32.xlu0 %v622, 1
        %v1623 = vpop.permute.xlu0 %1622
        %1624 = vrot.lane.b32.xlu0 %v623, 1
        %v1625 = vpop.permute.xlu0 %1624
        %vm1626 = vcmask 7168
        %v1627 = vsel %vm1626, %v1531, %v1533
        %v1628 = vsel %vm1626, %v1533, %v1535
        %v1629 = vsel %vm1626, %v1537, %v1539
        %v1630 = vsel %vm1626, %v1539, %v1541
        %v1631 = vsel %vm1626, %v1543, %v1545
        %v1632 = vsel %vm1626, %v1545, %v1547
        %v1633 = vsel %vm1626, %v1549, %v1551
        %v1634 = vsel %vm1626, %v1551, %v1553
        %v1635 = vsel %vm1626, %v1555, %v1557
        %v1636 = vsel %vm1626, %v1557, %v1559
        %v1637 = vsel %vm1626, %v1561, %v1563
        %v1638 = vsel %vm1626, %v1563, %v1565
        %v1639 = vsel %vm1626, %v1567, %v1569
        %v1640 = vsel %vm1626, %v1569, %v1571
        %v1641 = vsel %vm1626, %v1573, %v1575
        %v1642 = vsel %vm1626, %v1575, %v1577
        %v1643 = vsel %vm1626, %v1579, %v1581
        %v1644 = vsel %vm1626, %v1581, %v1583
        %v1645 = vsel %vm1626, %v1585, %v1587
        %v1646 = vsel %vm1626, %v1587, %v1589
        %v1647 = vsel %vm1626, %v1591, %v1593
        %v1648 = vsel %vm1626, %v1593, %v1595
        %v1649 = vsel %vm1626, %v1597, %v1599
        %v1650 = vsel %vm1626, %v1599, %v1601
        %v1651 = vsel %vm1626, %v1603, %v1605
        %v1652 = vsel %vm1626, %v1605, %v1607
        %v1653 = vsel %vm1626, %v1609, %v1611
        %v1654 = vsel %vm1626, %v1611, %v1613
        %v1655 = vsel %vm1626, %v1615, %v1617
        %v1656 = vsel %vm1626, %v1617, %v1619
        %v1657 = vsel %vm1626, %v1621, %v1623
        %v1658 = vsel %vm1626, %v1623, %v1625
        %1691 = vmatprep.subr.mxu0 %v1628
        %1692 = vmatpush1.msra.mxu0 %v1627
        %1693 = vmatprep.subr.mxu0 %v1630
        %1694 = vmatpush1.msra.mxu0 %v1629
        %1695 = vmatprep.subr.mxu0 %v1632
        %1696 = vmatpush1.msra.mxu0 %v1631
        %1697 = vmatprep.subr.mxu0 %v1634
        %1698 = vmatpush1.msra.mxu0 %v1633
        %1699 = vmatprep.subr.mxu0 %v1636
        %1700 = vmatpush1.msra.mxu0 %v1635
        %1701 = vmatprep.subr.mxu0 %v1638
        %1702 = vmatpush1.msra.mxu0 %v1637
        %1703 = vmatprep.subr.mxu0 %v1640
        %1704 = vmatpush1.msra.mxu0 %v1639
        %1705 = vmatprep.subr.mxu0 %v1642
        %1706 = vmatpush1.msra.mxu0 %v1641
        %1707 = vmatprep.subr.mxu0 %v1644
        %1708 = vmatpush1.msra.mxu0 %v1643
        %1709 = vmatprep.subr.mxu0 %v1646
        %1710 = vmatpush1.msra.mxu0 %v1645
        %1711 = vmatprep.subr.mxu0 %v1648
        %1712 = vmatpush1.msra.mxu0 %v1647
        %1713 = vmatprep.subr.mxu0 %v1650
        %1714 = vmatpush1.msra.mxu0 %v1649
        %1715 = vmatprep.subr.mxu0 %v1652
        %1716 = vmatpush1.msra.mxu0 %v1651
        %1717 = vmatprep.subr.mxu0 %v1654
        %1718 = vmatpush1.msra.mxu0 %v1653
        %1719 = vmatprep.subr.mxu0 %v1656
        %1720 = vmatpush1.msra.mxu0 %v1655
        %1721 = vmatprep.subr.mxu0 %v1658
        %1722 = vmatpush1.msra.mxu0 %v1657
        %1723 = vmatprep.subr.mxu0 0.0
        %1724 = vmatpush1.msra.mxu0 0.0
        %1725 = vmatprep.subr.mxu0 0.0
        %1726 = vmatpush1.msra.mxu0 0.0
        %1727 = vmatprep.subr.mxu0 0.0
        %1728 = vmatpush1.msra.mxu0 0.0
        %1729 = vmatprep.subr.mxu0 0.0
        %1730 = vmatpush1.msra.mxu0 0.0
        %1731 = vmatprep.subr.mxu0 0.0
        %1732 = vmatpush1.msra.mxu0 0.0
        %1733 = vmatprep.subr.mxu0 0.0
        %1734 = vmatpush1.msra.mxu0 0.0
        %1735 = vmatprep.subr.mxu0 0.0
        %1736 = vmatpush1.msra.mxu0 0.0
        %1737 = vmatprep.subr.mxu0 0.0
        %1738 = vmatpush1.msra.mxu0 0.0
        %1739 = vmatprep.subr.mxu0 0.0
        %1740 = vmatpush1.msra.mxu0 0.0
        %1741 = vmatprep.subr.mxu0 0.0
        %1742 = vmatpush1.msra.mxu0 0.0
        %1743 = vmatprep.subr.mxu0 0.0
        %1744 = vmatpush1.msra.mxu0 0.0
        %1745 = vmatprep.subr.mxu0 0.0
        %1746 = vmatpush1.msra.mxu0 0.0
        %1747 = vmatprep.subr.mxu0 0.0
        %1748 = vmatpush1.msra.mxu0 0.0
        %1749 = vmatprep.subr.mxu0 0.0
        %1750 = vmatpush1.msra.mxu0 0.0
        %1751 = vmatprep.subr.mxu0 0.0
        %1752 = vmatpush1.msra.mxu0 0.0
        %1753 = vmatprep.subr.mxu0 0.0
        %1754 = vmatpush1.msra.mxu0 0.0
        %1755 = vmatprep.mubr.f32.mxu0 0.0
        %1756 = vmatmul.mubr.f32.gmra.mrb[0].mxu0 %v1526
        %v1757 = vpop.f32.mrb[0].mxu0
        %v1758 = vadd.f32 0.0, %v1757
        %v1759 = vpop.f32.mrb[0].mxu0
        %v1760 = vadd.f32 0.0, %v1759
        %1761 = vmatprep.mubr.f32.mxu0 0.0
        %1762 = vmatmul.mubr.f32.gmra.mrb[0].mxu0 %v1527
        %v1763 = vpop.f32.mrb[0].mxu0
        %v1764 = vadd.f32 0.0, %v1763
        %v1765 = vpop.f32.mrb[0].mxu0
        %v1766 = vadd.f32 0.0, %v1765
        %1767 = vmatprep.mubr.f32.mxu0 0.0
        %1768 = vmatmul.mubr.f32.gmra.mrb[0].mxu0 %v1528
        %v1769 = vpop.f32.mrb[0].mxu0
        %v1770 = vadd.f32 0.0, %v1769
        %v1771 = vpop.f32.mrb[0].mxu0
        %v1772 = vadd.f32 0.0, %v1771
        %1773 = vmatprep.mubr.f32.mxu0 0.0
        %1774 = vmatmul.mubr.f32.gmra.mrb[0].mxu0 %v1529
        %v1775 = vpop.f32.mrb[0].mxu0
        %v1776 = vadd.f32 0.0, %v1775
        %v1777 = vpop.f32.mrb[0].mxu0
        %v1778 = vadd.f32 0.0, %v1777
        %1779 = vdwg.mxu0
        %s1780 = scalar_lea.vmem %s4, 3
        %v1781 = vld [vmem:[%s1780] ss:$8 sm:$0x3]
        %vm1782 = vcmp.gt.f32.partialorder %v1781, 0.0
        %v1783 = vsel %vm1782, 1, 0
        %v1784 = vlaneseq
        %v1785 = vshrl.u32 %v1784, 7
        %v1786 = vsub.s32 0, %v1785
        %v1787 = vrot.slane %v1783, %v1786
        %v1788 = vlaneseq
        %v1789 = vshrl.u32 %v1788, 7
        %v1790 = vsub.s32 1, %v1789
        %v1791 = vrot.slane %v1783, %v1790
        %vm1792 = vcmp.eq.s32.totalorder %v1787, 1
        %vm1793 = vcmp.eq.s32.totalorder %v1791, 1
        %v1794 = vsel %vm1792, %v1758, 0.0
        %v1795 = vsel %vm1793, %v1760, 0.0
        %v1796 = vsel %vm1792, %v1764, 0.0
        %v1797 = vsel %vm1793, %v1766, 0.0
        %v1798 = vsel %vm1792, %v1770, 0.0
        %v1799 = vsel %vm1793, %v1772, 0.0
        %v1800 = vsel %vm1792, %v1776, 0.0
        %v1801 = vsel %vm1793, %v1778, 0.0
        %v1802 = vadd.f32 %v1517, %v1794
        %v1803 = vadd.f32 %v1518, %v1795
        %v1804 = vadd.f32 %v1519, %v1796
        %v1805 = vadd.f32 %v1520, %v1797
        %v1806 = vadd.f32 %v1521, %v1798
        %v1807 = vadd.f32 %v1522, %v1799
        %v1808 = vadd.f32 %v1523, %v1800
        %v1809 = vadd.f32 %v1524, %v1801
        %s1810 = scalar_lea.vmem %s3, 128
        %v1811 = vld [vmem:[%s1810] sm:$0xff]
        %v1812 = vld [vmem:[%s1810 + $0x8] sm:$0xff]
        %v1813 = vld [vmem:[%s1810 + $0x10] sm:$0xff]
        %v1814 = vld [vmem:[%s1810 + $0x18] sm:$0xff]
        %1815 = vmatprep.subr.mxu0 %v578
        %1816 = vmatpush1.msra.mxu0 %v577
        %1817 = vmatprep.subr.mxu0 %v581
        %1818 = vmatpush1.msra.mxu0 %v580
        %1819 = vmatprep.subr.mxu0 %v584
        %1820 = vmatpush1.msra.mxu0 %v583
        %1821 = vmatprep.subr.mxu0 %v587
        %1822 = vmatpush1.msra.mxu0 %v586
        %1823 = vmatprep.subr.mxu0 %v590
        %1824 = vmatpush1.msra.mxu0 %v589
        %1825 = vmatprep.subr.mxu0 %v593
        %1826 = vmatpush1.msra.mxu0 %v592
        %1827 = vmatprep.subr.mxu0 %v596
        %1828 = vmatpush1.msra.mxu0 %v595
        %1829 = vmatprep.subr.mxu0 %v599
        %1830 = vmatpush1.msra.mxu0 %v598
        %1831 = vmatprep.subr.mxu0 %v602
        %1832 = vmatpush1.msra.mxu0 %v601
        %1833 = vmatprep.subr.mxu0 %v605
        %1834 = vmatpush1.msra.mxu0 %v604
        %1835 = vmatprep.subr.mxu0 %v608
        %1836 = vmatpush1.msra.mxu0 %v607
        %1837 = vmatprep.subr.mxu0 %v611
        %1838 = vmatpush1.msra.mxu0 %v610
        %1839 = vmatprep.subr.mxu0 %v614
        %1840 = vmatpush1.msra.mxu0 %v613
        %1841 = vmatprep.subr.mxu0 %v617
        %1842 = vmatpush1.msra.mxu0 %v616
        %1843 = vmatprep.subr.mxu0 %v620
        %1844 = vmatpush1.msra.mxu0 %v619
        %1845 = vmatprep.subr.mxu0 %v623
        %1846 = vmatpush1.msra.mxu0 %v622
        %1847 = vmatprep.subr.mxu0 0.0
        %1848 = vmatpush1.msra.mxu0 0.0
        %1849 = vmatprep.subr.mxu0 0.0
        %1850 = vmatpush1.msra.mxu0 0.0
        %1851 = vmatprep.subr.mxu0 0.0
        %1852 = vmatpush1.msra.mxu0 0.0
        %1853 = vmatprep.subr.mxu0 0.0
        %1854 = vmatpush1.msra.mxu0 0.0
        %1855 = vmatprep.subr.mxu0 0.0
        %1856 = vmatpush1.msra.mxu0 0.0
        %1857 = vmatprep.subr.mxu0 0.0
        %1858 = vmatpush1.msra.mxu0 0.0
        %1859 = vmatprep.subr.mxu0 0.0
        %1860 = vmatpush1.msra.mxu0 0.0
        %1861 = vmatprep.subr.mxu0 0.0
        %1862 = vmatpush1.msra.mxu0 0.0
        %1863 = vmatprep.subr.mxu0 0.0
        %1864 = vmatpush1.msra.mxu0 0.0
        %1865 = vmatprep.subr.mxu0 0.0
        %1866 = vmatpush1.msra.mxu0 0.0
        %1867 = vmatprep.subr.mxu0 0.0
        %1868 = vmatpush1.msra.mxu0 0.0
        %1869 = vmatprep.subr.mxu0 0.0
        %1870 = vmatpush1.msra.mxu0 0.0
        %1871 = vmatprep.subr.mxu0 0.0
        %1872 = vmatpush1.msra.mxu0 0.0
        %1873 = vmatprep.subr.mxu0 0.0
        %1874 = vmatpush1.msra.mxu0 0.0
        %1875 = vmatprep.subr.mxu0 0.0
        %1876 = vmatpush1.msra.mxu0 0.0
        %1877 = vmatprep.subr.mxu0 0.0
        %1878 = vmatpush1.msra.mxu0 0.0
        %1879 = vmatprep.mubr.f32.mxu0 0.0
        %1880 = vmatmul.mubr.f32.gmra.mrb[0].mxu0 %v1811
        %v1881 = vpop.f32.mrb[0].mxu0
        %v1882 = vadd.f32 0.0, %v1881
        %v1883 = vpop.f32.mrb[0].mxu0
        %v1884 = vadd.f32 0.0, %v1883
        %1885 = vmatprep.mubr.f32.mxu0 0.0
        %1886 = vmatmul.mubr.f32.gmra.mrb[0].mxu0 %v1812
        %v1887 = vpop.f32.mrb[0].mxu0
        %v1888 = vadd.f32 0.0, %v1887
        %v1889 = vpop.f32.mrb[0].mxu0
        %v1890 = vadd.f32 0.0, %v1889
        %1891 = vmatprep.mubr.f32.mxu0 0.0
        %1892 = vmatmul.mubr.f32.gmra.mrb[0].mxu0 %v1813
        %v1893 = vpop.f32.mrb[0].mxu0
        %v1894 = vadd.f32 0.0, %v1893
        %v1895 = vpop.f32.mrb[0].mxu0
        %v1896 = vadd.f32 0.0, %v1895
        %1897 = vmatprep.mubr.f32.mxu0 0.0
        %1898 = vmatmul.mubr.f32.gmra.mrb[0].mxu0 %v1814
        %v1899 = vpop.f32.mrb[0].mxu0
        %v1900 = vadd.f32 0.0, %v1899
        %v1901 = vpop.f32.mrb[0].mxu0
        %v1902 = vadd.f32 0.0, %v1901
        %1903 = vdwg.mxu0
        %s1904 = scalar_lea.vmem %s4, 4
        %v1905 = vld [vmem:[%s1904] ss:$8 sm:$0x3]
        %vm1906 = vcmp.gt.f32.partialorder %v1905, 0.0
        %v1907 = vsel %vm1906, 1, 0
        %v1908 = vlaneseq
        %v1909 = vshrl.u32 %v1908, 7
        %v1910 = vsub.s32 0, %v1909
        %v1911 = vrot.slane %v1907, %v1910
        %v1912 = vlaneseq
        %v1913 = vshrl.u32 %v1912, 7
        %v1914 = vsub.s32 1, %v1913
        %v1915 = vrot.slane %v1907, %v1914
        %vm1916 = vcmp.eq.s32.totalorder %v1911, 1
        %vm1917 = vcmp.eq.s32.totalorder %v1915, 1
        %v1918 = vsel %vm1916, %v1882, 0.0
        %v1919 = vsel %vm1917, %v1884, 0.0
        %v1920 = vsel %vm1916, %v1888, 0.0
        %v1921 = vsel %vm1917, %v1890, 0.0
        %v1922 = vsel %vm1916, %v1894, 0.0
        %v1923 = vsel %vm1917, %v1896, 0.0
        %v1924 = vsel %vm1916, %v1900, 0.0
        %v1925 = vsel %vm1917, %v1902, 0.0
        %v1926 = vadd.f32 %v1802, %v1918
        %v1927 = vadd.f32 %v1803, %v1919
        %v1928 = vadd.f32 %v1804, %v1920
        %v1929 = vadd.f32 %v1805, %v1921
        %v1930 = vadd.f32 %v1806, %v1922
        %v1931 = vadd.f32 %v1807, %v1923
        %v1932 = vadd.f32 %v1808, %v1924
        %v1933 = vadd.f32 %v1809, %v1925
        %v1934 = vld [vmem:[#allocation2 + $0x8] sm:$0xff]
        %v1935 = vld [vmem:[#allocation2 + $0x10] sm:$0xff]
        %v1936 = vld [vmem:[#allocation2 + $0x18] sm:$0xff]
        %v1937 = vld [vmem:[#allocation2 + $0x28] sm:$0xff]
        %v1938 = vld [vmem:[#allocation2 + $0x30] sm:$0xff]
        %v1939 = vld [vmem:[#allocation2 + $0x38] sm:$0xff]
        %v1940 = vld [vmem:[#allocation2 + $0x48] sm:$0xff]
        %v1941 = vld [vmem:[#allocation2 + $0x50] sm:$0xff]
        %v1942 = vld [vmem:[#allocation2 + $0x58] sm:$0xff]
        %v1943 = vld [vmem:[#allocation2 + $0x68] sm:$0xff]
        %v1944 = vld [vmem:[#allocation2 + $0x70] sm:$0xff]
        %v1945 = vld [vmem:[#allocation2 + $0x78] sm:$0xff]
        %v1946 = vld [vmem:[#allocation2 + $0x88] sm:$0xff]
        %v1947 = vld [vmem:[#allocation2 + $0x90] sm:$0xff]
        %v1948 = vld [vmem:[#allocation2 + $0x98] sm:$0xff]
        %v1949 = vld [vmem:[#allocation2 + $0xa8] sm:$0xff]
        %v1950 = vld [vmem:[#allocation2 + $0xb0] sm:$0xff]
        %v1951 = vld [vmem:[#allocation2 + $0xb8] sm:$0xff]
        %v1952 = vld [vmem:[#allocation2 + $0xc8] sm:$0xff]
        %v1953 = vld [vmem:[#allocation2 + $0xd0] sm:$0xff]
        %v1954 = vld [vmem:[#allocation2 + $0xd8] sm:$0xff]
        %v1955 = vld [vmem:[#allocation2 + $0xe8] sm:$0xff]
        %v1956 = vld [vmem:[#allocation2 + $0xf0] sm:$0xff]
        %v1957 = vld [vmem:[#allocation2 + $0xf8] sm:$0xff]
        %v1958 = vld [vmem:[#allocation2 + $0x108] sm:$0xff]
        %v1959 = vld [vmem:[#allocation2 + $0x110] sm:$0xff]
        %v1960 = vld [vmem:[#allocation2 + $0x118] sm:$0xff]
        %v1961 = vld [vmem:[#allocation2 + $0x128] sm:$0xff]
        %v1962 = vld [vmem:[#allocation2 + $0x130] sm:$0xff]
        %v1963 = vld [vmem:[#allocation2 + $0x138] sm:$0xff]
        %v1964 = vld [vmem:[#allocation2 + $0x148] sm:$0xff]
        %v1965 = vld [vmem:[#allocation2 + $0x150] sm:$0xff]
        %v1966 = vld [vmem:[#allocation2 + $0x158] sm:$0xff]
        %v1967 = vld [vmem:[#allocation2 + $0x168] sm:$0xff]
        %v1968 = vld [vmem:[#allocation2 + $0x170] sm:$0xff]
        %v1969 = vld [vmem:[#allocation2 + $0x178] sm:$0xff]
        %v1970 = vld [vmem:[#allocation2 + $0x188] sm:$0xff]
        %v1971 = vld [vmem:[#allocation2 + $0x190] sm:$0xff]
        %v1972 = vld [vmem:[#allocation2 + $0x198] sm:$0xff]
        %v1973 = vld [vmem:[#allocation2 + $0x1a8] sm:$0xff]
        %v1974 = vld [vmem:[#allocation2 + $0x1b0] sm:$0xff]
        %v1975 = vld [vmem:[#allocation2 + $0x1b8] sm:$0xff]
        %v1976 = vld [vmem:[#allocation2 + $0x1c8] sm:$0xff]
        %v1977 = vld [vmem:[#allocation2 + $0x1d0] sm:$0xff]
        %v1978 = vld [vmem:[#allocation2 + $0x1d8] sm:$0xff]
        %v1979 = vld [vmem:[#allocation2 + $0x1e8] sm:$0xff]
        %v1980 = vld [vmem:[#allocation2 + $0x1f0] sm:$0xff]
        %v1981 = vld [vmem:[#allocation2 + $0x1f8] sm:$0xff]
        %s1982 = scalar_lea.vmem %s3, 160
        %v1983 = vld [vmem:[%s1982] sm:$0xff]
        %v1984 = vld [vmem:[%s1982 + $0x8] sm:$0xff]
        %v1985 = vld [vmem:[%s1982 + $0x10] sm:$0xff]
        %v1986 = vld [vmem:[%s1982 + $0x18] sm:$0xff]
        %2035 = vrot.lane.b32.xlu0 %v1934, 127
        %v2036 = vpop.permute.xlu0 %2035
        %2037 = vrot.lane.b32.xlu0 %v1935, 127
        %v2038 = vpop.permute.xlu0 %2037
        %2039 = vrot.lane.b32.xlu0 %v1936, 127
        %v2040 = vpop.permute.xlu0 %2039
        %2041 = vrot.lane.b32.xlu0 %v1937, 127
        %v2042 = vpop.permute.xlu0 %2041
        %2043 = vrot.lane.b32.xlu0 %v1938, 127
        %v2044 = vpop.permute.xlu0 %2043
        %2045 = vrot.lane.b32.xlu0 %v1939, 127
        %v2046 = vpop.permute.xlu0 %2045
        %2047 = vrot.lane.b32.xlu0 %v1940, 127
        %v2048 = vpop.permute.xlu0 %2047
        %2049 = vrot.lane.b32.xlu0 %v1941, 127
        %v2050 = vpop.permute.xlu0 %2049
        %2051 = vrot.lane.b32.xlu0 %v1942, 127
        %v2052 = vpop.permute.xlu0 %2051
        %2053 = vrot.lane.b32.xlu0 %v1943, 127
        %v2054 = vpop.permute.xlu0 %2053
        %2055 = vrot.lane.b32.xlu0 %v1944, 127
        %v2056 = vpop.permute.xlu0 %2055
        %2057 = vrot.lane.b32.xlu0 %v1945, 127
        %v2058 = vpop.permute.xlu0 %2057
        %2059 = vrot.lane.b32.xlu0 %v1946, 127
        %v2060 = vpop.permute.xlu0 %2059
        %2061 = vrot.lane.b32.xlu0 %v1947, 127
        %v2062 = vpop.permute.xlu0 %2061
        %2063 = vrot.lane.b32.xlu0 %v1948, 127
        %v2064 = vpop.permute.xlu0 %2063
        %2065 = vrot.lane.b32.xlu0 %v1949, 127
        %v2066 = vpop.permute.xlu0 %2065
        %2067 = vrot.lane.b32.xlu0 %v1950, 127
        %v2068 = vpop.permute.xlu0 %2067
        %2069 = vrot.lane.b32.xlu0 %v1951, 127
        %v2070 = vpop.permute.xlu0 %2069
        %2071 = vrot.lane.b32.xlu0 %v1952, 127
        %v2072 = vpop.permute.xlu0 %2071
        %2073 = vrot.lane.b32.xlu0 %v1953, 127
        %v2074 = vpop.permute.xlu0 %2073
        %2075 = vrot.lane.b32.xlu0 %v1954, 127
        %v2076 = vpop.permute.xlu0 %2075
        %2077 = vrot.lane.b32.xlu0 %v1955, 127
        %v2078 = vpop.permute.xlu0 %2077
        %2079 = vrot.lane.b32.xlu0 %v1956, 127
        %v2080 = vpop.permute.xlu0 %2079
        %2081 = vrot.lane.b32.xlu0 %v1957, 127
        %v2082 = vpop.permute.xlu0 %2081
        %2083 = vrot.lane.b32.xlu0 %v1958, 127
        %v2084 = vpop.permute.xlu0 %2083
        %2085 = vrot.lane.b32.xlu0 %v1959, 127
        %v2086 = vpop.permute.xlu0 %2085
        %2087 = vrot.lane.b32.xlu0 %v1960, 127
        %v2088 = vpop.permute.xlu0 %2087
        %2089 = vrot.lane.b32.xlu0 %v1961, 127
        %v2090 = vpop.permute.xlu0 %2089
        %2091 = vrot.lane.b32.xlu0 %v1962, 127
        %v2092 = vpop.permute.xlu0 %2091
        %2093 = vrot.lane.b32.xlu0 %v1963, 127
        %v2094 = vpop.permute.xlu0 %2093
        %2095 = vrot.lane.b32.xlu0 %v1964, 127
        %v2096 = vpop.permute.xlu0 %2095
        %2097 = vrot.lane.b32.xlu0 %v1965, 127
        %v2098 = vpop.permute.xlu0 %2097
        %2099 = vrot.lane.b32.xlu0 %v1966, 127
        %v2100 = vpop.permute.xlu0 %2099
        %2101 = vrot.lane.b32.xlu0 %v1967, 127
        %v2102 = vpop.permute.xlu0 %2101
        %2103 = vrot.lane.b32.xlu0 %v1968, 127
        %v2104 = vpop.permute.xlu0 %2103
        %2105 = vrot.lane.b32.xlu0 %v1969, 127
        %v2106 = vpop.permute.xlu0 %2105
        %2107 = vrot.lane.b32.xlu0 %v1970, 127
        %v2108 = vpop.permute.xlu0 %2107
        %2109 = vrot.lane.b32.xlu0 %v1971, 127
        %v2110 = vpop.permute.xlu0 %2109
        %2111 = vrot.lane.b32.xlu0 %v1972, 127
        %v2112 = vpop.permute.xlu0 %2111
        %2113 = vrot.lane.b32.xlu0 %v1973, 127
        %v2114 = vpop.permute.xlu0 %2113
        %2115 = vrot.lane.b32.xlu0 %v1974, 127
        %v2116 = vpop.permute.xlu0 %2115
        %2117 = vrot.lane.b32.xlu0 %v1975, 127
        %v2118 = vpop.permute.xlu0 %2117
        %2119 = vrot.lane.b32.xlu0 %v1976, 127
        %v2120 = vpop.permute.xlu0 %2119
        %2121 = vrot.lane.b32.xlu0 %v1977, 127
        %v2122 = vpop.permute.xlu0 %2121
        %2123 = vrot.lane.b32.xlu0 %v1978, 127
        %v2124 = vpop.permute.xlu0 %2123
        %2125 = vrot.lane.b32.xlu0 %v1979, 127
        %v2126 = vpop.permute.xlu0 %2125
        %2127 = vrot.lane.b32.xlu0 %v1980, 127
        %v2128 = vpop.permute.xlu0 %2127
        %2129 = vrot.lane.b32.xlu0 %v1981, 127
        %v2130 = vpop.permute.xlu0 %2129
        %vm2131 = vcmask 1039360
        %v2132 = vsel %vm2131, %v2036, %v2038
        %v2133 = vsel %vm2131, %v2038, %v2040
        %v2134 = vsel %vm2131, %v2042, %v2044
        %v2135 = vsel %vm2131, %v2044, %v2046
        %v2136 = vsel %vm2131, %v2048, %v2050
        %v2137 = vsel %vm2131, %v2050, %v2052
        %v2138 = vsel %vm2131, %v2054, %v2056
        %v2139 = vsel %vm2131, %v2056, %v2058
        %v2140 = vsel %vm2131, %v2060, %v2062
        %v2141 = vsel %vm2131, %v2062, %v2064
        %v2142 = vsel %vm2131, %v2066, %v2068
        %v2143 = vsel %vm2131, %v2068, %v2070
        %v2144 = vsel %vm2131, %v2072, %v2074
        %v2145 = vsel %vm2131, %v2074, %v2076
        %v2146 = vsel %vm2131, %v2078, %v2080
        %v2147 = vsel %vm2131, %v2080, %v2082
        %v2148 = vsel %vm2131, %v2084, %v2086
        %v2149 = vsel %vm2131, %v2086, %v2088
        %v2150 = vsel %vm2131, %v2090, %v2092
        %v2151 = vsel %vm2131, %v2092, %v2094
        %v2152 = vsel %vm2131, %v2096, %v2098
        %v2153 = vsel %vm2131, %v2098, %v2100
        %v2154 = vsel %vm2131, %v2102, %v2104
        %v2155 = vsel %vm2131, %v2104, %v2106
        %v2156 = vsel %vm2131, %v2108, %v2110
        %v2157 = vsel %vm2131, %v2110, %v2112
        %v2158 = vsel %vm2131, %v2114, %v2116
        %v2159 = vsel %vm2131, %v2116, %v2118
        %v2160 = vsel %vm2131, %v2120, %v2122
        %v2161 = vsel %vm2131, %v2122, %v2124
        %v2162 = vsel %vm2131, %v2126, %v2128
        %v2163 = vsel %vm2131, %v2128, %v2130
        %2196 = vmatprep.subr.mxu0 %v2133
        %2197 = vmatpush1.msra.mxu0 %v2132
        %2198 = vmatprep.subr.mxu0 %v2135
        %2199 = vmatpush1.msra.mxu0 %v2134
        %2200 = vmatprep.subr.mxu0 %v2137
        %2201 = vmatpush1.msra.mxu0 %v2136
        %2202 = vmatprep.subr.mxu0 %v2139
        %2203 = vmatpush1.msra.mxu0 %v2138
        %2204 = vmatprep.subr.mxu0 %v2141
        %2205 = vmatpush1.msra.mxu0 %v2140
        %2206 = vmatprep.subr.mxu0 %v2143
        %2207 = vmatpush1.msra.mxu0 %v2142
        %2208 = vmatprep.subr.mxu0 %v2145
        %2209 = vmatpush1.msra.mxu0 %v2144
        %2210 = vmatprep.subr.mxu0 %v2147
        %2211 = vmatpush1.msra.mxu0 %v2146
        %2212 = vmatprep.subr.mxu0 %v2149
        %2213 = vmatpush1.msra.mxu0 %v2148
        %2214 = vmatprep.subr.mxu0 %v2151
        %2215 = vmatpush1.msra.mxu0 %v2150
        %2216 = vmatprep.subr.mxu0 %v2153
        %2217 = vmatpush1.msra.mxu0 %v2152
        %2218 = vmatprep.subr.mxu0 %v2155
        %2219 = vmatpush1.msra.mxu0 %v2154
        %2220 = vmatprep.subr.mxu0 %v2157
        %2221 = vmatpush1.msra.mxu0 %v2156
        %2222 = vmatprep.subr.mxu0 %v2159
        %2223 = vmatpush1.msra.mxu0 %v2158
        %2224 = vmatprep.subr.mxu0 %v2161
        %2225 = vmatpush1.msra.mxu0 %v2160
        %2226 = vmatprep.subr.mxu0 %v2163
        %2227 = vmatpush1.msra.mxu0 %v2162
        %2228 = vmatprep.subr.mxu0 0.0
        %2229 = vmatpush1.msra.mxu0 0.0
        %2230 = vmatprep.subr.mxu0 0.0
        %2231 = vmatpush1.msra.mxu0 0.0
        %2232 = vmatprep.subr.mxu0 0.0
        %2233 = vmatpush1.msra.mxu0 0.0
        %2234 = vmatprep.subr.mxu0 0.0
        %2235 = vmatpush1.msra.mxu0 0.0
        %2236 = vmatprep.subr.mxu0 0.0
        %2237 = vmatpush1.msra.mxu0 0.0
        %2238 = vmatprep.subr.mxu0 0.0
        %2239 = vmatpush1.msra.mxu0 0.0
        %2240 = vmatprep.subr.mxu0 0.0
        %2241 = vmatpush1.msra.mxu0 0.0
        %2242 = vmatprep.subr.mxu0 0.0
        %2243 = vmatpush1.msra.mxu0 0.0
        %2244 = vmatprep.subr.mxu0 0.0
        %2245 = vmatpush1.msra.mxu0 0.0
        %2246 = vmatprep.subr.mxu0 0.0
        %2247 = vmatpush1.msra.mxu0 0.0
        %2248 = vmatprep.subr.mxu0 0.0
        %2249 = vmatpush1.msra.mxu0 0.0
        %2250 = vmatprep.subr.mxu0 0.0
        %2251 = vmatpush1.msra.mxu0 0.0
        %2252 = vmatprep.subr.mxu0 0.0
        %2253 = vmatpush1.msra.mxu0 0.0
        %2254 = vmatprep.subr.mxu0 0.0
        %2255 = vmatpush1.msra.mxu0 0.0
        %2256 = vmatprep.subr.mxu0 0.0
        %2257 = vmatpush1.msra.mxu0 0.0
        %2258 = vmatprep.subr.mxu0 0.0
        %2259 = vmatpush1.msra.mxu0 0.0
        %2260 = vmatprep.mubr.f32.mxu0 0.0
        %2261 = vmatmul.mubr.f32.gmra.mrb[0].mxu0 %v1983
        %v2262 = vpop.f32.mrb[0].mxu0
        %v2263 = vadd.f32 0.0, %v2262
        %v2264 = vpop.f32.mrb[0].mxu0
        %v2265 = vadd.f32 0.0, %v2264
        %2266 = vmatprep.mubr.f32.mxu0 0.0
        %2267 = vmatmul.mubr.f32.gmra.mrb[0].mxu0 %v1984
        %v2268 = vpop.f32.mrb[0].mxu0
        %v2269 = vadd.f32 0.0, %v2268
        %v2270 = vpop.f32.mrb[0].mxu0
        %v2271 = vadd.f32 0.0, %v2270
        %2272 = vmatprep.mubr.f32.mxu0 0.0
        %2273 = vmatmul.mubr.f32.gmra.mrb[0].mxu0 %v1985
        %v2274 = vpop.f32.mrb[0].mxu0
        %v2275 = vadd.f32 0.0, %v2274
        %v2276 = vpop.f32.mrb[0].mxu0
        %v2277 = vadd.f32 0.0, %v2276
        %2278 = vmatprep.mubr.f32.mxu0 0.0
        %2279 = vmatmul.mubr.f32.gmra.mrb[0].mxu0 %v1986
        %v2280 = vpop.f32.mrb[0].mxu0
        %v2281 = vadd.f32 0.0, %v2280
        %v2282 = vpop.f32.mrb[0].mxu0
        %v2283 = vadd.f32 0.0, %v2282
        %2284 = vdwg.mxu0
        %s2285 = scalar_lea.vmem %s4, 5
        %v2286 = vld [vmem:[%s2285] ss:$8 sm:$0x3]
        %vm2287 = vcmp.gt.f32.partialorder %v2286, 0.0
        %v2288 = vsel %vm2287, 1, 0
        %v2289 = vlaneseq
        %v2290 = vshrl.u32 %v2289, 7
        %v2291 = vsub.s32 0, %v2290
        %v2292 = vrot.slane %v2288, %v2291
        %v2293 = vlaneseq
        %v2294 = vshrl.u32 %v2293, 7
        %v2295 = vsub.s32 1, %v2294
        %v2296 = vrot.slane %v2288, %v2295
        %vm2297 = vcmp.eq.s32.totalorder %v2292, 1
        %vm2298 = vcmp.eq.s32.totalorder %v2296, 1
        %v2299 = vsel %vm2297, %v2263, 0.0
        %v2300 = vsel %vm2298, %v2265, 0.0
        %v2301 = vsel %vm2297, %v2269, 0.0
        %v2302 = vsel %vm2298, %v2271, 0.0
        %v2303 = vsel %vm2297, %v2275, 0.0
        %v2304 = vsel %vm2298, %v2277, 0.0
        %v2305 = vsel %vm2297, %v2281, 0.0
        %v2306 = vsel %vm2298, %v2283, 0.0
        %v2307 = vadd.f32 %v1926, %v2299
        %v2308 = vadd.f32 %v1927, %v2300
        %v2309 = vadd.f32 %v1928, %v2301
        %v2310 = vadd.f32 %v1929, %v2302
        %v2311 = vadd.f32 %v1930, %v2303
        %v2312 = vadd.f32 %v1931, %v2304
        %v2313 = vadd.f32 %v1932, %v2305
        %v2314 = vadd.f32 %v1933, %v2306
        %s2315 = scalar_lea.vmem %s3, 192
        %v2316 = vld [vmem:[%s2315] sm:$0xff]
        %v2317 = vld [vmem:[%s2315 + $0x8] sm:$0xff]
        %v2318 = vld [vmem:[%s2315 + $0x10] sm:$0xff]
        %v2319 = vld [vmem:[%s2315 + $0x18] sm:$0xff]
        %2320 = vrot.lane.b32.xlu0 %v1934, 115
        %v2321 = vpop.permute.xlu0 %2320
        %2322 = vrot.lane.b32.xlu0 %v1935, 115
        %v2323 = vpop.permute.xlu0 %2322
        %2324 = vrot.lane.b32.xlu0 %v1936, 115
        %v2325 = vpop.permute.xlu0 %2324
        %2326 = vrot.lane.b32.xlu0 %v1937, 115
        %v2327 = vpop.permute.xlu0 %2326
        %2328 = vrot.lane.b32.xlu0 %v1938, 115
        %v2329 = vpop.permute.xlu0 %2328
        %2330 = vrot.lane.b32.xlu0 %v1939, 115
        %v2331 = vpop.permute.xlu0 %2330
        %2332 = vrot.lane.b32.xlu0 %v1940, 115
        %v2333 = vpop.permute.xlu0 %2332
        %2334 = vrot.lane.b32.xlu0 %v1941, 115
        %v2335 = vpop.permute.xlu0 %2334
        %2336 = vrot.lane.b32.xlu0 %v1942, 115
        %v2337 = vpop.permute.xlu0 %2336
        %2338 = vrot.lane.b32.xlu0 %v1943, 115
        %v2339 = vpop.permute.xlu0 %2338
        %2340 = vrot.lane.b32.xlu0 %v1944, 115
        %v2341 = vpop.permute.xlu0 %2340
        %2342 = vrot.lane.b32.xlu0 %v1945, 115
        %v2343 = vpop.permute.xlu0 %2342
        %2344 = vrot.lane.b32.xlu0 %v1946, 115
        %v2345 = vpop.permute.xlu0 %2344
        %2346 = vrot.lane.b32.xlu0 %v1947, 115
        %v2347 = vpop.permute.xlu0 %2346
        %2348 = vrot.lane.b32.xlu0 %v1948, 115
        %v2349 = vpop.permute.xlu0 %2348
        %2350 = vrot.lane.b32.xlu0 %v1949, 115
        %v2351 = vpop.permute.xlu0 %2350
        %2352 = vrot.lane.b32.xlu0 %v1950, 115
        %v2353 = vpop.permute.xlu0 %2352
        %2354 = vrot.lane.b32.xlu0 %v1951, 115
        %v2355 = vpop.permute.xlu0 %2354
        %2356 = vrot.lane.b32.xlu0 %v1952, 115
        %v2357 = vpop.permute.xlu0 %2356
        %2358 = vrot.lane.b32.xlu0 %v1953, 115
        %v2359 = vpop.permute.xlu0 %2358
        %2360 = vrot.lane.b32.xlu0 %v1954, 115
        %v2361 = vpop.permute.xlu0 %2360
        %2362 = vrot.lane.b32.xlu0 %v1955, 115
        %v2363 = vpop.permute.xlu0 %2362
        %2364 = vrot.lane.b32.xlu0 %v1956, 115
        %v2365 = vpop.permute.xlu0 %2364
        %2366 = vrot.lane.b32.xlu0 %v1957, 115
        %v2367 = vpop.permute.xlu0 %2366
        %2368 = vrot.lane.b32.xlu0 %v1958, 115
        %v2369 = vpop.permute.xlu0 %2368
        %2370 = vrot.lane.b32.xlu0 %v1959, 115
        %v2371 = vpop.permute.xlu0 %2370
        %2372 = vrot.lane.b32.xlu0 %v1960, 115
        %v2373 = vpop.permute.xlu0 %2372
        %2374 = vrot.lane.b32.xlu0 %v1961, 115
        %v2375 = vpop.permute.xlu0 %2374
        %2376 = vrot.lane.b32.xlu0 %v1962, 115
        %v2377 = vpop.permute.xlu0 %2376
        %2378 = vrot.lane.b32.xlu0 %v1963, 115
        %v2379 = vpop.permute.xlu0 %2378
        %2380 = vrot.lane.b32.xlu0 %v1964, 115
        %v2381 = vpop.permute.xlu0 %2380
        %2382 = vrot.lane.b32.xlu0 %v1965, 115
        %v2383 = vpop.permute.xlu0 %2382
        %2384 = vrot.lane.b32.xlu0 %v1966, 115
        %v2385 = vpop.permute.xlu0 %2384
        %2386 = vrot.lane.b32.xlu0 %v1967, 115
        %v2387 = vpop.permute.xlu0 %2386
        %2388 = vrot.lane.b32.xlu0 %v1968, 115
        %v2389 = vpop.permute.xlu0 %2388
        %2390 = vrot.lane.b32.xlu0 %v1969, 115
        %v2391 = vpop.permute.xlu0 %2390
        %2392 = vrot.lane.b32.xlu0 %v1970, 115
        %v2393 = vpop.permute.xlu0 %2392
        %2394 = vrot.lane.b32.xlu0 %v1971, 115
        %v2395 = vpop.permute.xlu0 %2394
        %2396 = vrot.lane.b32.xlu0 %v1972, 115
        %v2397 = vpop.permute.xlu0 %2396
        %2398 = vrot.lane.b32.xlu0 %v1973, 115
        %v2399 = vpop.permute.xlu0 %2398
        %2400 = vrot.lane.b32.xlu0 %v1974, 115
        %v2401 = vpop.permute.xlu0 %2400
        %2402 = vrot.lane.b32.xlu0 %v1975, 115
        %v2403 = vpop.permute.xlu0 %2402
        %2404 = vrot.lane.b32.xlu0 %v1976, 115
        %v2405 = vpop.permute.xlu0 %2404
        %2406 = vrot.lane.b32.xlu0 %v1977, 115
        %v2407 = vpop.permute.xlu0 %2406
        %2408 = vrot.lane.b32.xlu0 %v1978, 115
        %v2409 = vpop.permute.xlu0 %2408
        %2410 = vrot.lane.b32.xlu0 %v1979, 115
        %v2411 = vpop.permute.xlu0 %2410
        %2412 = vrot.lane.b32.xlu0 %v1980, 115
        %v2413 = vpop.permute.xlu0 %2412
        %2414 = vrot.lane.b32.xlu0 %v1981, 115
        %v2415 = vpop.permute.xlu0 %2414
        %vm2416 = vcmask 941056
        %v2417 = vsel %vm2416, %v2321, %v2323
        %v2418 = vsel %vm2416, %v2323, %v2325
        %v2419 = vsel %vm2416, %v2327, %v2329
        %v2420 = vsel %vm2416, %v2329, %v2331
        %v2421 = vsel %vm2416, %v2333, %v2335
        %v2422 = vsel %vm2416, %v2335, %v2337
        %v2423 = vsel %vm2416, %v2339, %v2341
        %v2424 = vsel %vm2416, %v2341, %v2343
        %v2425 = vsel %vm2416, %v2345, %v2347
        %v2426 = vsel %vm2416, %v2347, %v2349
        %v2427 = vsel %vm2416, %v2351, %v2353
        %v2428 = vsel %vm2416, %v2353, %v2355
        %v2429 = vsel %vm2416, %v2357, %v2359
        %v2430 = vsel %vm2416, %v2359, %v2361
        %v2431 = vsel %vm2416, %v2363, %v2365
        %v2432 = vsel %vm2416, %v2365, %v2367
        %v2433 = vsel %vm2416, %v2369, %v2371
        %v2434 = vsel %vm2416, %v2371, %v2373
        %v2435 = vsel %vm2416, %v2375, %v2377
        %v2436 = vsel %vm2416, %v2377, %v2379
        %v2437 = vsel %vm2416, %v2381, %v2383
        %v2438 = vsel %vm2416, %v2383, %v2385
        %v2439 = vsel %vm2416, %v2387, %v2389
        %v2440 = vsel %vm2416, %v2389, %v2391
        %v2441 = vsel %vm2416, %v2393, %v2395
        %v2442 = vsel %vm2416, %v2395, %v2397
        %v2443 = vsel %vm2416, %v2399, %v2401
        %v2444 = vsel %vm2416, %v2401, %v2403
        %v2445 = vsel %vm2416, %v2405, %v2407
        %v2446 = vsel %vm2416, %v2407, %v2409
        %v2447 = vsel %vm2416, %v2411, %v2413
        %v2448 = vsel %vm2416, %v2413, %v2415
        %2481 = vmatprep.subr.mxu0 %v2418
        %2482 = vmatpush1.msra.mxu0 %v2417
        %2483 = vmatprep.subr.mxu0 %v2420
        %2484 = vmatpush1.msra.mxu0 %v2419
        %2485 = vmatprep.subr.mxu0 %v2422
        %2486 = vmatpush1.msra.mxu0 %v2421
        %2487 = vmatprep.subr.mxu0 %v2424
        %2488 = vmatpush1.msra.mxu0 %v2423
        %2489 = vmatprep.subr.mxu0 %v2426
        %2490 = vmatpush1.msra.mxu0 %v2425
        %2491 = vmatprep.subr.mxu0 %v2428
        %2492 = vmatpush1.msra.mxu0 %v2427
        %2493 = vmatprep.subr.mxu0 %v2430
        %2494 = vmatpush1.msra.mxu0 %v2429
        %2495 = vmatprep.subr.mxu0 %v2432
        %2496 = vmatpush1.msra.mxu0 %v2431
        %2497 = vmatprep.subr.mxu0 %v2434
        %2498 = vmatpush1.msra.mxu0 %v2433
        %2499 = vmatprep.subr.mxu0 %v2436
        %2500 = vmatpush1.msra.mxu0 %v2435
        %2501 = vmatprep.subr.mxu0 %v2438
        %2502 = vmatpush1.msra.mxu0 %v2437
        %2503 = vmatprep.subr.mxu0 %v2440
        %2504 = vmatpush1.msra.mxu0 %v2439
        %2505 = vmatprep.subr.mxu0 %v2442
        %2506 = vmatpush1.msra.mxu0 %v2441
        %2507 = vmatprep.subr.mxu0 %v2444
        %2508 = vmatpush1.msra.mxu0 %v2443
        %2509 = vmatprep.subr.mxu0 %v2446
        %2510 = vmatpush1.msra.mxu0 %v2445
        %2511 = vmatprep.subr.mxu0 %v2448
        %2512 = vmatpush1.msra.mxu0 %v2447
        %2513 = vmatprep.subr.mxu0 0.0
        %2514 = vmatpush1.msra.mxu0 0.0
        %2515 = vmatprep.subr.mxu0 0.0
        %2516 = vmatpush1.msra.mxu0 0.0
        %2517 = vmatprep.subr.mxu0 0.0
        %2518 = vmatpush1.msra.mxu0 0.0
        %2519 = vmatprep.subr.mxu0 0.0
        %2520 = vmatpush1.msra.mxu0 0.0
        %2521 = vmatprep.subr.mxu0 0.0
        %2522 = vmatpush1.msra.mxu0 0.0
        %2523 = vmatprep.subr.mxu0 0.0
        %2524 = vmatpush1.msra.mxu0 0.0
        %2525 = vmatprep.subr.mxu0 0.0
        %2526 = vmatpush1.msra.mxu0 0.0
        %2527 = vmatprep.subr.mxu0 0.0
        %2528 = vmatpush1.msra.mxu0 0.0
        %2529 = vmatprep.subr.mxu0 0.0
        %2530 = vmatpush1.msra.mxu0 0.0
        %2531 = vmatprep.subr.mxu0 0.0
        %2532 = vmatpush1.msra.mxu0 0.0
        %2533 = vmatprep.subr.mxu0 0.0
        %2534 = vmatpush1.msra.mxu0 0.0
        %2535 = vmatprep.subr.mxu0 0.0
        %2536 = vmatpush1.msra.mxu0 0.0
        %2537 = vmatprep.subr.mxu0 0.0
        %2538 = vmatpush1.msra.mxu0 0.0
        %2539 = vmatprep.subr.mxu0 0.0
        %2540 = vmatpush1.msra.mxu0 0.0
        %2541 = vmatprep.subr.mxu0 0.0
        %2542 = vmatpush1.msra.mxu0 0.0
        %2543 = vmatprep.subr.mxu0 0.0
        %2544 = vmatpush1.msra.mxu0 0.0
        %2545 = vmatprep.mubr.f32.mxu0 0.0
        %2546 = vmatmul.mubr.f32.gmra.mrb[0].mxu0 %v2316
        %v2547 = vpop.f32.mrb[0].mxu0
        %v2548 = vadd.f32 0.0, %v2547
        %v2549 = vpop.f32.mrb[0].mxu0
        %v2550 = vadd.f32 0.0, %v2549
        %2551 = vmatprep.mubr.f32.mxu0 0.0
        %2552 = vmatmul.mubr.f32.gmra.mrb[0].mxu0 %v2317
        %v2553 = vpop.f32.mrb[0].mxu0
        %v2554 = vadd.f32 0.0, %v2553
        %v2555 = vpop.f32.mrb[0].mxu0
        %v2556 = vadd.f32 0.0, %v2555
        %2557 = vmatprep.mubr.f32.mxu0 0.0
        %2558 = vmatmul.mubr.f32.gmra.mrb[0].mxu0 %v2318
        %v2559 = vpop.f32.mrb[0].mxu0
        %v2560 = vadd.f32 0.0, %v2559
        %v2561 = vpop.f32.mrb[0].mxu0
        %v2562 = vadd.f32 0.0, %v2561
        %2563 = vmatprep.mubr.f32.mxu0 0.0
        %2564 = vmatmul.mubr.f32.gmra.mrb[0].mxu0 %v2319
        %v2565 = vpop.f32.mrb[0].mxu0
        %v2566 = vadd.f32 0.0, %v2565
        %v2567 = vpop.f32.mrb[0].mxu0
        %v2568 = vadd.f32 0.0, %v2567
        %2569 = vdwg.mxu0
        %s2570 = scalar_lea.vmem %s4, 6
        %v2571 = vld [vmem:[%s2570] ss:$8 sm:$0x3]
        %vm2572 = vcmp.gt.f32.partialorder %v2571, 0.0
        %v2573 = vsel %vm2572, 1, 0
        %v2574 = vlaneseq
        %v2575 = vshrl.u32 %v2574, 7
        %v2576 = vsub.s32 0, %v2575
        %v2577 = vrot.slane %v2573, %v2576
        %v2578 = vlaneseq
        %v2579 = vshrl.u32 %v2578, 7
        %v2580 = vsub.s32 1, %v2579
        %v2581 = vrot.slane %v2573, %v2580
        %vm2582 = vcmp.eq.s32.totalorder %v2577, 1
        %vm2583 = vcmp.eq.s32.totalorder %v2581, 1
        %v2584 = vsel %vm2582, %v2548, 0.0
        %v2585 = vsel %vm2583, %v2550, 0.0
        %v2586 = vsel %vm2582, %v2554, 0.0
        %v2587 = vsel %vm2583, %v2556, 0.0
        %v2588 = vsel %vm2582, %v2560, 0.0
        %v2589 = vsel %vm2583, %v2562, 0.0
        %v2590 = vsel %vm2582, %v2566, 0.0
        %v2591 = vsel %vm2583, %v2568, 0.0
        %v2592 = vadd.f32 %v2307, %v2584
        %v2593 = vadd.f32 %v2308, %v2585
        %v2594 = vadd.f32 %v2309, %v2586
        %v2595 = vadd.f32 %v2310, %v2587
        %v2596 = vadd.f32 %v2311, %v2588
        %v2597 = vadd.f32 %v2312, %v2589
        %v2598 = vadd.f32 %v2313, %v2590
        %v2599 = vadd.f32 %v2314, %v2591
        %s2600 = scalar_lea.vmem %s3, 224
        %v2601 = vld [vmem:[%s2600] sm:$0xff]
        %v2602 = vld [vmem:[%s2600 + $0x8] sm:$0xff]
        %v2603 = vld [vmem:[%s2600 + $0x10] sm:$0xff]
        %v2604 = vld [vmem:[%s2600 + $0x18] sm:$0xff]
        %2605 = vrot.lane.b32.xlu0 %v1934, 114
        %v2606 = vpop.permute.xlu0 %2605
        %2607 = vrot.lane.b32.xlu0 %v1935, 114
        %v2608 = vpop.permute.xlu0 %2607
        %2609 = vrot.lane.b32.xlu0 %v1936, 114
        %v2610 = vpop.permute.xlu0 %2609
        %2611 = vrot.lane.b32.xlu0 %v1937, 114
        %v2612 = vpop.permute.xlu0 %2611
        %2613 = vrot.lane.b32.xlu0 %v1938, 114
        %v2614 = vpop.permute.xlu0 %2613
        %2615 = vrot.lane.b32.xlu0 %v1939, 114
        %v2616 = vpop.permute.xlu0 %2615
        %2617 = vrot.lane.b32.xlu0 %v1940, 114
        %v2618 = vpop.permute.xlu0 %2617
        %2619 = vrot.lane.b32.xlu0 %v1941, 114
        %v2620 = vpop.permute.xlu0 %2619
        %2621 = vrot.lane.b32.xlu0 %v1942, 114
        %v2622 = vpop.permute.xlu0 %2621
        %2623 = vrot.lane.b32.xlu0 %v1943, 114
        %v2624 = vpop.permute.xlu0 %2623
        %2625 = vrot.lane.b32.xlu0 %v1944, 114
        %v2626 = vpop.permute.xlu0 %2625
        %2627 = vrot.lane.b32.xlu0 %v1945, 114
        %v2628 = vpop.permute.xlu0 %2627
        %2629 = vrot.lane.b32.xlu0 %v1946, 114
        %v2630 = vpop.permute.xlu0 %2629
        %2631 = vrot.lane.b32.xlu0 %v1947, 114
        %v2632 = vpop.permute.xlu0 %2631
        %2633 = vrot.lane.b32.xlu0 %v1948, 114
        %v2634 = vpop.permute.xlu0 %2633
        %2635 = vrot.lane.b32.xlu0 %v1949, 114
        %v2636 = vpop.permute.xlu0 %2635
        %2637 = vrot.lane.b32.xlu0 %v1950, 114
        %v2638 = vpop.permute.xlu0 %2637
        %2639 = vrot.lane.b32.xlu0 %v1951, 114
        %v2640 = vpop.permute.xlu0 %2639
        %2641 = vrot.lane.b32.xlu0 %v1952, 114
        %v2642 = vpop.permute.xlu0 %2641
        %2643 = vrot.lane.b32.xlu0 %v1953, 114
        %v2644 = vpop.permute.xlu0 %2643
        %2645 = vrot.lane.b32.xlu0 %v1954, 114
        %v2646 = vpop.permute.xlu0 %2645
        %2647 = vrot.lane.b32.xlu0 %v1955, 114
        %v2648 = vpop.permute.xlu0 %2647
        %2649 = vrot.lane.b32.xlu0 %v1956, 114
        %v2650 = vpop.permute.xlu0 %2649
        %2651 = vrot.lane.b32.xlu0 %v1957, 114
        %v2652 = vpop.permute.xlu0 %2651
        %2653 = vrot.lane.b32.xlu0 %v1958, 114
        %v2654 = vpop.permute.xlu0 %2653
        %2655 = vrot.lane.b32.xlu0 %v1959, 114
        %v2656 = vpop.permute.xlu0 %2655
        %2657 = vrot.lane.b32.xlu0 %v1960, 114
        %v2658 = vpop.permute.xlu0 %2657
        %2659 = vrot.lane.b32.xlu0 %v1961, 114
        %v2660 = vpop.permute.xlu0 %2659
        %2661 = vrot.lane.b32.xlu0 %v1962, 114
        %v2662 = vpop.permute.xlu0 %2661
        %2663 = vrot.lane.b32.xlu0 %v1963, 114
        %v2664 = vpop.permute.xlu0 %2663
        %2665 = vrot.lane.b32.xlu0 %v1964, 114
        %v2666 = vpop.permute.xlu0 %2665
        %2667 = vrot.lane.b32.xlu0 %v1965, 114
        %v2668 = vpop.permute.xlu0 %2667
        %2669 = vrot.lane.b32.xlu0 %v1966, 114
        %v2670 = vpop.permute.xlu0 %2669
        %2671 = vrot.lane.b32.xlu0 %v1967, 114
        %v2672 = vpop.permute.xlu0 %2671
        %2673 = vrot.lane.b32.xlu0 %v1968, 114
        %v2674 = vpop.permute.xlu0 %2673
        %2675 = vrot.lane.b32.xlu0 %v1969, 114
        %v2676 = vpop.permute.xlu0 %2675
        %2677 = vrot.lane.b32.xlu0 %v1970, 114
        %v2678 = vpop.permute.xlu0 %2677
        %2679 = vrot.lane.b32.xlu0 %v1971, 114
        %v2680 = vpop.permute.xlu0 %2679
        %2681 = vrot.lane.b32.xlu0 %v1972, 114
        %v2682 = vpop.permute.xlu0 %2681
        %2683 = vrot.lane.b32.xlu0 %v1973, 114
        %v2684 = vpop.permute.xlu0 %2683
        %2685 = vrot.lane.b32.xlu0 %v1974, 114
        %v2686 = vpop.permute.xlu0 %2685
        %2687 = vrot.lane.b32.xlu0 %v1975, 114
        %v2688 = vpop.permute.xlu0 %2687
        %2689 = vrot.lane.b32.xlu0 %v1976, 114
        %v2690 = vpop.permute.xlu0 %2689
        %2691 = vrot.lane.b32.xlu0 %v1977, 114
        %v2692 = vpop.permute.xlu0 %2691
        %2693 = vrot.lane.b32.xlu0 %v1978, 114
        %v2694 = vpop.permute.xlu0 %2693
        %2695 = vrot.lane.b32.xlu0 %v1979, 114
        %v2696 = vpop.permute.xlu0 %2695
        %2697 = vrot.lane.b32.xlu0 %v1980, 114
        %v2698 = vpop.permute.xlu0 %2697
        %2699 = vrot.lane.b32.xlu0 %v1981, 114
        %v2700 = vpop.permute.xlu0 %2699
        %vm2701 = vcmask 932864
        %v2702 = vsel %vm2701, %v2606, %v2608
        %v2703 = vsel %vm2701, %v2608, %v2610
        %v2704 = vsel %vm2701, %v2612, %v2614
        %v2705 = vsel %vm2701, %v2614, %v2616
        %v2706 = vsel %vm2701, %v2618, %v2620
        %v2707 = vsel %vm2701, %v2620, %v2622
        %v2708 = vsel %vm2701, %v2624, %v2626
        %v2709 = vsel %vm2701, %v2626, %v2628
        %v2710 = vsel %vm2701, %v2630, %v2632
        %v2711 = vsel %vm2701, %v2632, %v2634
        %v2712 = vsel %vm2701, %v2636, %v2638
        %v2713 = vsel %vm2701, %v2638, %v2640
        %v2714 = vsel %vm2701, %v2642, %v2644
        %v2715 = vsel %vm2701, %v2644, %v2646
        %v2716 = vsel %vm2701, %v2648, %v2650
        %v2717 = vsel %vm2701, %v2650, %v2652
        %v2718 = vsel %vm2701, %v2654, %v2656
        %v2719 = vsel %vm2701, %v2656, %v2658
        %v2720 = vsel %vm2701, %v2660, %v2662
        %v2721 = vsel %vm2701, %v2662, %v2664
        %v2722 = vsel %vm2701, %v2666, %v2668
        %v2723 = vsel %vm2701, %v2668, %v2670
        %v2724 = vsel %vm2701, %v2672, %v2674
        %v2725 = vsel %vm2701, %v2674, %v2676
        %v2726 = vsel %vm2701, %v2678, %v2680
        %v2727 = vsel %vm2701, %v2680, %v2682
        %v2728 = vsel %vm2701, %v2684, %v2686
        %v2729 = vsel %vm2701, %v2686, %v2688
        %v2730 = vsel %vm2701, %v2690, %v2692
        %v2731 = vsel %vm2701, %v2692, %v2694
        %v2732 = vsel %vm2701, %v2696, %v2698
        %v2733 = vsel %vm2701, %v2698, %v2700
        %2766 = vmatprep.subr.mxu0 %v2703
        %2767 = vmatpush1.msra.mxu0 %v2702
        %2768 = vmatprep.subr.mxu0 %v2705
        %2769 = vmatpush1.msra.mxu0 %v2704
        %2770 = vmatprep.subr.mxu0 %v2707
        %2771 = vmatpush1.msra.mxu0 %v2706
        %2772 = vmatprep.subr.mxu0 %v2709
        %2773 = vmatpush1.msra.mxu0 %v2708
        %2774 = vmatprep.subr.mxu0 %v2711
        %2775 = vmatpush1.msra.mxu0 %v2710
        %2776 = vmatprep.subr.mxu0 %v2713
        %2777 = vmatpush1.msra.mxu0 %v2712
        %2778 = vmatprep.subr.mxu0 %v2715
        %2779 = vmatpush1.msra.mxu0 %v2714
        %2780 = vmatprep.subr.mxu0 %v2717
        %2781 = vmatpush1.msra.mxu0 %v2716
        %2782 = vmatprep.subr.mxu0 %v2719
        %2783 = vmatpush1.msra.mxu0 %v2718
        %2784 = vmatprep.subr.mxu0 %v2721
        %2785 = vmatpush1.msra.mxu0 %v2720
        %2786 = vmatprep.subr.mxu0 %v2723
        %2787 = vmatpush1.msra.mxu0 %v2722
        %2788 = vmatprep.subr.mxu0 %v2725
        %2789 = vmatpush1.msra.mxu0 %v2724
        %2790 = vmatprep.subr.mxu0 %v2727
        %2791 = vmatpush1.msra.mxu0 %v2726
        %2792 = vmatprep.subr.mxu0 %v2729
        %2793 = vmatpush1.msra.mxu0 %v2728
        %2794 = vmatprep.subr.mxu0 %v2731
        %2795 = vmatpush1.msra.mxu0 %v2730
        %2796 = vmatprep.subr.mxu0 %v2733
        %2797 = vmatpush1.msra.mxu0 %v2732
        %2798 = vmatprep.subr.mxu0 0.0
        %2799 = vmatpush1.msra.mxu0 0.0
        %2800 = vmatprep.subr.mxu0 0.0
        %2801 = vmatpush1.msra.mxu0 0.0
        %2802 = vmatprep.subr.mxu0 0.0
        %2803 = vmatpush1.msra.mxu0 0.0
        %2804 = vmatprep.subr.mxu0 0.0
        %2805 = vmatpush1.msra.mxu0 0.0
        %2806 = vmatprep.subr.mxu0 0.0
        %2807 = vmatpush1.msra.mxu0 0.0
        %2808 = vmatprep.subr.mxu0 0.0
        %2809 = vmatpush1.msra.mxu0 0.0
        %2810 = vmatprep.subr.mxu0 0.0
        %2811 = vmatpush1.msra.mxu0 0.0
        %2812 = vmatprep.subr.mxu0 0.0
        %2813 = vmatpush1.msra.mxu0 0.0
        %2814 = vmatprep.subr.mxu0 0.0
        %2815 = vmatpush1.msra.mxu0 0.0
        %2816 = vmatprep.subr.mxu0 0.0
        %2817 = vmatpush1.msra.mxu0 0.0
        %2818 = vmatprep.subr.mxu0 0.0
        %2819 = vmatpush1.msra.mxu0 0.0
        %2820 = vmatprep.subr.mxu0 0.0
        %2821 = vmatpush1.msra.mxu0 0.0
        %2822 = vmatprep.subr.mxu0 0.0
        %2823 = vmatpush1.msra.mxu0 0.0
        %2824 = vmatprep.subr.mxu0 0.0
        %2825 = vmatpush1.msra.mxu0 0.0
        %2826 = vmatprep.subr.mxu0 0.0
        %2827 = vmatpush1.msra.mxu0 0.0
        %2828 = vmatprep.subr.mxu0 0.0
        %2829 = vmatpush1.msra.mxu0 0.0
        %2830 = vmatprep.mubr.f32.mxu0 0.0
        %2831 = vmatmul.mubr.f32.gmra.mrb[0].mxu0 %v2601
        %v2832 = vpop.f32.mrb[0].mxu0
        %v2833 = vadd.f32 0.0, %v2832
        %v2834 = vpop.f32.mrb[0].mxu0
        %v2835 = vadd.f32 0.0, %v2834
        %2836 = vmatprep.mubr.f32.mxu0 0.0
        %2837 = vmatmul.mubr.f32.gmra.mrb[0].mxu0 %v2602
        %v2838 = vpop.f32.mrb[0].mxu0
        %v2839 = vadd.f32 0.0, %v2838
        %v2840 = vpop.f32.mrb[0].mxu0
        %v2841 = vadd.f32 0.0, %v2840
        %2842 = vmatprep.mubr.f32.mxu0 0.0
        %2843 = vmatmul.mubr.f32.gmra.mrb[0].mxu0 %v2603
        %v2844 = vpop.f32.mrb[0].mxu0
        %v2845 = vadd.f32 0.0, %v2844
        %v2846 = vpop.f32.mrb[0].mxu0
        %v2847 = vadd.f32 0.0, %v2846
        %2848 = vmatprep.mubr.f32.mxu0 0.0
        %2849 = vmatmul.mubr.f32.gmra.mrb[0].mxu0 %v2604
        %v2850 = vpop.f32.mrb[0].mxu0
        %v2851 = vadd.f32 0.0, %v2850
        %v2852 = vpop.f32.mrb[0].mxu0
        %v2853 = vadd.f32 0.0, %v2852
        %2854 = vdwg.mxu0
        %s2855 = scalar_lea.vmem %s4, 7
        %v2856 = vld [vmem:[%s2855] ss:$8 sm:$0x3]
        %vm2857 = vcmp.gt.f32.partialorder %v2856, 0.0
        %v2858 = vsel %vm2857, 1, 0
        %v2859 = vlaneseq
        %v2860 = vshrl.u32 %v2859, 7
        %v2861 = vsub.s32 0, %v2860
        %v2862 = vrot.slane %v2858, %v2861
        %v2863 = vlaneseq
        %v2864 = vshrl.u32 %v2863, 7
        %v2865 = vsub.s32 1, %v2864
        %v2866 = vrot.slane %v2858, %v2865
        %vm2867 = vcmp.eq.s32.totalorder %v2862, 1
        %vm2868 = vcmp.eq.s32.totalorder %v2866, 1
        %v2869 = vsel %vm2867, %v2833, 0.0
        %v2870 = vsel %vm2868, %v2835, 0.0
        %v2871 = vsel %vm2867, %v2839, 0.0
        %v2872 = vsel %vm2868, %v2841, 0.0
        %v2873 = vsel %vm2867, %v2845, 0.0
        %v2874 = vsel %vm2868, %v2847, 0.0
        %v2875 = vsel %vm2867, %v2851, 0.0
        %v2876 = vsel %vm2868, %v2853, 0.0
        %v2877 = vadd.f32 %v2592, %v2869
        %v2878 = vadd.f32 %v2593, %v2870
        %v2879 = vadd.f32 %v2594, %v2871
        %v2880 = vadd.f32 %v2595, %v2872
        %v2881 = vadd.f32 %v2596, %v2873
        %v2882 = vadd.f32 %v2597, %v2874
        %v2883 = vadd.f32 %v2598, %v2875
        %v2884 = vadd.f32 %v2599, %v2876
        %s2885 = scalar_lea.vmem %s3, 256
        %v2886 = vld [vmem:[%s2885] sm:$0xff]
        %v2887 = vld [vmem:[%s2885 + $0x8] sm:$0xff]
        %v2888 = vld [vmem:[%s2885 + $0x10] sm:$0xff]
        %v2889 = vld [vmem:[%s2885 + $0x18] sm:$0xff]
        %2890 = vrot.lane.b32.xlu0 %v1934, 113
        %v2891 = vpop.permute.xlu0 %2890
        %2892 = vrot.lane.b32.xlu0 %v1935, 113
        %v2893 = vpop.permute.xlu0 %2892
        %2894 = vrot.lane.b32.xlu0 %v1936, 113
        %v2895 = vpop.permute.xlu0 %2894
        %2896 = vrot.lane.b32.xlu0 %v1937, 113
        %v2897 = vpop.permute.xlu0 %2896
        %2898 = vrot.lane.b32.xlu0 %v1938, 113
        %v2899 = vpop.permute.xlu0 %2898
        %2900 = vrot.lane.b32.xlu0 %v1939, 113
        %v2901 = vpop.permute.xlu0 %2900
        %2902 = vrot.lane.b32.xlu0 %v1940, 113
        %v2903 = vpop.permute.xlu0 %2902
        %2904 = vrot.lane.b32.xlu0 %v1941, 113
        %v2905 = vpop.permute.xlu0 %2904
        %2906 = vrot.lane.b32.xlu0 %v1942, 113
        %v2907 = vpop.permute.xlu0 %2906
        %2908 = vrot.lane.b32.xlu0 %v1943, 113
        %v2909 = vpop.permute.xlu0 %2908
        %2910 = vrot.lane.b32.xlu0 %v1944, 113
        %v2911 = vpop.permute.xlu0 %2910
        %2912 = vrot.lane.b32.xlu0 %v1945, 113
        %v2913 = vpop.permute.xlu0 %2912
        %2914 = vrot.lane.b32.xlu0 %v1946, 113
        %v2915 = vpop.permute.xlu0 %2914
        %2916 = vrot.lane.b32.xlu0 %v1947, 113
        %v2917 = vpop.permute.xlu0 %2916
        %2918 = vrot.lane.b32.xlu0 %v1948, 113
        %v2919 = vpop.permute.xlu0 %2918
        %2920 = vrot.lane.b32.xlu0 %v1949, 113
        %v2921 = vpop.permute.xlu0 %2920
        %2922 = vrot.lane.b32.xlu0 %v1950, 113
        %v2923 = vpop.permute.xlu0 %2922
        %2924 = vrot.lane.b32.xlu0 %v1951, 113
        %v2925 = vpop.permute.xlu0 %2924
        %2926 = vrot.lane.b32.xlu0 %v1952, 113
        %v2927 = vpop.permute.xlu0 %2926
        %2928 = vrot.lane.b32.xlu0 %v1953, 113
        %v2929 = vpop.permute.xlu0 %2928
        %2930 = vrot.lane.b32.xlu0 %v1954, 113
        %v2931 = vpop.permute.xlu0 %2930
        %2932 = vrot.lane.b32.xlu0 %v1955, 113
        %v2933 = vpop.permute.xlu0 %2932
        %2934 = vrot.lane.b32.xlu0 %v1956, 113
        %v2935 = vpop.permute.xlu0 %2934
        %2936 = vrot.lane.b32.xlu0 %v1957, 113
        %v2937 = vpop.permute.xlu0 %2936
        %2938 = vrot.lane.b32.xlu0 %v1958, 113
        %v2939 = vpop.permute.xlu0 %2938
        %2940 = vrot.lane.b32.xlu0 %v1959, 113
        %v2941 = vpop.permute.xlu0 %2940
        %2942 = vrot.lane.b32.xlu0 %v1960, 113
        %v2943 = vpop.permute.xlu0 %2942
        %2944 = vrot.lane.b32.xlu0 %v1961, 113
        %v2945 = vpop.permute.xlu0 %2944
        %2946 = vrot.lane.b32.xlu0 %v1962, 113
        %v2947 = vpop.permute.xlu0 %2946
        %2948 = vrot.lane.b32.xlu0 %v1963, 113
        %v2949 = vpop.permute.xlu0 %2948
        %2950 = vrot.lane.b32.xlu0 %v1964, 113
        %v2951 = vpop.permute.xlu0 %2950
        %2952 = vrot.lane.b32.xlu0 %v1965, 113
        %v2953 = vpop.permute.xlu0 %2952
        %2954 = vrot.lane.b32.xlu0 %v1966, 113
        %v2955 = vpop.permute.xlu0 %2954
        %2956 = vrot.lane.b32.xlu0 %v1967, 113
        %v2957 = vpop.permute.xlu0 %2956
        %2958 = vrot.lane.b32.xlu0 %v1968, 113
        %v2959 = vpop.permute.xlu0 %2958
        %2960 = vrot.lane.b32.xlu0 %v1969, 113
        %v2961 = vpop.permute.xlu0 %2960
        %2962 = vrot.lane.b32.xlu0 %v1970, 113
        %v2963 = vpop.permute.xlu0 %2962
        %2964 = vrot.lane.b32.xlu0 %v1971, 113
        %v2965 = vpop.permute.xlu0 %2964
        %2966 = vrot.lane.b32.xlu0 %v1972, 113
        %v2967 = vpop.permute.xlu0 %2966
        %2968 = vrot.lane.b32.xlu0 %v1973, 113
        %v2969 = vpop.permute.xlu0 %2968
        %2970 = vrot.lane.b32.xlu0 %v1974, 113
        %v2971 = vpop.permute.xlu0 %2970
        %2972 = vrot.lane.b32.xlu0 %v1975, 113
        %v2973 = vpop.permute.xlu0 %2972
        %2974 = vrot.lane.b32.xlu0 %v1976, 113
        %v2975 = vpop.permute.xlu0 %2974
        %2976 = vrot.lane.b32.xlu0 %v1977, 113
        %v2977 = vpop.permute.xlu0 %2976
        %2978 = vrot.lane.b32.xlu0 %v1978, 113
        %v2979 = vpop.permute.xlu0 %2978
        %2980 = vrot.lane.b32.xlu0 %v1979, 113
        %v2981 = vpop.permute.xlu0 %2980
        %2982 = vrot.lane.b32.xlu0 %v1980, 113
        %v2983 = vpop.permute.xlu0 %2982
        %2984 = vrot.lane.b32.xlu0 %v1981, 113
        %v2985 = vpop.permute.xlu0 %2984
        %vm2986 = vcmask 924672
        %v2987 = vsel %vm2986, %v2891, %v2893
        %v2988 = vsel %vm2986, %v2893, %v2895
        %v2989 = vsel %vm2986, %v2897, %v2899
        %v2990 = vsel %vm2986, %v2899, %v2901
        %v2991 = vsel %vm2986, %v2903, %v2905
        %v2992 = vsel %vm2986, %v2905, %v2907
        %v2993 = vsel %vm2986, %v2909, %v2911
        %v2994 = vsel %vm2986, %v2911, %v2913
        %v2995 = vsel %vm2986, %v2915, %v2917
        %v2996 = vsel %vm2986, %v2917, %v2919
        %v2997 = vsel %vm2986, %v2921, %v2923
        %v2998 = vsel %vm2986, %v2923, %v2925
        %v2999 = vsel %vm2986, %v2927, %v2929
        %v3000 = vsel %vm2986, %v2929, %v2931
        %v3001 = vsel %vm2986, %v2933, %v2935
        %v3002 = vsel %vm2986, %v2935, %v2937
        %v3003 = vsel %vm2986, %v2939, %v2941
        %v3004 = vsel %vm2986, %v2941, %v2943
        %v3005 = vsel %vm2986, %v2945, %v2947
        %v3006 = vsel %vm2986, %v2947, %v2949
        %v3007 = vsel %vm2986, %v2951, %v2953
        %v3008 = vsel %vm2986, %v2953, %v2955
        %v3009 = vsel %vm2986, %v2957, %v2959
        %v3010 = vsel %vm2986, %v2959, %v2961
        %v3011 = vsel %vm2986, %v2963, %v2965
        %v3012 = vsel %vm2986, %v2965, %v2967
        %v3013 = vsel %vm2986, %v2969, %v2971
        %v3014 = vsel %vm2986, %v2971, %v2973
        %v3015 = vsel %vm2986, %v2975, %v2977
        %v3016 = vsel %vm2986, %v2977, %v2979
        %v3017 = vsel %vm2986, %v2981, %v2983
        %v3018 = vsel %vm2986, %v2983, %v2985
        %3051 = vmatprep.subr.mxu0 %v2988
        %3052 = vmatpush1.msra.mxu0 %v2987
        %3053 = vmatprep.subr.mxu0 %v2990
        %3054 = vmatpush1.msra.mxu0 %v2989
        %3055 = vmatprep.subr.mxu0 %v2992
        %3056 = vmatpush1.msra.mxu0 %v2991
        %3057 = vmatprep.subr.mxu0 %v2994
        %3058 = vmatpush1.msra.mxu0 %v2993
        %3059 = vmatprep.subr.mxu0 %v2996
        %3060 = vmatpush1.msra.mxu0 %v2995
        %3061 = vmatprep.subr.mxu0 %v2998
        %3062 = vmatpush1.msra.mxu0 %v2997
        %3063 = vmatprep.subr.mxu0 %v3000
        %3064 = vmatpush1.msra.mxu0 %v2999
        %3065 = vmatprep.subr.mxu0 %v3002
        %3066 = vmatpush1.msra.mxu0 %v3001
        %3067 = vmatprep.subr.mxu0 %v3004
        %3068 = vmatpush1.msra.mxu0 %v3003
        %3069 = vmatprep.subr.mxu0 %v3006
        %3070 = vmatpush1.msra.mxu0 %v3005
        %3071 = vmatprep.subr.mxu0 %v3008
        %3072 = vmatpush1.msra.mxu0 %v3007
        %3073 = vmatprep.subr.mxu0 %v3010
        %3074 = vmatpush1.msra.mxu0 %v3009
        %3075 = vmatprep.subr.mxu0 %v3012
        %3076 = vmatpush1.msra.mxu0 %v3011
        %3077 = vmatprep.subr.mxu0 %v3014
        %3078 = vmatpush1.msra.mxu0 %v3013
        %3079 = vmatprep.subr.mxu0 %v3016
        %3080 = vmatpush1.msra.mxu0 %v3015
        %3081 = vmatprep.subr.mxu0 %v3018
        %3082 = vmatpush1.msra.mxu0 %v3017
        %3083 = vmatprep.subr.mxu0 0.0
        %3084 = vmatpush1.msra.mxu0 0.0
        %3085 = vmatprep.subr.mxu0 0.0
        %3086 = vmatpush1.msra.mxu0 0.0
        %3087 = vmatprep.subr.mxu0 0.0
        %3088 = vmatpush1.msra.mxu0 0.0
        %3089 = vmatprep.subr.mxu0 0.0
        %3090 = vmatpush1.msra.mxu0 0.0
        %3091 = vmatprep.subr.mxu0 0.0
        %3092 = vmatpush1.msra.mxu0 0.0
        %3093 = vmatprep.subr.mxu0 0.0
        %3094 = vmatpush1.msra.mxu0 0.0
        %3095 = vmatprep.subr.mxu0 0.0
        %3096 = vmatpush1.msra.mxu0 0.0
        %3097 = vmatprep.subr.mxu0 0.0
        %3098 = vmatpush1.msra.mxu0 0.0
        %3099 = vmatprep.subr.mxu0 0.0
        %3100 = vmatpush1.msra.mxu0 0.0
        %3101 = vmatprep.subr.mxu0 0.0
        %3102 = vmatpush1.msra.mxu0 0.0
        %3103 = vmatprep.subr.mxu0 0.0
        %3104 = vmatpush1.msra.mxu0 0.0
        %3105 = vmatprep.subr.mxu0 0.0
        %3106 = vmatpush1.msra.mxu0 0.0
        %3107 = vmatprep.subr.mxu0 0.0
        %3108 = vmatpush1.msra.mxu0 0.0
        %3109 = vmatprep.subr.mxu0 0.0
        %3110 = vmatpush1.msra.mxu0 0.0
        %3111 = vmatprep.subr.mxu0 0.0
        %3112 = vmatpush1.msra.mxu0 0.0
        %3113 = vmatprep.subr.mxu0 0.0
        %3114 = vmatpush1.msra.mxu0 0.0
        %3115 = vmatprep.mubr.f32.mxu0 0.0
        %3116 = vmatmul.mubr.f32.gmra.mrb[0].mxu0 %v2886
        %v3117 = vpop.f32.mrb[0].mxu0
        %v3118 = vadd.f32 0.0, %v3117
        %v3119 = vpop.f32.mrb[0].mxu0
        %v3120 = vadd.f32 0.0, %v3119
        %3121 = vmatprep.mubr.f32.mxu0 0.0
        %3122 = vmatmul.mubr.f32.gmra.mrb[0].mxu0 %v2887
        %v3123 = vpop.f32.mrb[0].mxu0
        %v3124 = vadd.f32 0.0, %v3123
        %v3125 = vpop.f32.mrb[0].mxu0
        %v3126 = vadd.f32 0.0, %v3125
        %3127 = vmatprep.mubr.f32.mxu0 0.0
        %3128 = vmatmul.mubr.f32.gmra.mrb[0].mxu0 %v2888
        %v3129 = vpop.f32.mrb[0].mxu0
        %v3130 = vadd.f32 0.0, %v3129
        %v3131 = vpop.f32.mrb[0].mxu0
        %v3132 = vadd.f32 0.0, %v3131
        %3133 = vmatprep.mubr.f32.mxu0 0.0
        %3134 = vmatmul.mubr.f32.gmra.mrb[0].mxu0 %v2889
        %v3135 = vpop.f32.mrb[0].mxu0
        %v3136 = vadd.f32 0.0, %v3135
        %v3137 = vpop.f32.mrb[0].mxu0
        %v3138 = vadd.f32 0.0, %v3137
        %3139 = vdwg.mxu0
        %s3140 = scalar_lea.vmem %s4, 16
        %v3141 = vld [vmem:[%s3140] ss:$8 sm:$0x3]
        %vm3142 = vcmp.gt.f32.partialorder %v3141, 0.0
        %v3143 = vsel %vm3142, 1, 0
        %v3144 = vlaneseq
        %v3145 = vshrl.u32 %v3144, 7
        %v3146 = vsub.s32 0, %v3145
        %v3147 = vrot.slane %v3143, %v3146
        %v3148 = vlaneseq
        %v3149 = vshrl.u32 %v3148, 7
        %v3150 = vsub.s32 1, %v3149
        %v3151 = vrot.slane %v3143, %v3150
        %vm3152 = vcmp.eq.s32.totalorder %v3147, 1
        %vm3153 = vcmp.eq.s32.totalorder %v3151, 1
        %v3154 = vsel %vm3152, %v3118, 0.0
        %v3155 = vsel %vm3153, %v3120, 0.0
        %v3156 = vsel %vm3152, %v3124, 0.0
        %v3157 = vsel %vm3153, %v3126, 0.0
        %v3158 = vsel %vm3152, %v3130, 0.0
        %v3159 = vsel %vm3153, %v3132, 0.0
        %v3160 = vsel %vm3152, %v3136, 0.0
        %v3161 = vsel %vm3153, %v3138, 0.0
        %v3162 = vadd.f32 %v2877, %v3154
        %v3163 = vadd.f32 %v2878, %v3155
        %v3164 = vadd.f32 %v2879, %v3156
        %v3165 = vadd.f32 %v2880, %v3157
        %v3166 = vadd.f32 %v2881, %v3158
        %v3167 = vadd.f32 %v2882, %v3159
        %v3168 = vadd.f32 %v2883, %v3160
        %v3169 = vadd.f32 %v2884, %v3161
        %3170 = vst [vmem:[%s217] sm:$0xff] %v3162
        %3171 = vst.msk [vmem:[%s217 + $0x8] sm:$0xff] %vm544, %v3163
        %3172 = vst [vmem:[%s217 + $0x10] sm:$0xff] %v3164
        %3173 = vst.msk [vmem:[%s217 + $0x18] sm:$0xff] %vm544, %v3165
        %3174 = vst [vmem:[%s217 + $0x20] sm:$0xff] %v3166
        %3175 = vst.msk [vmem:[%s217 + $0x28] sm:$0xff] %vm544, %v3167
        %3176 = vst [vmem:[%s217 + $0x30] sm:$0xff] %v3168
        %3177 = vst.msk [vmem:[%s217 + $0x38] sm:$0xff] %vm544, %v3169
        %s3178 = sand.u32 %s137, 1
        %s3179 = scalar_lea.sflag [#allocation4], %s3178
        %s3180 = sand.u32 %s137, 1
        %s3181 = smul.addr %s3180, 64
        %s3182 = scalar_lea.vmem [#allocation3], %s3181
        // Predicated region
        $region41: #{tpu_custom_call.1} parent=39 // pred_check
          %p3183 = pneg %p147
        $region42: #{tpu_custom_call.1} parent=39 // pred_check_branch
          %3185 = sbr.rel (%p3183) target = $region44
        $region43: #{tpu_custom_call.1} parent=39 // pred_region
          %s3187 = ssub.s32 1024, 1024
          %3188 = vsyncadd %s3179, %s3187
          %s3189 = smul.addr %s19, 8
          %s3190 = smul.addr %s3189, 128
          %s3191 = scalar_lea.hbm %s5, %s3190
          %s3192 = sshll.u32 %s3182, 4
          %s3193 = int_to_ptr.vmem [resolvable:$true] %s3192
          %3198 = dma.vmem_to_hbm [thread:$0]  %s3193, 1024, %s3191, %s3179, 256, 256, 16
        $region44: #{tpu_custom_call.1} parent=39 // pred_fallthru
          _
      $region40: #{tpu_custom_call.1} parent=5 // pred_fallthru
        _
      %p3199 = scmp.le.s32.totalorder 2, %s14
      // Predicated region
      $region45: #{tpu_custom_call.1} parent=5 // pred_check
        %p3200 = pneg %p3199
      $region46: #{tpu_custom_call.1} parent=5 // pred_check_branch
        %3202 = sbr.rel (%p3200) target = $region48
      $region47: #{tpu_custom_call.1} parent=5 // pred_region
        %s3203 = ssub.s32 %s14, 2
        // Predicated region
        $region49: #{tpu_custom_call.1} parent=47 // pred_check
          %p3204 = pneg %p153
        $region50: #{tpu_custom_call.1} parent=47 // pred_check_branch
          %3206 = sbr.rel (%p3204) target = $region52
        $region51: #{tpu_custom_call.1} parent=47 // pred_region
          %s3207 = sand.u32 %s138, 1
          %s3208 = scalar_lea.sflag [#allocation4], %s3207
          %s3209 = sand.u32 %s138, 1
          %s3210 = smul.addr %s3209, 64
          %s3211 = scalar_lea.vmem [#allocation3], %s3210
          %3212 = dma.done %s3208, 1024
        $region52: #{tpu_custom_call.1} parent=47 // pred_fallthru
          _
      $region48: #{tpu_custom_call.1} parent=5 // pred_fallthru
        _
    $region6: #{tpu_custom_call.1} parent=1 // loop_footer
      %s18 = sadd.s32 1, %s14
    $region7: #{tpu_custom_call.1} parent=1 // loop_footer_branch
      %13 = sbr.rel target = $region3
    $region8: #{tpu_custom_call.1} parent=1 // loop_exit
      _
    %3213 = vsyncpa [#allocation4], 1
    %s3214 = scalar_lea.sflag [#allocation4], 1
    %3215 = vsyncpa %s3214, 1

</llo_original>
